<compile_context>
chip_gen: v6e
topology: v6e:2x2x1
jax: 0.10.0
libtpu: 0.0.40
codegen_flags: <defaults>
</compile_context>

<pallas_src>
import functools

import numpy as np
import jax
import jax.numpy as jnp
from jax import lax
from jax.experimental import pallas as pl
from jax.experimental.pallas import tpu as pltpu

MAX_ITER = 100       # sink() numItermax default
STOP_THR = 1e-3      # sink() stopThr default
EPSILON = 1e-4       # Sinkhorn.__init__ epsilon
LANES = 128          # batch tile on the lane axis
CHECK_EVERY = 5      # iterations per scalar convergence check (divides MAX_ITER)


def _matvec_over_leading(M, x_d):
    """Computes y[s, b] = sum_l M[l, s, b] * x[l, b].

    M:   (L, S, TB) zero-padded matrix (contraction over its leading axis).
    x_d: (1, L, TB) dense vector.
    Returns (1, S, TB) dense.  The contraction over the leading axis is pure
    VPU work; x is consumed through static sublane slices that broadcast over
    S.  Tree accumulation keeps the serial add chain at log2(L).
    """
    L = M.shape[0]
    terms = [M[l:l + 1] * x_d[:, l:l + 1, :] for l in range(L)]
    while len(terms) > 1:
        nxt = [terms[i] + terms[i + 1] for i in range(0, len(terms) - 1, 2)]
        if len(terms) % 2:
            nxt.append(terms[-1])
        terms = nxt
    return terms[0]


def _sinkhorn_kernel(na_ref, nb_ref, s_ref, st_ref, out_ref, *, epsilon):
    # s_ref:  (R, C, TB) block -- TB batch samples on the lane axis.
    # st_ref: (C, R, TB) transposed copy of the same block.
    # na_ref / nb_ref: (1, TB) int32 = nrows+1 / ncols+1 (0 marks padded lanes).
    R, C, TB = s_ref.shape
    f32 = jnp.float32

    na = na_ref[...].reshape(1, 1, TB)
    nb = nb_ref[...].reshape(1, 1, TB)
    naf = na.astype(f32)
    nbf = nb.astype(f32)

    # ---- one-time setup -----------------------------------------------------
    eps = f32(epsilon)                          # folded in: no wrapper round trip
    row3 = lax.broadcasted_iota(jnp.int32, (R, 1, TB), 0)
    col3 = lax.broadcasted_iota(jnp.int32, (1, C, TB), 1)
    K = jnp.where((row3 < na) & (col3 < nb), s_ref[...] + eps, 0.0)     # (R,C,TB)
    c3 = lax.broadcasted_iota(jnp.int32, (C, 1, TB), 0)
    r3 = lax.broadcasted_iota(jnp.int32, (1, R, TB), 1)
    KT = jnp.where((c3 < nb) & (r3 < na), st_ref[...] + eps, 0.0)       # (C,R,TB)

    r_idx = lax.broadcasted_iota(jnp.int32, (1, R, TB), 1)
    c_idx = lax.broadcasted_iota(jnp.int32, (1, C, TB), 1)
    row_mask = r_idx < na                                   # (1,R,TB)
    col_mask = c_idx < nb                                   # (1,C,TB)
    a_d = jnp.where(r_idx == na - 1, nbf - 1.0, 1.0)        # marginal a
    b_d = jnp.where(c_idx == nb - 1, naf - 1.0, 1.0)        # marginal b

    u0 = jnp.ones((1, R, TB), f32)
    v0 = jnp.ones((1, C, TB), f32)
    # Lanes whose kept output region is empty (incl. padded lanes) start done:
    # their output is all zeros regardless, and this avoids any 0*inf path.
    done0 = jnp.where((na <= 1) | (nb <= 1), 1.0, 0.0).astype(f32)

    def one_step(u_d, v_d, done):
        # Reference iteration:  v = b / (K^T u);   u = a / (K v)   (Kp removed)
        ktu = _matvec_over_leading(K, u_d)                           # (1,C,TB)
        v_new = jnp.where(col_mask, b_d * pl.reciprocal(ktu, approx=True), 1.0)
        kpv = _matvec_over_leading(KT, v_new)                        # (1,R,TB)
        u_new = jnp.where(row_mask, a_d * pl.reciprocal(kpv, approx=True), 1.0)
        du = jnp.sum(jnp.abs(u_d - u_new), axis=1, keepdims=True)    # ||uprev-u||_1
        dv = jnp.sum(jnp.abs(v_d - v_new), axis=1, keepdims=True)    # ||vprev-v||_1
        err = du * du + dv * dv                                      # (1,1,TB)
        frozen = done > 0.5
        u_d = jnp.where(frozen, u_d, u_new)                          # per-lane freeze
        v_d = jnp.where(frozen, v_d, v_new)
        done = jnp.maximum(done, jnp.where(err <= STOP_THR, 1.0, 0.0))
        return u_d, v_d, done

    def cond(carry):
        cpt, _, _, done = carry
        # Vector->scalar sync only once per CHECK_EVERY iterations.
        return jnp.logical_and(cpt < MAX_ITER, jnp.max(1.0 - done) > 0.0)

    def body(carry):
        cpt, u_d, v_d, done = carry
        for _ in range(CHECK_EVERY):          # static unroll inside one sync
            u_d, v_d, done = one_step(u_d, v_d, done)
        return cpt + CHECK_EVERY, u_d, v_d, done

    _, u_d, v_d, _ = lax.while_loop(cond, body, (jnp.int32(0), u0, v0, done0))

    # gamma = u.view(-1,1) * K * v.view(1,-1), kept only on [:nrows, :ncols].
    # train_stage: s_tem[-1][-1] = 0 -- that element is outside `keep` anyway.
    col_keep = c_idx < nb - 1                                        # (1,C,TB)
    for r in range(R):
        u_r = u_d[:, r:r + 1, :]                                     # (1,1,TB)
        keep_r = jnp.logical_and(na - 1 > r, col_keep)               # (1,C,TB)
        g_r = jnp.where(keep_r, K[r:r + 1] * u_r * v_d, 0.0)
        out_ref[r] = g_r[0]                       # lane-dense, unmasked store


def sinkhorn_forward(s, nrows, ncols, epsilon=EPSILON):
    """JAX/Pallas equivalent of Sinkhorn.forward(s, nrows, ncols)."""
    B, R, C = s.shape
    TB = LANES
    Bp = ((B + TB - 1) // TB) * TB               # pad batch to 128-lane tiles
    # NOTE(v7x): with B >= 256 the grid has >= 2 parallel steps so both
    # TensorCores get work; for tiny B the whole problem is a single tile.

    s32 = jnp.asarray(s, jnp.float32)
    s_rc = jnp.transpose(s32, (1, 2, 0))         # (R, C, B): batch -> lanes
    s_cr = jnp.transpose(s32, (2, 1, 0))         # (C, R, B): transposed copy
    na = jnp.asarray(nrows, jnp.int32) + 1       # expand_mat row counts
    nb = jnp.asarray(ncols, jnp.int32) + 1       # expand_mat col counts
    if Bp != B:
        pad = Bp - B
        s_rc = jnp.pad(s_rc, ((0, 0), (0, 0), (0, pad)))
        s_cr = jnp.pad(s_cr, ((0, 0), (0, 0), (0, pad)))
        na = jnp.pad(na, (0, pad))               # 0 => inactive (padded) lane
        nb = jnp.pad(nb, (0, pad))
    na2 = na.reshape(1, Bp)
    nb2 = nb.reshape(1, Bp)

    kernel = functools.partial(_sinkhorn_kernel, epsilon=float(epsilon))
    out_full = pl.pallas_call(
        kernel,
        out_shape=jax.ShapeDtypeStruct((R, C, Bp), jnp.float32),
        grid_spec=pltpu.PrefetchScalarGridSpec(
            num_scalar_prefetch=0,
            grid=(Bp // TB,),
            in_specs=[
                pl.BlockSpec((1, TB), lambda b: (0, b)),            # na per lane
                pl.BlockSpec((1, TB), lambda b: (0, b)),            # nb per lane
                pl.BlockSpec((R, C, TB), lambda b: (0, 0, b)),      # s  (R,C,lane)
                pl.BlockSpec((C, R, TB), lambda b: (0, 0, b)),      # s^T (C,R,lane)
            ],
            out_specs=pl.BlockSpec((R, C, TB), lambda b: (0, 0, b)),
        ),
        compiler_params=pltpu.CompilerParams(dimension_semantics=("parallel",)),
    )(na2, nb2, s_rc, s_cr)

    # Back to (B, R-1, C-1); the kernel already zeroed everything outside
    # [:nrows[b], :ncols[b]], so this is just a transpose + static slice.
    return jnp.transpose(out_full, (2, 0, 1))[:B, : R - 1, : C - 1]


def torch_reference(s_np, nrows, ncols, epsilon=EPSILON,
                    num_iter_max=MAX_ITER, stop_thr=STOP_THR):
    """NumPy emulation of the PyTorch module's forward (default flags)."""
    s = s_np.astype(np.float32) + np.float32(epsilon)
    B, R, C = s.shape
    out = np.zeros((B, R - 1, C - 1), np.float32)
    for bi in range(B):
        na, nb = int(nrows[bi]) + 1, int(ncols[bi]) + 1
        K = s[bi, :na, :nb].copy()
        a = np.ones(na, np.float32); a[-1] = nb - 1
        bvec = np.ones(nb, np.float32); bvec[-1] = na - 1
        u = np.ones(na, np.float32); v = np.ones(nb, np.float32)
        Kp = (1.0 / a)[:, None] * K
        cpt, err_res = 0, 1.0
        while cpt < num_iter_max and err_res > stop_thr:
            uprev, vprev = u, v
            v = bvec / (K.T @ u)
            u = 1.0 / (Kp @ v)
            err_res = np.abs(uprev - u).sum() ** 2 + np.abs(vprev - v).sum() ** 2
            cpt += 1
        s_tem = u[:, None] * K * v[None, :]
        # train_stage: s_tem[-1, -1] = 0 (dropped by slicing below anyway)
        out[bi, : nrows[bi], : ncols[bi]] = s_tem[: nrows[bi], : ncols[bi]]
    return out


if __name__ == "__main__":
    key = jax.random.PRNGKey(0)
    B, R, C = 3, 16, 16
    # Positive similarity-like matrix, as this layer expects.
    s = jax.random.uniform(key, (B, R, C), dtype=jnp.float32)
    nrows = np.array([12, 15, 9], dtype=np.int32)    # per-sample valid row counts
    ncols = np.array([14, 10, 15], dtype=np.int32)   # per-sample valid col counts

    out = sinkhorn_forward(s, nrows, ncols)
    out = jax.block_until_ready(out)

    ref = torch_reference(np.asarray(s), nrows, ncols)
    assert out.shape == ref.shape == (B, R - 1, C - 1)
    # Tolerance slightly relaxed vs. exact-division version: the in-loop
    # approximate reciprocal (and stopThr=1e-3 convergence) bounds the drift.
    np.testing.assert_allclose(np.asarray(out), ref, rtol=5e-3, atol=5e-4)
    print("KERNEL_OK")
</pallas_src>

<mosaic_0001>
module attributes {stable_mosaic.version = 11 : i64} {
  func.func @_sinkhorn_kernel(%arg0: i32, %arg1: memref<1x128xi32, #tpu.memory_space<vmem>>, %arg2: memref<1x128xi32, #tpu.memory_space<vmem>>, %arg3: memref<16x16x128xf32, #tpu.memory_space<vmem>>, %arg4: memref<16x16x128xf32, #tpu.memory_space<vmem>>, %arg5: memref<16x16x128xf32, #tpu.memory_space<vmem>>) attributes {dimension_semantics = [#tpu.dimension_semantics<parallel>], iteration_bounds = array<i64: 1>, scalar_prefetch = 0 : i64, scratch_operands = 0 : i64, tpu.core_type = #tpu.core_type<tc>, window_params = [{transform_indices = @transform_0, window_bounds = array<i64: 1, 128>}, {transform_indices = @transform_1, window_bounds = array<i64: 1, 128>}, {transform_indices = @transform_2, window_bounds = array<i64: 16, 16, 128>}, {transform_indices = @transform_3, window_bounds = array<i64: 16, 16, 128>}, {transform_indices = @transform_4, window_bounds = array<i64: 16, 16, 128>}]} {
    %c0 = arith.constant 0 : index
    %c0_0 = arith.constant 0 : index
    %0 = vector.load %arg1[%c0, %c0_0] : memref<1x128xi32, #tpu.memory_space<vmem>>, vector<1x128xi32>
    %1 = vector.shape_cast %0 : vector<1x128xi32> to vector<1x1x128xi32>
    %c0_1 = arith.constant 0 : index
    %c0_2 = arith.constant 0 : index
    %2 = vector.load %arg2[%c0_1, %c0_2] : memref<1x128xi32, #tpu.memory_space<vmem>>, vector<1x128xi32>
    %3 = vector.shape_cast %2 : vector<1x128xi32> to vector<1x1x128xi32>
    %4 = arith.sitofp %1 : vector<1x1x128xi32> to vector<1x1x128xf32>
    %5 = arith.sitofp %3 : vector<1x1x128xi32> to vector<1x1x128xf32>
    %6 = tpu.iota {dimensions = array<i32: 0>} : vector<16x1x128xi32>
    %7 = tpu.iota {dimensions = array<i32: 1>} : vector<1x16x128xi32>
    %8 = vector.broadcast %1 : vector<1x1x128xi32> to vector<16x1x128xi32>
    %9 = arith.cmpi slt, %6, %8 : vector<16x1x128xi32>
    %10 = vector.broadcast %3 : vector<1x1x128xi32> to vector<1x16x128xi32>
    %11 = arith.cmpi slt, %7, %10 : vector<1x16x128xi32>
    %12 = vector.broadcast %9 : vector<16x1x128xi1> to vector<16x16x128xi1>
    %13 = vector.broadcast %11 : vector<1x16x128xi1> to vector<16x16x128xi1>
    %14 = arith.andi %12, %13 : vector<16x16x128xi1>
    %c0_3 = arith.constant 0 : index
    %c0_4 = arith.constant 0 : index
    %c0_5 = arith.constant 0 : index
    %15 = vector.load %arg3[%c0_3, %c0_4, %c0_5] : memref<16x16x128xf32, #tpu.memory_space<vmem>>, vector<16x16x128xf32>
    %cst = arith.constant 9.99999974E-5 : f32
    %16 = vector.broadcast %cst : f32 to vector<16x16x128xf32>
    %17 = arith.addf %15, %16 : vector<16x16x128xf32>
    %cst_6 = arith.constant 0.000000e+00 : f32
    %18 = vector.broadcast %cst_6 : f32 to vector<16x16x128xf32>
    %19 = arith.select %14, %17, %18 : vector<16x16x128xi1>, vector<16x16x128xf32>
    %20 = tpu.iota {dimensions = array<i32: 0>} : vector<16x1x128xi32>
    %21 = tpu.iota {dimensions = array<i32: 1>} : vector<1x16x128xi32>
    %22 = vector.broadcast %3 : vector<1x1x128xi32> to vector<16x1x128xi32>
    %23 = arith.cmpi slt, %20, %22 : vector<16x1x128xi32>
    %24 = vector.broadcast %1 : vector<1x1x128xi32> to vector<1x16x128xi32>
    %25 = arith.cmpi slt, %21, %24 : vector<1x16x128xi32>
    %26 = vector.broadcast %23 : vector<16x1x128xi1> to vector<16x16x128xi1>
    %27 = vector.broadcast %25 : vector<1x16x128xi1> to vector<16x16x128xi1>
    %28 = arith.andi %26, %27 : vector<16x16x128xi1>
    %c0_7 = arith.constant 0 : index
    %c0_8 = arith.constant 0 : index
    %c0_9 = arith.constant 0 : index
    %29 = vector.load %arg4[%c0_7, %c0_8, %c0_9] : memref<16x16x128xf32, #tpu.memory_space<vmem>>, vector<16x16x128xf32>
    %cst_10 = arith.constant 9.99999974E-5 : f32
    %30 = vector.broadcast %cst_10 : f32 to vector<16x16x128xf32>
    %31 = arith.addf %29, %30 : vector<16x16x128xf32>
    %cst_11 = arith.constant 0.000000e+00 : f32
    %32 = vector.broadcast %cst_11 : f32 to vector<16x16x128xf32>
    %33 = arith.select %28, %31, %32 : vector<16x16x128xi1>, vector<16x16x128xf32>
    %34 = tpu.iota {dimensions = array<i32: 1>} : vector<1x16x128xi32>
    %35 = tpu.iota {dimensions = array<i32: 1>} : vector<1x16x128xi32>
    %36 = vector.broadcast %1 : vector<1x1x128xi32> to vector<1x16x128xi32>
    %37 = arith.cmpi slt, %34, %36 : vector<1x16x128xi32>
    %38 = vector.broadcast %3 : vector<1x1x128xi32> to vector<1x16x128xi32>
    %39 = arith.cmpi slt, %35, %38 : vector<1x16x128xi32>
    %c1_i32 = arith.constant 1 : i32
    %40 = vector.broadcast %c1_i32 : i32 to vector<1x1x128xi32>
    %41 = arith.subi %1, %40 : vector<1x1x128xi32>
    %42 = vector.broadcast %41 : vector<1x1x128xi32> to vector<1x16x128xi32>
    %43 = arith.cmpi eq, %34, %42 : vector<1x16x128xi32>
    %cst_12 = arith.constant 1.000000e+00 : f32
    %44 = vector.broadcast %cst_12 : f32 to vector<1x1x128xf32>
    %45 = arith.subf %5, %44 : vector<1x1x128xf32>
    %cst_13 = arith.constant 1.000000e+00 : f32
    %46 = vector.shape_cast %45 : vector<1x1x128xf32> to vector<1x1x128xf32>
    %47 = vector.broadcast %46 : vector<1x1x128xf32> to vector<1x16x128xf32>
    %48 = vector.broadcast %cst_13 : f32 to vector<1x16x128xf32>
    %49 = arith.select %43, %47, %48 : vector<1x16x128xi1>, vector<1x16x128xf32>
    %c1_i32_14 = arith.constant 1 : i32
    %50 = vector.broadcast %c1_i32_14 : i32 to vector<1x1x128xi32>
    %51 = arith.subi %3, %50 : vector<1x1x128xi32>
    %52 = vector.broadcast %51 : vector<1x1x128xi32> to vector<1x16x128xi32>
    %53 = arith.cmpi eq, %35, %52 : vector<1x16x128xi32>
    %cst_15 = arith.constant 1.000000e+00 : f32
    %54 = vector.broadcast %cst_15 : f32 to vector<1x1x128xf32>
    %55 = arith.subf %4, %54 : vector<1x1x128xf32>
    %cst_16 = arith.constant 1.000000e+00 : f32
    %56 = vector.shape_cast %55 : vector<1x1x128xf32> to vector<1x1x128xf32>
    %57 = vector.broadcast %56 : vector<1x1x128xf32> to vector<1x16x128xf32>
    %58 = vector.broadcast %cst_16 : f32 to vector<1x16x128xf32>
    %59 = arith.select %53, %57, %58 : vector<1x16x128xi1>, vector<1x16x128xf32>
    %cst_17 = arith.constant 1.000000e+00 : f32
    %60 = vector.broadcast %cst_17 : f32 to vector<1x16x128xf32>
    %cst_18 = arith.constant 1.000000e+00 : f32
    %61 = vector.broadcast %cst_18 : f32 to vector<1x16x128xf32>
    %c1_i32_19 = arith.constant 1 : i32
    %62 = vector.broadcast %c1_i32_19 : i32 to vector<1x1x128xi32>
    %63 = arith.cmpi sle, %1, %62 : vector<1x1x128xi32>
    %c1_i32_20 = arith.constant 1 : i32
    %64 = vector.broadcast %c1_i32_20 : i32 to vector<1x1x128xi32>
    %65 = arith.cmpi sle, %3, %64 : vector<1x1x128xi32>
    %66 = arith.ori %63, %65 : vector<1x1x128xi1>
    %cst_21 = arith.constant 1.000000e+00 : f32
    %cst_22 = arith.constant 0.000000e+00 : f32
    %67 = vector.broadcast %cst_21 : f32 to vector<1x1x128xf32>
    %68 = vector.broadcast %cst_22 : f32 to vector<1x1x128xf32>
    %69 = arith.select %66, %67, %68 : vector<1x1x128xi1>, vector<1x1x128xf32>
    %c0_i32 = arith.constant 0 : i32
    %70:4 = scf.while (%arg6 = %c0_i32, %arg7 = %60, %arg8 = %61, %arg9 = %69) : (i32, vector<1x16x128xf32>, vector<1x16x128xf32>, vector<1x1x128xf32>) -> (i32, vector<1x16x128xf32>, vector<1x16x128xf32>, vector<1x1x128xf32>) {
      %c100_i32 = arith.constant 100 : i32
      %347 = arith.cmpi slt, %arg6, %c100_i32 : i32
      %cst_91 = arith.constant 1.000000e+00 : f32
      %348 = vector.broadcast %cst_91 : f32 to vector<1x1x128xf32>
      %349 = arith.subf %348, %arg9 : vector<1x1x128xf32>
      %350 = vector.shape_cast %349 : vector<1x1x128xf32> to vector<1x1x1x128xf32>
      %cst_92 = arith.constant dense<0xFF800000> : vector<1xf32>
      %351 = vector.multi_reduction <maximumf>, %350, %cst_92 [1, 2, 3] : vector<1x1x1x128xf32> to vector<1xf32>
      %352 = vector.shape_cast %351 : vector<1xf32> to vector<1x1x1x1xf32>
      %353 = vector.extract %352[0, 0, 0, 0] : f32 from vector<1x1x1x1xf32>
      %cst_93 = arith.constant 0.000000e+00 : f32
      %354 = arith.cmpf ogt, %353, %cst_93 : f32
      %355 = arith.andi %347, %354 : i1
      scf.condition(%355) %arg6, %arg7, %arg8, %arg9 : i32, vector<1x16x128xf32>, vector<1x16x128xf32>, vector<1x1x128xf32>
    } do {
    ^bb0(%arg6: i32, %arg7: vector<1x16x128xf32>, %arg8: vector<1x16x128xf32>, %arg9: vector<1x1x128xf32>):
      %347 = vector.extract_strided_slice %19 {offsets = [0, 0, 0], sizes = [1, 16, 128], strides = [1, 1, 1]} : vector<16x16x128xf32> to vector<1x16x128xf32>
      %348 = vector.extract_strided_slice %arg7 {offsets = [0, 0, 0], sizes = [1, 1, 128], strides = [1, 1, 1]} : vector<1x16x128xf32> to vector<1x1x128xf32>
      %349 = vector.broadcast %348 : vector<1x1x128xf32> to vector<1x16x128xf32>
      %350 = arith.mulf %347, %349 : vector<1x16x128xf32>
      %351 = vector.extract_strided_slice %19 {offsets = [1, 0, 0], sizes = [1, 16, 128], strides = [1, 1, 1]} : vector<16x16x128xf32> to vector<1x16x128xf32>
      %352 = vector.extract_strided_slice %arg7 {offsets = [0, 1, 0], sizes = [1, 1, 128], strides = [1, 1, 1]} : vector<1x16x128xf32> to vector<1x1x128xf32>
      %353 = vector.broadcast %352 : vector<1x1x128xf32> to vector<1x16x128xf32>
      %354 = arith.mulf %351, %353 : vector<1x16x128xf32>
      %355 = vector.extract_strided_slice %19 {offsets = [2, 0, 0], sizes = [1, 16, 128], strides = [1, 1, 1]} : vector<16x16x128xf32> to vector<1x16x128xf32>
      %356 = vector.extract_strided_slice %arg7 {offsets = [0, 2, 0], sizes = [1, 1, 128], strides = [1, 1, 1]} : vector<1x16x128xf32> to vector<1x1x128xf32>
      %357 = vector.broadcast %356 : vector<1x1x128xf32> to vector<1x16x128xf32>
      %358 = arith.mulf %355, %357 : vector<1x16x128xf32>
      %359 = vector.extract_strided_slice %19 {offsets = [3, 0, 0], sizes = [1, 16, 128], strides = [1, 1, 1]} : vector<16x16x128xf32> to vector<1x16x128xf32>
      %360 = vector.extract_strided_slice %arg7 {offsets = [0, 3, 0], sizes = [1, 1, 128], strides = [1, 1, 1]} : vector<1x16x128xf32> to vector<1x1x128xf32>
      %361 = vector.broadcast %360 : vector<1x1x128xf32> to vector<1x16x128xf32>
      %362 = arith.mulf %359, %361 : vector<1x16x128xf32>
      %363 = vector.extract_strided_slice %19 {offsets = [4, 0, 0], sizes = [1, 16, 128], strides = [1, 1, 1]} : vector<16x16x128xf32> to vector<1x16x128xf32>
      %364 = vector.extract_strided_slice %arg7 {offsets = [0, 4, 0], sizes = [1, 1, 128], strides = [1, 1, 1]} : vector<1x16x128xf32> to vector<1x1x128xf32>
      %365 = vector.broadcast %364 : vector<1x1x128xf32> to vector<1x16x128xf32>
      %366 = arith.mulf %363, %365 : vector<1x16x128xf32>
      %367 = vector.extract_strided_slice %19 {offsets = [5, 0, 0], sizes = [1, 16, 128], strides = [1, 1, 1]} : vector<16x16x128xf32> to vector<1x16x128xf32>
      %368 = vector.extract_strided_slice %arg7 {offsets = [0, 5, 0], sizes = [1, 1, 128], strides = [1, 1, 1]} : vector<1x16x128xf32> to vector<1x1x128xf32>
      %369 = vector.broadcast %368 : vector<1x1x128xf32> to vector<1x16x128xf32>
      %370 = arith.mulf %367, %369 : vector<1x16x128xf32>
      %371 = vector.extract_strided_slice %19 {offsets = [6, 0, 0], sizes = [1, 16, 128], strides = [1, 1, 1]} : vector<16x16x128xf32> to vector<1x16x128xf32>
      %372 = vector.extract_strided_slice %arg7 {offsets = [0, 6, 0], sizes = [1, 1, 128], strides = [1, 1, 1]} : vector<1x16x128xf32> to vector<1x1x128xf32>
      %373 = vector.broadcast %372 : vector<1x1x128xf32> to vector<1x16x128xf32>
      %374 = arith.mulf %371, %373 : vector<1x16x128xf32>
      %375 = vector.extract_strided_slice %19 {offsets = [7, 0, 0], sizes = [1, 16, 128], strides = [1, 1, 1]} : vector<16x16x128xf32> to vector<1x16x128xf32>
      %376 = vector.extract_strided_slice %arg7 {offsets = [0, 7, 0], sizes = [1, 1, 128], strides = [1, 1, 1]} : vector<1x16x128xf32> to vector<1x1x128xf32>
      %377 = vector.broadcast %376 : vector<1x1x128xf32> to vector<1x16x128xf32>
      %378 = arith.mulf %375, %377 : vector<1x16x128xf32>
      %379 = vector.extract_strided_slice %19 {offsets = [8, 0, 0], sizes = [1, 16, 128], strides = [1, 1, 1]} : vector<16x16x128xf32> to vector<1x16x128xf32>
      %380 = vector.extract_strided_slice %arg7 {offsets = [0, 8, 0], sizes = [1, 1, 128], strides = [1, 1, 1]} : vector<1x16x128xf32> to vector<1x1x128xf32>
      %381 = vector.broadcast %380 : vector<1x1x128xf32> to vector<1x16x128xf32>
      %382 = arith.mulf %379, %381 : vector<1x16x128xf32>
      %383 = vector.extract_strided_slice %19 {offsets = [9, 0, 0], sizes = [1, 16, 128], strides = [1, 1, 1]} : vector<16x16x128xf32> to vector<1x16x128xf32>
      %384 = vector.extract_strided_slice %arg7 {offsets = [0, 9, 0], sizes = [1, 1, 128], strides = [1, 1, 1]} : vector<1x16x128xf32> to vector<1x1x128xf32>
      %385 = vector.broadcast %384 : vector<1x1x128xf32> to vector<1x16x128xf32>
      %386 = arith.mulf %383, %385 : vector<1x16x128xf32>
      %387 = vector.extract_strided_slice %19 {offsets = [10, 0, 0], sizes = [1, 16, 128], strides = [1, 1, 1]} : vector<16x16x128xf32> to vector<1x16x128xf32>
      %388 = vector.extract_strided_slice %arg7 {offsets = [0, 10, 0], sizes = [1, 1, 128], strides = [1, 1, 1]} : vector<1x16x128xf32> to vector<1x1x128xf32>
      %389 = vector.broadcast %388 : vector<1x1x128xf32> to vector<1x16x128xf32>
      %390 = arith.mulf %387, %389 : vector<1x16x128xf32>
      %391 = vector.extract_strided_slice %19 {offsets = [11, 0, 0], sizes = [1, 16, 128], strides = [1, 1, 1]} : vector<16x16x128xf32> to vector<1x16x128xf32>
      %392 = vector.extract_strided_slice %arg7 {offsets = [0, 11, 0], sizes = [1, 1, 128], strides = [1, 1, 1]} : vector<1x16x128xf32> to vector<1x1x128xf32>
      %393 = vector.broadcast %392 : vector<1x1x128xf32> to vector<1x16x128xf32>
      %394 = arith.mulf %391, %393 : vector<1x16x128xf32>
      %395 = vector.extract_strided_slice %19 {offsets = [12, 0, 0], sizes = [1, 16, 128], strides = [1, 1, 1]} : vector<16x16x128xf32> to vector<1x16x128xf32>
      %396 = vector.extract_strided_slice %arg7 {offsets = [0, 12, 0], sizes = [1, 1, 128], strides = [1, 1, 1]} : vector<1x16x128xf32> to vector<1x1x128xf32>
      %397 = vector.broadcast %396 : vector<1x1x128xf32> to vector<1x16x128xf32>
      %398 = arith.mulf %395, %397 : vector<1x16x128xf32>
      %399 = vector.extract_strided_slice %19 {offsets = [13, 0, 0], sizes = [1, 16, 128], strides = [1, 1, 1]} : vector<16x16x128xf32> to vector<1x16x128xf32>
      %400 = vector.extract_strided_slice %arg7 {offsets = [0, 13, 0], sizes = [1, 1, 128], strides = [1, 1, 1]} : vector<1x16x128xf32> to vector<1x1x128xf32>
      %401 = vector.broadcast %400 : vector<1x1x128xf32> to vector<1x16x128xf32>
      %402 = arith.mulf %399, %401 : vector<1x16x128xf32>
      %403 = vector.extract_strided_slice %19 {offsets = [14, 0, 0], sizes = [1, 16, 128], strides = [1, 1, 1]} : vector<16x16x128xf32> to vector<1x16x128xf32>
      %404 = vector.extract_strided_slice %arg7 {offsets = [0, 14, 0], sizes = [1, 1, 128], strides = [1, 1, 1]} : vector<1x16x128xf32> to vector<1x1x128xf32>
      %405 = vector.broadcast %404 : vector<1x1x128xf32> to vector<1x16x128xf32>
      %406 = arith.mulf %403, %405 : vector<1x16x128xf32>
      %407 = vector.extract_strided_slice %19 {offsets = [15, 0, 0], sizes = [1, 16, 128], strides = [1, 1, 1]} : vector<16x16x128xf32> to vector<1x16x128xf32>
      %408 = vector.extract_strided_slice %arg7 {offsets = [0, 15, 0], sizes = [1, 1, 128], strides = [1, 1, 1]} : vector<1x16x128xf32> to vector<1x1x128xf32>
      %409 = vector.broadcast %408 : vector<1x1x128xf32> to vector<1x16x128xf32>
      %410 = arith.mulf %407, %409 : vector<1x16x128xf32>
      %411 = arith.addf %350, %354 : vector<1x16x128xf32>
      %412 = arith.addf %358, %362 : vector<1x16x128xf32>
      %413 = arith.addf %366, %370 : vector<1x16x128xf32>
      %414 = arith.addf %374, %378 : vector<1x16x128xf32>
      %415 = arith.addf %382, %386 : vector<1x16x128xf32>
      %416 = arith.addf %390, %394 : vector<1x16x128xf32>
      %417 = arith.addf %398, %402 : vector<1x16x128xf32>
      %418 = arith.addf %406, %410 : vector<1x16x128xf32>
      %419 = arith.addf %411, %412 : vector<1x16x128xf32>
      %420 = arith.addf %413, %414 : vector<1x16x128xf32>
      %421 = arith.addf %415, %416 : vector<1x16x128xf32>
      %422 = arith.addf %417, %418 : vector<1x16x128xf32>
      %423 = arith.addf %419, %420 : vector<1x16x128xf32>
      %424 = arith.addf %421, %422 : vector<1x16x128xf32>
      %425 = arith.addf %423, %424 : vector<1x16x128xf32>
      %426 = tpu.reciprocal %425 {approx = true} : vector<1x16x128xf32> -> vector<1x16x128xf32>
      %427 = arith.mulf %59, %426 : vector<1x16x128xf32>
      %cst_91 = arith.constant 1.000000e+00 : f32
      %428 = vector.broadcast %cst_91 : f32 to vector<1x16x128xf32>
      %429 = arith.select %39, %427, %428 : vector<1x16x128xi1>, vector<1x16x128xf32>
      %430 = vector.extract_strided_slice %33 {offsets = [0, 0, 0], sizes = [1, 16, 128], strides = [1, 1, 1]} : vector<16x16x128xf32> to vector<1x16x128xf32>
      %431 = vector.extract_strided_slice %429 {offsets = [0, 0, 0], sizes = [1, 1, 128], strides = [1, 1, 1]} : vector<1x16x128xf32> to vector<1x1x128xf32>
      %432 = vector.broadcast %431 : vector<1x1x128xf32> to vector<1x16x128xf32>
      %433 = arith.mulf %430, %432 : vector<1x16x128xf32>
      %434 = vector.extract_strided_slice %33 {offsets = [1, 0, 0], sizes = [1, 16, 128], strides = [1, 1, 1]} : vector<16x16x128xf32> to vector<1x16x128xf32>
      %435 = vector.extract_strided_slice %429 {offsets = [0, 1, 0], sizes = [1, 1, 128], strides = [1, 1, 1]} : vector<1x16x128xf32> to vector<1x1x128xf32>
      %436 = vector.broadcast %435 : vector<1x1x128xf32> to vector<1x16x128xf32>
      %437 = arith.mulf %434, %436 : vector<1x16x128xf32>
      %438 = vector.extract_strided_slice %33 {offsets = [2, 0, 0], sizes = [1, 16, 128], strides = [1, 1, 1]} : vector<16x16x128xf32> to vector<1x16x128xf32>
      %439 = vector.extract_strided_slice %429 {offsets = [0, 2, 0], sizes = [1, 1, 128], strides = [1, 1, 1]} : vector<1x16x128xf32> to vector<1x1x128xf32>
      %440 = vector.broadcast %439 : vector<1x1x128xf32> to vector<1x16x128xf32>
      %441 = arith.mulf %438, %440 : vector<1x16x128xf32>
      %442 = vector.extract_strided_slice %33 {offsets = [3, 0, 0], sizes = [1, 16, 128], strides = [1, 1, 1]} : vector<16x16x128xf32> to vector<1x16x128xf32>
      %443 = vector.extract_strided_slice %429 {offsets = [0, 3, 0], sizes = [1, 1, 128], strides = [1, 1, 1]} : vector<1x16x128xf32> to vector<1x1x128xf32>
      %444 = vector.broadcast %443 : vector<1x1x128xf32> to vector<1x16x128xf32>
      %445 = arith.mulf %442, %444 : vector<1x16x128xf32>
      %446 = vector.extract_strided_slice %33 {offsets = [4, 0, 0], sizes = [1, 16, 128], strides = [1, 1, 1]} : vector<16x16x128xf32> to vector<1x16x128xf32>
      %447 = vector.extract_strided_slice %429 {offsets = [0, 4, 0], sizes = [1, 1, 128], strides = [1, 1, 1]} : vector<1x16x128xf32> to vector<1x1x128xf32>
      %448 = vector.broadcast %447 : vector<1x1x128xf32> to vector<1x16x128xf32>
      %449 = arith.mulf %446, %448 : vector<1x16x128xf32>
      %450 = vector.extract_strided_slice %33 {offsets = [5, 0, 0], sizes = [1, 16, 128], strides = [1, 1, 1]} : vector<16x16x128xf32> to vector<1x16x128xf32>
      %451 = vector.extract_strided_slice %429 {offsets = [0, 5, 0], sizes = [1, 1, 128], strides = [1, 1, 1]} : vector<1x16x128xf32> to vector<1x1x128xf32>
      %452 = vector.broadcast %451 : vector<1x1x128xf32> to vector<1x16x128xf32>
      %453 = arith.mulf %450, %452 : vector<1x16x128xf32>
      %454 = vector.extract_strided_slice %33 {offsets = [6, 0, 0], sizes = [1, 16, 128], strides = [1, 1, 1]} : vector<16x16x128xf32> to vector<1x16x128xf32>
      %455 = vector.extract_strided_slice %429 {offsets = [0, 6, 0], sizes = [1, 1, 128], strides = [1, 1, 1]} : vector<1x16x128xf32> to vector<1x1x128xf32>
      %456 = vector.broadcast %455 : vector<1x1x128xf32> to vector<1x16x128xf32>
      %457 = arith.mulf %454, %456 : vector<1x16x128xf32>
      %458 = vector.extract_strided_slice %33 {offsets = [7, 0, 0], sizes = [1, 16, 128], strides = [1, 1, 1]} : vector<16x16x128xf32> to vector<1x16x128xf32>
      %459 = vector.extract_strided_slice %429 {offsets = [0, 7, 0], sizes = [1, 1, 128], strides = [1, 1, 1]} : vector<1x16x128xf32> to vector<1x1x128xf32>
      %460 = vector.broadcast %459 : vector<1x1x128xf32> to vector<1x16x128xf32>
      %461 = arith.mulf %458, %460 : vector<1x16x128xf32>
      %462 = vector.extract_strided_slice %33 {offsets = [8, 0, 0], sizes = [1, 16, 128], strides = [1, 1, 1]} : vector<16x16x128xf32> to vector<1x16x128xf32>
      %463 = vector.extract_strided_slice %429 {offsets = [0, 8, 0], sizes = [1, 1, 128], strides = [1, 1, 1]} : vector<1x16x128xf32> to vector<1x1x128xf32>
      %464 = vector.broadcast %463 : vector<1x1x128xf32> to vector<1x16x128xf32>
      %465 = arith.mulf %462, %464 : vector<1x16x128xf32>
      %466 = vector.extract_strided_slice %33 {offsets = [9, 0, 0], sizes = [1, 16, 128], strides = [1, 1, 1]} : vector<16x16x128xf32> to vector<1x16x128xf32>
      %467 = vector.extract_strided_slice %429 {offsets = [0, 9, 0], sizes = [1, 1, 128], strides = [1, 1, 1]} : vector<1x16x128xf32> to vector<1x1x128xf32>
      %468 = vector.broadcast %467 : vector<1x1x128xf32> to vector<1x16x128xf32>
      %469 = arith.mulf %466, %468 : vector<1x16x128xf32>
      %470 = vector.extract_strided_slice %33 {offsets = [10, 0, 0], sizes = [1, 16, 128], strides = [1, 1, 1]} : vector<16x16x128xf32> to vector<1x16x128xf32>
      %471 = vector.extract_strided_slice %429 {offsets = [0, 10, 0], sizes = [1, 1, 128], strides = [1, 1, 1]} : vector<1x16x128xf32> to vector<1x1x128xf32>
      %472 = vector.broadcast %471 : vector<1x1x128xf32> to vector<1x16x128xf32>
      %473 = arith.mulf %470, %472 : vector<1x16x128xf32>
      %474 = vector.extract_strided_slice %33 {offsets = [11, 0, 0], sizes = [1, 16, 128], strides = [1, 1, 1]} : vector<16x16x128xf32> to vector<1x16x128xf32>
      %475 = vector.extract_strided_slice %429 {offsets = [0, 11, 0], sizes = [1, 1, 128], strides = [1, 1, 1]} : vector<1x16x128xf32> to vector<1x1x128xf32>
      %476 = vector.broadcast %475 : vector<1x1x128xf32> to vector<1x16x128xf32>
      %477 = arith.mulf %474, %476 : vector<1x16x128xf32>
      %478 = vector.extract_strided_slice %33 {offsets = [12, 0, 0], sizes = [1, 16, 128], strides = [1, 1, 1]} : vector<16x16x128xf32> to vector<1x16x128xf32>
      %479 = vector.extract_strided_slice %429 {offsets = [0, 12, 0], sizes = [1, 1, 128], strides = [1, 1, 1]} : vector<1x16x128xf32> to vector<1x1x128xf32>
      %480 = vector.broadcast %479 : vector<1x1x128xf32> to vector<1x16x128xf32>
      %481 = arith.mulf %478, %480 : vector<1x16x128xf32>
      %482 = vector.extract_strided_slice %33 {offsets = [13, 0, 0], sizes = [1, 16, 128], strides = [1, 1, 1]} : vector<16x16x128xf32> to vector<1x16x128xf32>
      %483 = vector.extract_strided_slice %429 {offsets = [0, 13, 0], sizes = [1, 1, 128], strides = [1, 1, 1]} : vector<1x16x128xf32> to vector<1x1x128xf32>
      %484 = vector.broadcast %483 : vector<1x1x128xf32> to vector<1x16x128xf32>
      %485 = arith.mulf %482, %484 : vector<1x16x128xf32>
      %486 = vector.extract_strided_slice %33 {offsets = [14, 0, 0], sizes = [1, 16, 128], strides = [1, 1, 1]} : vector<16x16x128xf32> to vector<1x16x128xf32>
      %487 = vector.extract_strided_slice %429 {offsets = [0, 14, 0], sizes = [1, 1, 128], strides = [1, 1, 1]} : vector<1x16x128xf32> to vector<1x1x128xf32>
      %488 = vector.broadcast %487 : vector<1x1x128xf32> to vector<1x16x128xf32>
      %489 = arith.mulf %486, %488 : vector<1x16x128xf32>
      %490 = vector.extract_strided_slice %33 {offsets = [15, 0, 0], sizes = [1, 16, 128], strides = [1, 1, 1]} : vector<16x16x128xf32> to vector<1x16x128xf32>
      %491 = vector.extract_strided_slice %429 {offsets = [0, 15, 0], sizes = [1, 1, 128], strides = [1, 1, 1]} : vector<1x16x128xf32> to vector<1x1x128xf32>
      %492 = vector.broadcast %491 : vector<1x1x128xf32> to vector<1x16x128xf32>
      %493 = arith.mulf %490, %492 : vector<1x16x128xf32>
      %494 = arith.addf %433, %437 : vector<1x16x128xf32>
      %495 = arith.addf %441, %445 : vector<1x16x128xf32>
      %496 = arith.addf %449, %453 : vector<1x16x128xf32>
      %497 = arith.addf %457, %461 : vector<1x16x128xf32>
      %498 = arith.addf %465, %469 : vector<1x16x128xf32>
      %499 = arith.addf %473, %477 : vector<1x16x128xf32>
      %500 = arith.addf %481, %485 : vector<1x16x128xf32>
      %501 = arith.addf %489, %493 : vector<1x16x128xf32>
      %502 = arith.addf %494, %495 : vector<1x16x128xf32>
      %503 = arith.addf %496, %497 : vector<1x16x128xf32>
      %504 = arith.addf %498, %499 : vector<1x16x128xf32>
      %505 = arith.addf %500, %501 : vector<1x16x128xf32>
      %506 = arith.addf %502, %503 : vector<1x16x128xf32>
      %507 = arith.addf %504, %505 : vector<1x16x128xf32>
      %508 = arith.addf %506, %507 : vector<1x16x128xf32>
      %509 = tpu.reciprocal %508 {approx = true} : vector<1x16x128xf32> -> vector<1x16x128xf32>
      %510 = arith.mulf %49, %509 : vector<1x16x128xf32>
      %cst_92 = arith.constant 1.000000e+00 : f32
      %511 = vector.broadcast %cst_92 : f32 to vector<1x16x128xf32>
      %512 = arith.select %37, %510, %511 : vector<1x16x128xi1>, vector<1x16x128xf32>
      %513 = arith.subf %arg7, %512 : vector<1x16x128xf32>
      %514 = math.absf %513 : vector<1x16x128xf32>
      %cst_93 = arith.constant dense<0.000000e+00> : vector<1x128xf32>
      %515 = vector.multi_reduction <add>, %514, %cst_93 [1] : vector<1x16x128xf32> to vector<1x128xf32>
      %516 = vector.shape_cast %515 : vector<1x128xf32> to vector<1x1x128xf32>
      %517 = arith.subf %arg8, %429 : vector<1x16x128xf32>
      %518 = math.absf %517 : vector<1x16x128xf32>
      %cst_94 = arith.constant dense<0.000000e+00> : vector<1x128xf32>
      %519 = vector.multi_reduction <add>, %518, %cst_94 [1] : vector<1x16x128xf32> to vector<1x128xf32>
      %520 = vector.shape_cast %519 : vector<1x128xf32> to vector<1x1x128xf32>
      %521 = arith.mulf %516, %516 : vector<1x1x128xf32>
      %522 = arith.mulf %520, %520 : vector<1x1x128xf32>
      %523 = arith.addf %521, %522 : vector<1x1x128xf32>
      %cst_95 = arith.constant 5.000000e-01 : f32
      %524 = vector.broadcast %cst_95 : f32 to vector<1x1x128xf32>
      %525 = arith.cmpf ogt, %arg9, %524 : vector<1x1x128xf32>
      %526 = vector.shape_cast %525 : vector<1x1x128xi1> to vector<1x1x128xi1>
      %527 = vector.broadcast %526 : vector<1x1x128xi1> to vector<1x16x128xi1>
      %528 = arith.select %527, %arg7, %512 : vector<1x16x128xi1>, vector<1x16x128xf32>
      %529 = vector.shape_cast %525 : vector<1x1x128xi1> to vector<1x1x128xi1>
      %530 = vector.broadcast %529 : vector<1x1x128xi1> to vector<1x16x128xi1>
      %531 = arith.select %530, %arg8, %429 : vector<1x16x128xi1>, vector<1x16x128xf32>
      %cst_96 = arith.constant 1.000000e-03 : f32
      %532 = vector.broadcast %cst_96 : f32 to vector<1x1x128xf32>
      %533 = arith.cmpf ole, %523, %532 : vector<1x1x128xf32>
      %cst_97 = arith.constant 1.000000e+00 : f32
      %cst_98 = arith.constant 0.000000e+00 : f32
      %534 = vector.broadcast %cst_97 : f32 to vector<1x1x128xf32>
      %535 = vector.broadcast %cst_98 : f32 to vector<1x1x128xf32>
      %536 = arith.select %533, %534, %535 : vector<1x1x128xi1>, vector<1x1x128xf32>
      %537 = arith.maximumf %arg9, %536 : vector<1x1x128xf32>
      %538 = vector.extract_strided_slice %19 {offsets = [0, 0, 0], sizes = [1, 16, 128], strides = [1, 1, 1]} : vector<16x16x128xf32> to vector<1x16x128xf32>
      %539 = vector.extract_strided_slice %528 {offsets = [0, 0, 0], sizes = [1, 1, 128], strides = [1, 1, 1]} : vector<1x16x128xf32> to vector<1x1x128xf32>
      %540 = vector.broadcast %539 : vector<1x1x128xf32> to vector<1x16x128xf32>
      %541 = arith.mulf %538, %540 : vector<1x16x128xf32>
      %542 = vector.extract_strided_slice %19 {offsets = [1, 0, 0], sizes = [1, 16, 128], strides = [1, 1, 1]} : vector<16x16x128xf32> to vector<1x16x128xf32>
      %543 = vector.extract_strided_slice %528 {offsets = [0, 1, 0], sizes = [1, 1, 128], strides = [1, 1, 1]} : vector<1x16x128xf32> to vector<1x1x128xf32>
      %544 = vector.broadcast %543 : vector<1x1x128xf32> to vector<1x16x128xf32>
      %545 = arith.mulf %542, %544 : vector<1x16x128xf32>
      %546 = vector.extract_strided_slice %19 {offsets = [2, 0, 0], sizes = [1, 16, 128], strides = [1, 1, 1]} : vector<16x16x128xf32> to vector<1x16x128xf32>
      %547 = vector.extract_strided_slice %528 {offsets = [0, 2, 0], sizes = [1, 1, 128], strides = [1, 1, 1]} : vector<1x16x128xf32> to vector<1x1x128xf32>
      %548 = vector.broadcast %547 : vector<1x1x128xf32> to vector<1x16x128xf32>
      %549 = arith.mulf %546, %548 : vector<1x16x128xf32>
      %550 = vector.extract_strided_slice %19 {offsets = [3, 0, 0], sizes = [1, 16, 128], strides = [1, 1, 1]} : vector<16x16x128xf32> to vector<1x16x128xf32>
      %551 = vector.extract_strided_slice %528 {offsets = [0, 3, 0], sizes = [1, 1, 128], strides = [1, 1, 1]} : vector<1x16x128xf32> to vector<1x1x128xf32>
      %552 = vector.broadcast %551 : vector<1x1x128xf32> to vector<1x16x128xf32>
      %553 = arith.mulf %550, %552 : vector<1x16x128xf32>
      %554 = vector.extract_strided_slice %19 {offsets = [4, 0, 0], sizes = [1, 16, 128], strides = [1, 1, 1]} : vector<16x16x128xf32> to vector<1x16x128xf32>
      %555 = vector.extract_strided_slice %528 {offsets = [0, 4, 0], sizes = [1, 1, 128], strides = [1, 1, 1]} : vector<1x16x128xf32> to vector<1x1x128xf32>
      %556 = vector.broadcast %555 : vector<1x1x128xf32> to vector<1x16x128xf32>
      %557 = arith.mulf %554, %556 : vector<1x16x128xf32>
      %558 = vector.extract_strided_slice %19 {offsets = [5, 0, 0], sizes = [1, 16, 128], strides = [1, 1, 1]} : vector<16x16x128xf32> to vector<1x16x128xf32>
      %559 = vector.extract_strided_slice %528 {offsets = [0, 5, 0], sizes = [1, 1, 128], strides = [1, 1, 1]} : vector<1x16x128xf32> to vector<1x1x128xf32>
      %560 = vector.broadcast %559 : vector<1x1x128xf32> to vector<1x16x128xf32>
      %561 = arith.mulf %558, %560 : vector<1x16x128xf32>
      %562 = vector.extract_strided_slice %19 {offsets = [6, 0, 0], sizes = [1, 16, 128], strides = [1, 1, 1]} : vector<16x16x128xf32> to vector<1x16x128xf32>
      %563 = vector.extract_strided_slice %528 {offsets = [0, 6, 0], sizes = [1, 1, 128], strides = [1, 1, 1]} : vector<1x16x128xf32> to vector<1x1x128xf32>
      %564 = vector.broadcast %563 : vector<1x1x128xf32> to vector<1x16x128xf32>
      %565 = arith.mulf %562, %564 : vector<1x16x128xf32>
      %566 = vector.extract_strided_slice %19 {offsets = [7, 0, 0], sizes = [1, 16, 128], strides = [1, 1, 1]} : vector<16x16x128xf32> to vector<1x16x128xf32>
      %567 = vector.extract_strided_slice %528 {offsets = [0, 7, 0], sizes = [1, 1, 128], strides = [1, 1, 1]} : vector<1x16x128xf32> to vector<1x1x128xf32>
      %568 = vector.broadcast %567 : vector<1x1x128xf32> to vector<1x16x128xf32>
      %569 = arith.mulf %566, %568 : vector<1x16x128xf32>
      %570 = vector.extract_strided_slice %19 {offsets = [8, 0, 0], sizes = [1, 16, 128], strides = [1, 1, 1]} : vector<16x16x128xf32> to vector<1x16x128xf32>
      %571 = vector.extract_strided_slice %528 {offsets = [0, 8, 0], sizes = [1, 1, 128], strides = [1, 1, 1]} : vector<1x16x128xf32> to vector<1x1x128xf32>
      %572 = vector.broadcast %571 : vector<1x1x128xf32> to vector<1x16x128xf32>
      %573 = arith.mulf %570, %572 : vector<1x16x128xf32>
      %574 = vector.extract_strided_slice %19 {offsets = [9, 0, 0], sizes = [1, 16, 128], strides = [1, 1, 1]} : vector<16x16x128xf32> to vector<1x16x128xf32>
      %575 = vector.extract_strided_slice %528 {offsets = [0, 9, 0], sizes = [1, 1, 128], strides = [1, 1, 1]} : vector<1x16x128xf32> to vector<1x1x128xf32>
      %576 = vector.broadcast %575 : vector<1x1x128xf32> to vector<1x16x128xf32>
      %577 = arith.mulf %574, %576 : vector<1x16x128xf32>
      %578 = vector.extract_strided_slice %19 {offsets = [10, 0, 0], sizes = [1, 16, 128], strides = [1, 1, 1]} : vector<16x16x128xf32> to vector<1x16x128xf32>
      %579 = vector.extract_strided_slice %528 {offsets = [0, 10, 0], sizes = [1, 1, 128], strides = [1, 1, 1]} : vector<1x16x128xf32> to vector<1x1x128xf32>
      %580 = vector.broadcast %579 : vector<1x1x128xf32> to vector<1x16x128xf32>
      %581 = arith.mulf %578, %580 : vector<1x16x128xf32>
      %582 = vector.extract_strided_slice %19 {offsets = [11, 0, 0], sizes = [1, 16, 128], strides = [1, 1, 1]} : vector<16x16x128xf32> to vector<1x16x128xf32>
      %583 = vector.extract_strided_slice %528 {offsets = [0, 11, 0], sizes = [1, 1, 128], strides = [1, 1, 1]} : vector<1x16x128xf32> to vector<1x1x128xf32>
      %584 = vector.broadcast %583 : vector<1x1x128xf32> to vector<1x16x128xf32>
      %585 = arith.mulf %582, %584 : vector<1x16x128xf32>
      %586 = vector.extract_strided_slice %19 {offsets = [12, 0, 0], sizes = [1, 16, 128], strides = [1, 1, 1]} : vector<16x16x128xf32> to vector<1x16x128xf32>
      %587 = vector.extract_strided_slice %528 {offsets = [0, 12, 0], sizes = [1, 1, 128], strides = [1, 1, 1]} : vector<1x16x128xf32> to vector<1x1x128xf32>
      %588 = vector.broadcast %587 : vector<1x1x128xf32> to vector<1x16x128xf32>
      %589 = arith.mulf %586, %588 : vector<1x16x128xf32>
      %590 = vector.extract_strided_slice %19 {offsets = [13, 0, 0], sizes = [1, 16, 128], strides = [1, 1, 1]} : vector<16x16x128xf32> to vector<1x16x128xf32>
      %591 = vector.extract_strided_slice %528 {offsets = [0, 13, 0], sizes = [1, 1, 128], strides = [1, 1, 1]} : vector<1x16x128xf32> to vector<1x1x128xf32>
      %592 = vector.broadcast %591 : vector<1x1x128xf32> to vector<1x16x128xf32>
      %593 = arith.mulf %590, %592 : vector<1x16x128xf32>
      %594 = vector.extract_strided_slice %19 {offsets = [14, 0, 0], sizes = [1, 16, 128], strides = [1, 1, 1]} : vector<16x16x128xf32> to vector<1x16x128xf32>
      %595 = vector.extract_strided_slice %528 {offsets = [0, 14, 0], sizes = [1, 1, 128], strides = [1, 1, 1]} : vector<1x16x128xf32> to vector<1x1x128xf32>
      %596 = vector.broadcast %595 : vector<1x1x128xf32> to vector<1x16x128xf32>
      %597 = arith.mulf %594, %596 : vector<1x16x128xf32>
      %598 = vector.extract_strided_slice %19 {offsets = [15, 0, 0], sizes = [1, 16, 128], strides = [1, 1, 1]} : vector<16x16x128xf32> to vector<1x16x128xf32>
      %599 = vector.extract_strided_slice %528 {offsets = [0, 15, 0], sizes = [1, 1, 128], strides = [1, 1, 1]} : vector<1x16x128xf32> to vector<1x1x128xf32>
      %600 = vector.broadcast %599 : vector<1x1x128xf32> to vector<1x16x128xf32>
      %601 = arith.mulf %598, %600 : vector<1x16x128xf32>
      %602 = arith.addf %541, %545 : vector<1x16x128xf32>
      %603 = arith.addf %549, %553 : vector<1x16x128xf32>
      %604 = arith.addf %557, %561 : vector<1x16x128xf32>
      %605 = arith.addf %565, %569 : vector<1x16x128xf32>
      %606 = arith.addf %573, %577 : vector<1x16x128xf32>
      %607 = arith.addf %581, %585 : vector<1x16x128xf32>
      %608 = arith.addf %589, %593 : vector<1x16x128xf32>
      %609 = arith.addf %597, %601 : vector<1x16x128xf32>
      %610 = arith.addf %602, %603 : vector<1x16x128xf32>
      %611 = arith.addf %604, %605 : vector<1x16x128xf32>
      %612 = arith.addf %606, %607 : vector<1x16x128xf32>
      %613 = arith.addf %608, %609 : vector<1x16x128xf32>
      %614 = arith.addf %610, %611 : vector<1x16x128xf32>
      %615 = arith.addf %612, %613 : vector<1x16x128xf32>
      %616 = arith.addf %614, %615 : vector<1x16x128xf32>
      %617 = tpu.reciprocal %616 {approx = true} : vector<1x16x128xf32> -> vector<1x16x128xf32>
      %618 = arith.mulf %59, %617 : vector<1x16x128xf32>
      %cst_99 = arith.constant 1.000000e+00 : f32
      %619 = vector.broadcast %cst_99 : f32 to vector<1x16x128xf32>
      %620 = arith.select %39, %618, %619 : vector<1x16x128xi1>, vector<1x16x128xf32>
      %621 = vector.extract_strided_slice %33 {offsets = [0, 0, 0], sizes = [1, 16, 128], strides = [1, 1, 1]} : vector<16x16x128xf32> to vector<1x16x128xf32>
      %622 = vector.extract_strided_slice %620 {offsets = [0, 0, 0], sizes = [1, 1, 128], strides = [1, 1, 1]} : vector<1x16x128xf32> to vector<1x1x128xf32>
      %623 = vector.broadcast %622 : vector<1x1x128xf32> to vector<1x16x128xf32>
      %624 = arith.mulf %621, %623 : vector<1x16x128xf32>
      %625 = vector.extract_strided_slice %33 {offsets = [1, 0, 0], sizes = [1, 16, 128], strides = [1, 1, 1]} : vector<16x16x128xf32> to vector<1x16x128xf32>
      %626 = vector.extract_strided_slice %620 {offsets = [0, 1, 0], sizes = [1, 1, 128], strides = [1, 1, 1]} : vector<1x16x128xf32> to vector<1x1x128xf32>
      %627 = vector.broadcast %626 : vector<1x1x128xf32> to vector<1x16x128xf32>
      %628 = arith.mulf %625, %627 : vector<1x16x128xf32>
      %629 = vector.extract_strided_slice %33 {offsets = [2, 0, 0], sizes = [1, 16, 128], strides = [1, 1, 1]} : vector<16x16x128xf32> to vector<1x16x128xf32>
      %630 = vector.extract_strided_slice %620 {offsets = [0, 2, 0], sizes = [1, 1, 128], strides = [1, 1, 1]} : vector<1x16x128xf32> to vector<1x1x128xf32>
      %631 = vector.broadcast %630 : vector<1x1x128xf32> to vector<1x16x128xf32>
      %632 = arith.mulf %629, %631 : vector<1x16x128xf32>
      %633 = vector.extract_strided_slice %33 {offsets = [3, 0, 0], sizes = [1, 16, 128], strides = [1, 1, 1]} : vector<16x16x128xf32> to vector<1x16x128xf32>
      %634 = vector.extract_strided_slice %620 {offsets = [0, 3, 0], sizes = [1, 1, 128], strides = [1, 1, 1]} : vector<1x16x128xf32> to vector<1x1x128xf32>
      %635 = vector.broadcast %634 : vector<1x1x128xf32> to vector<1x16x128xf32>
      %636 = arith.mulf %633, %635 : vector<1x16x128xf32>
      %637 = vector.extract_strided_slice %33 {offsets = [4, 0, 0], sizes = [1, 16, 128], strides = [1, 1, 1]} : vector<16x16x128xf32> to vector<1x16x128xf32>
      %638 = vector.extract_strided_slice %620 {offsets = [0, 4, 0], sizes = [1, 1, 128], strides = [1, 1, 1]} : vector<1x16x128xf32> to vector<1x1x128xf32>
      %639 = vector.broadcast %638 : vector<1x1x128xf32> to vector<1x16x128xf32>
      %640 = arith.mulf %637, %639 : vector<1x16x128xf32>
      %641 = vector.extract_strided_slice %33 {offsets = [5, 0, 0], sizes = [1, 16, 128], strides = [1, 1, 1]} : vector<16x16x128xf32> to vector<1x16x128xf32>
      %642 = vector.extract_strided_slice %620 {offsets = [0, 5, 0], sizes = [1, 1, 128], strides = [1, 1, 1]} : vector<1x16x128xf32> to vector<1x1x128xf32>
      %643 = vector.broadcast %642 : vector<1x1x128xf32> to vector<1x16x128xf32>
      %644 = arith.mulf %641, %643 : vector<1x16x128xf32>
      %645 = vector.extract_strided_slice %33 {offsets = [6, 0, 0], sizes = [1, 16, 128], strides = [1, 1, 1]} : vector<16x16x128xf32> to vector<1x16x128xf32>
      %646 = vector.extract_strided_slice %620 {offsets = [0, 6, 0], sizes = [1, 1, 128], strides = [1, 1, 1]} : vector<1x16x128xf32> to vector<1x1x128xf32>
      %647 = vector.broadcast %646 : vector<1x1x128xf32> to vector<1x16x128xf32>
      %648 = arith.mulf %645, %647 : vector<1x16x128xf32>
      %649 = vector.extract_strided_slice %33 {offsets = [7, 0, 0], sizes = [1, 16, 128], strides = [1, 1, 1]} : vector<16x16x128xf32> to vector<1x16x128xf32>
      %650 = vector.extract_strided_slice %620 {offsets = [0, 7, 0], sizes = [1, 1, 128], strides = [1, 1, 1]} : vector<1x16x128xf32> to vector<1x1x128xf32>
      %651 = vector.broadcast %650 : vector<1x1x128xf32> to vector<1x16x128xf32>
      %652 = arith.mulf %649, %651 : vector<1x16x128xf32>
      %653 = vector.extract_strided_slice %33 {offsets = [8, 0, 0], sizes = [1, 16, 128], strides = [1, 1, 1]} : vector<16x16x128xf32> to vector<1x16x128xf32>
      %654 = vector.extract_strided_slice %620 {offsets = [0, 8, 0], sizes = [1, 1, 128], strides = [1, 1, 1]} : vector<1x16x128xf32> to vector<1x1x128xf32>
      %655 = vector.broadcast %654 : vector<1x1x128xf32> to vector<1x16x128xf32>
      %656 = arith.mulf %653, %655 : vector<1x16x128xf32>
      %657 = vector.extract_strided_slice %33 {offsets = [9, 0, 0], sizes = [1, 16, 128], strides = [1, 1, 1]} : vector<16x16x128xf32> to vector<1x16x128xf32>
      %658 = vector.extract_strided_slice %620 {offsets = [0, 9, 0], sizes = [1, 1, 128], strides = [1, 1, 1]} : vector<1x16x128xf32> to vector<1x1x128xf32>
      %659 = vector.broadcast %658 : vector<1x1x128xf32> to vector<1x16x128xf32>
      %660 = arith.mulf %657, %659 : vector<1x16x128xf32>
      %661 = vector.extract_strided_slice %33 {offsets = [10, 0, 0], sizes = [1, 16, 128], strides = [1, 1, 1]} : vector<16x16x128xf32> to vector<1x16x128xf32>
      %662 = vector.extract_strided_slice %620 {offsets = [0, 10, 0], sizes = [1, 1, 128], strides = [1, 1, 1]} : vector<1x16x128xf32> to vector<1x1x128xf32>
      %663 = vector.broadcast %662 : vector<1x1x128xf32> to vector<1x16x128xf32>
      %664 = arith.mulf %661, %663 : vector<1x16x128xf32>
      %665 = vector.extract_strided_slice %33 {offsets = [11, 0, 0], sizes = [1, 16, 128], strides = [1, 1, 1]} : vector<16x16x128xf32> to vector<1x16x128xf32>
      %666 = vector.extract_strided_slice %620 {offsets = [0, 11, 0], sizes = [1, 1, 128], strides = [1, 1, 1]} : vector<1x16x128xf32> to vector<1x1x128xf32>
      %667 = vector.broadcast %666 : vector<1x1x128xf32> to vector<1x16x128xf32>
      %668 = arith.mulf %665, %667 : vector<1x16x128xf32>
      %669 = vector.extract_strided_slice %33 {offsets = [12, 0, 0], sizes = [1, 16, 128], strides = [1, 1, 1]} : vector<16x16x128xf32> to vector<1x16x128xf32>
      %670 = vector.extract_strided_slice %620 {offsets = [0, 12, 0], sizes = [1, 1, 128], strides = [1, 1, 1]} : vector<1x16x128xf32> to vector<1x1x128xf32>
      %671 = vector.broadcast %670 : vector<1x1x128xf32> to vector<1x16x128xf32>
      %672 = arith.mulf %669, %671 : vector<1x16x128xf32>
      %673 = vector.extract_strided_slice %33 {offsets = [13, 0, 0], sizes = [1, 16, 128], strides = [1, 1, 1]} : vector<16x16x128xf32> to vector<1x16x128xf32>
      %674 = vector.extract_strided_slice %620 {offsets = [0, 13, 0], sizes = [1, 1, 128], strides = [1, 1, 1]} : vector<1x16x128xf32> to vector<1x1x128xf32>
      %675 = vector.broadcast %674 : vector<1x1x128xf32> to vector<1x16x128xf32>
      %676 = arith.mulf %673, %675 : vector<1x16x128xf32>
      %677 = vector.extract_strided_slice %33 {offsets = [14, 0, 0], sizes = [1, 16, 128], strides = [1, 1, 1]} : vector<16x16x128xf32> to vector<1x16x128xf32>
      %678 = vector.extract_strided_slice %620 {offsets = [0, 14, 0], sizes = [1, 1, 128], strides = [1, 1, 1]} : vector<1x16x128xf32> to vector<1x1x128xf32>
      %679 = vector.broadcast %678 : vector<1x1x128xf32> to vector<1x16x128xf32>
      %680 = arith.mulf %677, %679 : vector<1x16x128xf32>
      %681 = vector.extract_strided_slice %33 {offsets = [15, 0, 0], sizes = [1, 16, 128], strides = [1, 1, 1]} : vector<16x16x128xf32> to vector<1x16x128xf32>
      %682 = vector.extract_strided_slice %620 {offsets = [0, 15, 0], sizes = [1, 1, 128], strides = [1, 1, 1]} : vector<1x16x128xf32> to vector<1x1x128xf32>
      %683 = vector.broadcast %682 : vector<1x1x128xf32> to vector<1x16x128xf32>
      %684 = arith.mulf %681, %683 : vector<1x16x128xf32>
      %685 = arith.addf %624, %628 : vector<1x16x128xf32>
      %686 = arith.addf %632, %636 : vector<1x16x128xf32>
      %687 = arith.addf %640, %644 : vector<1x16x128xf32>
      %688 = arith.addf %648, %652 : vector<1x16x128xf32>
      %689 = arith.addf %656, %660 : vector<1x16x128xf32>
      %690 = arith.addf %664, %668 : vector<1x16x128xf32>
      %691 = arith.addf %672, %676 : vector<1x16x128xf32>
      %692 = arith.addf %680, %684 : vector<1x16x128xf32>
      %693 = arith.addf %685, %686 : vector<1x16x128xf32>
      %694 = arith.addf %687, %688 : vector<1x16x128xf32>
      %695 = arith.addf %689, %690 : vector<1x16x128xf32>
      %696 = arith.addf %691, %692 : vector<1x16x128xf32>
      %697 = arith.addf %693, %694 : vector<1x16x128xf32>
      %698 = arith.addf %695, %696 : vector<1x16x128xf32>
      %699 = arith.addf %697, %698 : vector<1x16x128xf32>
      %700 = tpu.reciprocal %699 {approx = true} : vector<1x16x128xf32> -> vector<1x16x128xf32>
      %701 = arith.mulf %49, %700 : vector<1x16x128xf32>
      %cst_100 = arith.constant 1.000000e+00 : f32
      %702 = vector.broadcast %cst_100 : f32 to vector<1x16x128xf32>
      %703 = arith.select %37, %701, %702 : vector<1x16x128xi1>, vector<1x16x128xf32>
      %704 = arith.subf %528, %703 : vector<1x16x128xf32>
      %705 = math.absf %704 : vector<1x16x128xf32>
      %cst_101 = arith.constant dense<0.000000e+00> : vector<1x128xf32>
      %706 = vector.multi_reduction <add>, %705, %cst_101 [1] : vector<1x16x128xf32> to vector<1x128xf32>
      %707 = vector.shape_cast %706 : vector<1x128xf32> to vector<1x1x128xf32>
      %708 = arith.subf %531, %620 : vector<1x16x128xf32>
      %709 = math.absf %708 : vector<1x16x128xf32>
      %cst_102 = arith.constant dense<0.000000e+00> : vector<1x128xf32>
      %710 = vector.multi_reduction <add>, %709, %cst_102 [1] : vector<1x16x128xf32> to vector<1x128xf32>
      %711 = vector.shape_cast %710 : vector<1x128xf32> to vector<1x1x128xf32>
      %712 = arith.mulf %707, %707 : vector<1x1x128xf32>
      %713 = arith.mulf %711, %711 : vector<1x1x128xf32>
      %714 = arith.addf %712, %713 : vector<1x1x128xf32>
      %cst_103 = arith.constant 5.000000e-01 : f32
      %715 = vector.broadcast %cst_103 : f32 to vector<1x1x128xf32>
      %716 = arith.cmpf ogt, %537, %715 : vector<1x1x128xf32>
      %717 = vector.shape_cast %716 : vector<1x1x128xi1> to vector<1x1x128xi1>
      %718 = vector.broadcast %717 : vector<1x1x128xi1> to vector<1x16x128xi1>
      %719 = arith.select %718, %528, %703 : vector<1x16x128xi1>, vector<1x16x128xf32>
      %720 = vector.shape_cast %716 : vector<1x1x128xi1> to vector<1x1x128xi1>
      %721 = vector.broadcast %720 : vector<1x1x128xi1> to vector<1x16x128xi1>
      %722 = arith.select %721, %531, %620 : vector<1x16x128xi1>, vector<1x16x128xf32>
      %cst_104 = arith.constant 1.000000e-03 : f32
      %723 = vector.broadcast %cst_104 : f32 to vector<1x1x128xf32>
      %724 = arith.cmpf ole, %714, %723 : vector<1x1x128xf32>
      %cst_105 = arith.constant 1.000000e+00 : f32
      %cst_106 = arith.constant 0.000000e+00 : f32
      %725 = vector.broadcast %cst_105 : f32 to vector<1x1x128xf32>
      %726 = vector.broadcast %cst_106 : f32 to vector<1x1x128xf32>
      %727 = arith.select %724, %725, %726 : vector<1x1x128xi1>, vector<1x1x128xf32>
      %728 = arith.maximumf %537, %727 : vector<1x1x128xf32>
      %729 = vector.extract_strided_slice %19 {offsets = [0, 0, 0], sizes = [1, 16, 128], strides = [1, 1, 1]} : vector<16x16x128xf32> to vector<1x16x128xf32>
      %730 = vector.extract_strided_slice %719 {offsets = [0, 0, 0], sizes = [1, 1, 128], strides = [1, 1, 1]} : vector<1x16x128xf32> to vector<1x1x128xf32>
      %731 = vector.broadcast %730 : vector<1x1x128xf32> to vector<1x16x128xf32>
      %732 = arith.mulf %729, %731 : vector<1x16x128xf32>
      %733 = vector.extract_strided_slice %19 {offsets = [1, 0, 0], sizes = [1, 16, 128], strides = [1, 1, 1]} : vector<16x16x128xf32> to vector<1x16x128xf32>
      %734 = vector.extract_strided_slice %719 {offsets = [0, 1, 0], sizes = [1, 1, 128], strides = [1, 1, 1]} : vector<1x16x128xf32> to vector<1x1x128xf32>
      %735 = vector.broadcast %734 : vector<1x1x128xf32> to vector<1x16x128xf32>
      %736 = arith.mulf %733, %735 : vector<1x16x128xf32>
      %737 = vector.extract_strided_slice %19 {offsets = [2, 0, 0], sizes = [1, 16, 128], strides = [1, 1, 1]} : vector<16x16x128xf32> to vector<1x16x128xf32>
      %738 = vector.extract_strided_slice %719 {offsets = [0, 2, 0], sizes = [1, 1, 128], strides = [1, 1, 1]} : vector<1x16x128xf32> to vector<1x1x128xf32>
      %739 = vector.broadcast %738 : vector<1x1x128xf32> to vector<1x16x128xf32>
      %740 = arith.mulf %737, %739 : vector<1x16x128xf32>
      %741 = vector.extract_strided_slice %19 {offsets = [3, 0, 0], sizes = [1, 16, 128], strides = [1, 1, 1]} : vector<16x16x128xf32> to vector<1x16x128xf32>
      %742 = vector.extract_strided_slice %719 {offsets = [0, 3, 0], sizes = [1, 1, 128], strides = [1, 1, 1]} : vector<1x16x128xf32> to vector<1x1x128xf32>
      %743 = vector.broadcast %742 : vector<1x1x128xf32> to vector<1x16x128xf32>
      %744 = arith.mulf %741, %743 : vector<1x16x128xf32>
      %745 = vector.extract_strided_slice %19 {offsets = [4, 0, 0], sizes = [1, 16, 128], strides = [1, 1, 1]} : vector<16x16x128xf32> to vector<1x16x128xf32>
      %746 = vector.extract_strided_slice %719 {offsets = [0, 4, 0], sizes = [1, 1, 128], strides = [1, 1, 1]} : vector<1x16x128xf32> to vector<1x1x128xf32>
      %747 = vector.broadcast %746 : vector<1x1x128xf32> to vector<1x16x128xf32>
      %748 = arith.mulf %745, %747 : vector<1x16x128xf32>
      %749 = vector.extract_strided_slice %19 {offsets = [5, 0, 0], sizes = [1, 16, 128], strides = [1, 1, 1]} : vector<16x16x128xf32> to vector<1x16x128xf32>
      %750 = vector.extract_strided_slice %719 {offsets = [0, 5, 0], sizes = [1, 1, 128], strides = [1, 1, 1]} : vector<1x16x128xf32> to vector<1x1x128xf32>
      %751 = vector.broadcast %750 : vector<1x1x128xf32> to vector<1x16x128xf32>
      %752 = arith.mulf %749, %751 : vector<1x16x128xf32>
      %753 = vector.extract_strided_slice %19 {offsets = [6, 0, 0], sizes = [1, 16, 128], strides = [1, 1, 1]} : vector<16x16x128xf32> to vector<1x16x128xf32>
      %754 = vector.extract_strided_slice %719 {offsets = [0, 6, 0], sizes = [1, 1, 128], strides = [1, 1, 1]} : vector<1x16x128xf32> to vector<1x1x128xf32>
      %755 = vector.broadcast %754 : vector<1x1x128xf32> to vector<1x16x128xf32>
      %756 = arith.mulf %753, %755 : vector<1x16x128xf32>
      %757 = vector.extract_strided_slice %19 {offsets = [7, 0, 0], sizes = [1, 16, 128], strides = [1, 1, 1]} : vector<16x16x128xf32> to vector<1x16x128xf32>
      %758 = vector.extract_strided_slice %719 {offsets = [0, 7, 0], sizes = [1, 1, 128], strides = [1, 1, 1]} : vector<1x16x128xf32> to vector<1x1x128xf32>
      %759 = vector.broadcast %758 : vector<1x1x128xf32> to vector<1x16x128xf32>
      %760 = arith.mulf %757, %759 : vector<1x16x128xf32>
      %761 = vector.extract_strided_slice %19 {offsets = [8, 0, 0], sizes = [1, 16, 128], strides = [1, 1, 1]} : vector<16x16x128xf32> to vector<1x16x128xf32>
      %762 = vector.extract_strided_slice %719 {offsets = [0, 8, 0], sizes = [1, 1, 128], strides = [1, 1, 1]} : vector<1x16x128xf32> to vector<1x1x128xf32>
      %763 = vector.broadcast %762 : vector<1x1x128xf32> to vector<1x16x128xf32>
      %764 = arith.mulf %761, %763 : vector<1x16x128xf32>
      %765 = vector.extract_strided_slice %19 {offsets = [9, 0, 0], sizes = [1, 16, 128], strides = [1, 1, 1]} : vector<16x16x128xf32> to vector<1x16x128xf32>
      %766 = vector.extract_strided_slice %719 {offsets = [0, 9, 0], sizes = [1, 1, 128], strides = [1, 1, 1]} : vector<1x16x128xf32> to vector<1x1x128xf32>
      %767 = vector.broadcast %766 : vector<1x1x128xf32> to vector<1x16x128xf32>
      %768 = arith.mulf %765, %767 : vector<1x16x128xf32>
      %769 = vector.extract_strided_slice %19 {offsets = [10, 0, 0], sizes = [1, 16, 128], strides = [1, 1, 1]} : vector<16x16x128xf32> to vector<1x16x128xf32>
      %770 = vector.extract_strided_slice %719 {offsets = [0, 10, 0], sizes = [1, 1, 128], strides = [1, 1, 1]} : vector<1x16x128xf32> to vector<1x1x128xf32>
      %771 = vector.broadcast %770 : vector<1x1x128xf32> to vector<1x16x128xf32>
      %772 = arith.mulf %769, %771 : vector<1x16x128xf32>
      %773 = vector.extract_strided_slice %19 {offsets = [11, 0, 0], sizes = [1, 16, 128], strides = [1, 1, 1]} : vector<16x16x128xf32> to vector<1x16x128xf32>
      %774 = vector.extract_strided_slice %719 {offsets = [0, 11, 0], sizes = [1, 1, 128], strides = [1, 1, 1]} : vector<1x16x128xf32> to vector<1x1x128xf32>
      %775 = vector.broadcast %774 : vector<1x1x128xf32> to vector<1x16x128xf32>
      %776 = arith.mulf %773, %775 : vector<1x16x128xf32>
      %777 = vector.extract_strided_slice %19 {offsets = [12, 0, 0], sizes = [1, 16, 128], strides = [1, 1, 1]} : vector<16x16x128xf32> to vector<1x16x128xf32>
      %778 = vector.extract_strided_slice %719 {offsets = [0, 12, 0], sizes = [1, 1, 128], strides = [1, 1, 1]} : vector<1x16x128xf32> to vector<1x1x128xf32>
      %779 = vector.broadcast %778 : vector<1x1x128xf32> to vector<1x16x128xf32>
      %780 = arith.mulf %777, %779 : vector<1x16x128xf32>
      %781 = vector.extract_strided_slice %19 {offsets = [13, 0, 0], sizes = [1, 16, 128], strides = [1, 1, 1]} : vector<16x16x128xf32> to vector<1x16x128xf32>
      %782 = vector.extract_strided_slice %719 {offsets = [0, 13, 0], sizes = [1, 1, 128], strides = [1, 1, 1]} : vector<1x16x128xf32> to vector<1x1x128xf32>
      %783 = vector.broadcast %782 : vector<1x1x128xf32> to vector<1x16x128xf32>
      %784 = arith.mulf %781, %783 : vector<1x16x128xf32>
      %785 = vector.extract_strided_slice %19 {offsets = [14, 0, 0], sizes = [1, 16, 128], strides = [1, 1, 1]} : vector<16x16x128xf32> to vector<1x16x128xf32>
      %786 = vector.extract_strided_slice %719 {offsets = [0, 14, 0], sizes = [1, 1, 128], strides = [1, 1, 1]} : vector<1x16x128xf32> to vector<1x1x128xf32>
      %787 = vector.broadcast %786 : vector<1x1x128xf32> to vector<1x16x128xf32>
      %788 = arith.mulf %785, %787 : vector<1x16x128xf32>
      %789 = vector.extract_strided_slice %19 {offsets = [15, 0, 0], sizes = [1, 16, 128], strides = [1, 1, 1]} : vector<16x16x128xf32> to vector<1x16x128xf32>
      %790 = vector.extract_strided_slice %719 {offsets = [0, 15, 0], sizes = [1, 1, 128], strides = [1, 1, 1]} : vector<1x16x128xf32> to vector<1x1x128xf32>
      %791 = vector.broadcast %790 : vector<1x1x128xf32> to vector<1x16x128xf32>
      %792 = arith.mulf %789, %791 : vector<1x16x128xf32>
      %793 = arith.addf %732, %736 : vector<1x16x128xf32>
      %794 = arith.addf %740, %744 : vector<1x16x128xf32>
      %795 = arith.addf %748, %752 : vector<1x16x128xf32>
      %796 = arith.addf %756, %760 : vector<1x16x128xf32>
      %797 = arith.addf %764, %768 : vector<1x16x128xf32>
      %798 = arith.addf %772, %776 : vector<1x16x128xf32>
      %799 = arith.addf %780, %784 : vector<1x16x128xf32>
      %800 = arith.addf %788, %792 : vector<1x16x128xf32>
      %801 = arith.addf %793, %794 : vector<1x16x128xf32>
      %802 = arith.addf %795, %796 : vector<1x16x128xf32>
      %803 = arith.addf %797, %798 : vector<1x16x128xf32>
      %804 = arith.addf %799, %800 : vector<1x16x128xf32>
      %805 = arith.addf %801, %802 : vector<1x16x128xf32>
      %806 = arith.addf %803, %804 : vector<1x16x128xf32>
      %807 = arith.addf %805, %806 : vector<1x16x128xf32>
      %808 = tpu.reciprocal %807 {approx = true} : vector<1x16x128xf32> -> vector<1x16x128xf32>
      %809 = arith.mulf %59, %808 : vector<1x16x128xf32>
      %cst_107 = arith.constant 1.000000e+00 : f32
      %810 = vector.broadcast %cst_107 : f32 to vector<1x16x128xf32>
      %811 = arith.select %39, %809, %810 : vector<1x16x128xi1>, vector<1x16x128xf32>
      %812 = vector.extract_strided_slice %33 {offsets = [0, 0, 0], sizes = [1, 16, 128], strides = [1, 1, 1]} : vector<16x16x128xf32> to vector<1x16x128xf32>
      %813 = vector.extract_strided_slice %811 {offsets = [0, 0, 0], sizes = [1, 1, 128], strides = [1, 1, 1]} : vector<1x16x128xf32> to vector<1x1x128xf32>
      %814 = vector.broadcast %813 : vector<1x1x128xf32> to vector<1x16x128xf32>
      %815 = arith.mulf %812, %814 : vector<1x16x128xf32>
      %816 = vector.extract_strided_slice %33 {offsets = [1, 0, 0], sizes = [1, 16, 128], strides = [1, 1, 1]} : vector<16x16x128xf32> to vector<1x16x128xf32>
      %817 = vector.extract_strided_slice %811 {offsets = [0, 1, 0], sizes = [1, 1, 128], strides = [1, 1, 1]} : vector<1x16x128xf32> to vector<1x1x128xf32>
      %818 = vector.broadcast %817 : vector<1x1x128xf32> to vector<1x16x128xf32>
      %819 = arith.mulf %816, %818 : vector<1x16x128xf32>
      %820 = vector.extract_strided_slice %33 {offsets = [2, 0, 0], sizes = [1, 16, 128], strides = [1, 1, 1]} : vector<16x16x128xf32> to vector<1x16x128xf32>
      %821 = vector.extract_strided_slice %811 {offsets = [0, 2, 0], sizes = [1, 1, 128], strides = [1, 1, 1]} : vector<1x16x128xf32> to vector<1x1x128xf32>
      %822 = vector.broadcast %821 : vector<1x1x128xf32> to vector<1x16x128xf32>
      %823 = arith.mulf %820, %822 : vector<1x16x128xf32>
      %824 = vector.extract_strided_slice %33 {offsets = [3, 0, 0], sizes = [1, 16, 128], strides = [1, 1, 1]} : vector<16x16x128xf32> to vector<1x16x128xf32>
      %825 = vector.extract_strided_slice %811 {offsets = [0, 3, 0], sizes = [1, 1, 128], strides = [1, 1, 1]} : vector<1x16x128xf32> to vector<1x1x128xf32>
      %826 = vector.broadcast %825 : vector<1x1x128xf32> to vector<1x16x128xf32>
      %827 = arith.mulf %824, %826 : vector<1x16x128xf32>
      %828 = vector.extract_strided_slice %33 {offsets = [4, 0, 0], sizes = [1, 16, 128], strides = [1, 1, 1]} : vector<16x16x128xf32> to vector<1x16x128xf32>
      %829 = vector.extract_strided_slice %811 {offsets = [0, 4, 0], sizes = [1, 1, 128], strides = [1, 1, 1]} : vector<1x16x128xf32> to vector<1x1x128xf32>
      %830 = vector.broadcast %829 : vector<1x1x128xf32> to vector<1x16x128xf32>
      %831 = arith.mulf %828, %830 : vector<1x16x128xf32>
      %832 = vector.extract_strided_slice %33 {offsets = [5, 0, 0], sizes = [1, 16, 128], strides = [1, 1, 1]} : vector<16x16x128xf32> to vector<1x16x128xf32>
      %833 = vector.extract_strided_slice %811 {offsets = [0, 5, 0], sizes = [1, 1, 128], strides = [1, 1, 1]} : vector<1x16x128xf32> to vector<1x1x128xf32>
      %834 = vector.broadcast %833 : vector<1x1x128xf32> to vector<1x16x128xf32>
      %835 = arith.mulf %832, %834 : vector<1x16x128xf32>
      %836 = vector.extract_strided_slice %33 {offsets = [6, 0, 0], sizes = [1, 16, 128], strides = [1, 1, 1]} : vector<16x16x128xf32> to vector<1x16x128xf32>
      %837 = vector.extract_strided_slice %811 {offsets = [0, 6, 0], sizes = [1, 1, 128], strides = [1, 1, 1]} : vector<1x16x128xf32> to vector<1x1x128xf32>
      %838 = vector.broadcast %837 : vector<1x1x128xf32> to vector<1x16x128xf32>
      %839 = arith.mulf %836, %838 : vector<1x16x128xf32>
      %840 = vector.extract_strided_slice %33 {offsets = [7, 0, 0], sizes = [1, 16, 128], strides = [1, 1, 1]} : vector<16x16x128xf32> to vector<1x16x128xf32>
      %841 = vector.extract_strided_slice %811 {offsets = [0, 7, 0], sizes = [1, 1, 128], strides = [1, 1, 1]} : vector<1x16x128xf32> to vector<1x1x128xf32>
      %842 = vector.broadcast %841 : vector<1x1x128xf32> to vector<1x16x128xf32>
      %843 = arith.mulf %840, %842 : vector<1x16x128xf32>
      %844 = vector.extract_strided_slice %33 {offsets = [8, 0, 0], sizes = [1, 16, 128], strides = [1, 1, 1]} : vector<16x16x128xf32> to vector<1x16x128xf32>
      %845 = vector.extract_strided_slice %811 {offsets = [0, 8, 0], sizes = [1, 1, 128], strides = [1, 1, 1]} : vector<1x16x128xf32> to vector<1x1x128xf32>
      %846 = vector.broadcast %845 : vector<1x1x128xf32> to vector<1x16x128xf32>
      %847 = arith.mulf %844, %846 : vector<1x16x128xf32>
      %848 = vector.extract_strided_slice %33 {offsets = [9, 0, 0], sizes = [1, 16, 128], strides = [1, 1, 1]} : vector<16x16x128xf32> to vector<1x16x128xf32>
      %849 = vector.extract_strided_slice %811 {offsets = [0, 9, 0], sizes = [1, 1, 128], strides = [1, 1, 1]} : vector<1x16x128xf32> to vector<1x1x128xf32>
      %850 = vector.broadcast %849 : vector<1x1x128xf32> to vector<1x16x128xf32>
      %851 = arith.mulf %848, %850 : vector<1x16x128xf32>
      %852 = vector.extract_strided_slice %33 {offsets = [10, 0, 0], sizes = [1, 16, 128], strides = [1, 1, 1]} : vector<16x16x128xf32> to vector<1x16x128xf32>
      %853 = vector.extract_strided_slice %811 {offsets = [0, 10, 0], sizes = [1, 1, 128], strides = [1, 1, 1]} : vector<1x16x128xf32> to vector<1x1x128xf32>
      %854 = vector.broadcast %853 : vector<1x1x128xf32> to vector<1x16x128xf32>
      %855 = arith.mulf %852, %854 : vector<1x16x128xf32>
      %856 = vector.extract_strided_slice %33 {offsets = [11, 0, 0], sizes = [1, 16, 128], strides = [1, 1, 1]} : vector<16x16x128xf32> to vector<1x16x128xf32>
      %857 = vector.extract_strided_slice %811 {offsets = [0, 11, 0], sizes = [1, 1, 128], strides = [1, 1, 1]} : vector<1x16x128xf32> to vector<1x1x128xf32>
      %858 = vector.broadcast %857 : vector<1x1x128xf32> to vector<1x16x128xf32>
      %859 = arith.mulf %856, %858 : vector<1x16x128xf32>
      %860 = vector.extract_strided_slice %33 {offsets = [12, 0, 0], sizes = [1, 16, 128], strides = [1, 1, 1]} : vector<16x16x128xf32> to vector<1x16x128xf32>
      %861 = vector.extract_strided_slice %811 {offsets = [0, 12, 0], sizes = [1, 1, 128], strides = [1, 1, 1]} : vector<1x16x128xf32> to vector<1x1x128xf32>
      %862 = vector.broadcast %861 : vector<1x1x128xf32> to vector<1x16x128xf32>
      %863 = arith.mulf %860, %862 : vector<1x16x128xf32>
      %864 = vector.extract_strided_slice %33 {offsets = [13, 0, 0], sizes = [1, 16, 128], strides = [1, 1, 1]} : vector<16x16x128xf32> to vector<1x16x128xf32>
      %865 = vector.extract_strided_slice %811 {offsets = [0, 13, 0], sizes = [1, 1, 128], strides = [1, 1, 1]} : vector<1x16x128xf32> to vector<1x1x128xf32>
      %866 = vector.broadcast %865 : vector<1x1x128xf32> to vector<1x16x128xf32>
      %867 = arith.mulf %864, %866 : vector<1x16x128xf32>
      %868 = vector.extract_strided_slice %33 {offsets = [14, 0, 0], sizes = [1, 16, 128], strides = [1, 1, 1]} : vector<16x16x128xf32> to vector<1x16x128xf32>
      %869 = vector.extract_strided_slice %811 {offsets = [0, 14, 0], sizes = [1, 1, 128], strides = [1, 1, 1]} : vector<1x16x128xf32> to vector<1x1x128xf32>
      %870 = vector.broadcast %869 : vector<1x1x128xf32> to vector<1x16x128xf32>
      %871 = arith.mulf %868, %870 : vector<1x16x128xf32>
      %872 = vector.extract_strided_slice %33 {offsets = [15, 0, 0], sizes = [1, 16, 128], strides = [1, 1, 1]} : vector<16x16x128xf32> to vector<1x16x128xf32>
      %873 = vector.extract_strided_slice %811 {offsets = [0, 15, 0], sizes = [1, 1, 128], strides = [1, 1, 1]} : vector<1x16x128xf32> to vector<1x1x128xf32>
      %874 = vector.broadcast %873 : vector<1x1x128xf32> to vector<1x16x128xf32>
      %875 = arith.mulf %872, %874 : vector<1x16x128xf32>
      %876 = arith.addf %815, %819 : vector<1x16x128xf32>
      %877 = arith.addf %823, %827 : vector<1x16x128xf32>
      %878 = arith.addf %831, %835 : vector<1x16x128xf32>
      %879 = arith.addf %839, %843 : vector<1x16x128xf32>
      %880 = arith.addf %847, %851 : vector<1x16x128xf32>
      %881 = arith.addf %855, %859 : vector<1x16x128xf32>
      %882 = arith.addf %863, %867 : vector<1x16x128xf32>
      %883 = arith.addf %871, %875 : vector<1x16x128xf32>
      %884 = arith.addf %876, %877 : vector<1x16x128xf32>
      %885 = arith.addf %878, %879 : vector<1x16x128xf32>
      %886 = arith.addf %880, %881 : vector<1x16x128xf32>
      %887 = arith.addf %882, %883 : vector<1x16x128xf32>
      %888 = arith.addf %884, %885 : vector<1x16x128xf32>
      %889 = arith.addf %886, %887 : vector<1x16x128xf32>
      %890 = arith.addf %888, %889 : vector<1x16x128xf32>
      %891 = tpu.reciprocal %890 {approx = true} : vector<1x16x128xf32> -> vector<1x16x128xf32>
      %892 = arith.mulf %49, %891 : vector<1x16x128xf32>
      %cst_108 = arith.constant 1.000000e+00 : f32
      %893 = vector.broadcast %cst_108 : f32 to vector<1x16x128xf32>
      %894 = arith.select %37, %892, %893 : vector<1x16x128xi1>, vector<1x16x128xf32>
      %895 = arith.subf %719, %894 : vector<1x16x128xf32>
      %896 = math.absf %895 : vector<1x16x128xf32>
      %cst_109 = arith.constant dense<0.000000e+00> : vector<1x128xf32>
      %897 = vector.multi_reduction <add>, %896, %cst_109 [1] : vector<1x16x128xf32> to vector<1x128xf32>
      %898 = vector.shape_cast %897 : vector<1x128xf32> to vector<1x1x128xf32>
      %899 = arith.subf %722, %811 : vector<1x16x128xf32>
      %900 = math.absf %899 : vector<1x16x128xf32>
      %cst_110 = arith.constant dense<0.000000e+00> : vector<1x128xf32>
      %901 = vector.multi_reduction <add>, %900, %cst_110 [1] : vector<1x16x128xf32> to vector<1x128xf32>
      %902 = vector.shape_cast %901 : vector<1x128xf32> to vector<1x1x128xf32>
      %903 = arith.mulf %898, %898 : vector<1x1x128xf32>
      %904 = arith.mulf %902, %902 : vector<1x1x128xf32>
      %905 = arith.addf %903, %904 : vector<1x1x128xf32>
      %cst_111 = arith.constant 5.000000e-01 : f32
      %906 = vector.broadcast %cst_111 : f32 to vector<1x1x128xf32>
      %907 = arith.cmpf ogt, %728, %906 : vector<1x1x128xf32>
      %908 = vector.shape_cast %907 : vector<1x1x128xi1> to vector<1x1x128xi1>
      %909 = vector.broadcast %908 : vector<1x1x128xi1> to vector<1x16x128xi1>
      %910 = arith.select %909, %719, %894 : vector<1x16x128xi1>, vector<1x16x128xf32>
      %911 = vector.shape_cast %907 : vector<1x1x128xi1> to vector<1x1x128xi1>
      %912 = vector.broadcast %911 : vector<1x1x128xi1> to vector<1x16x128xi1>
      %913 = arith.select %912, %722, %811 : vector<1x16x128xi1>, vector<1x16x128xf32>
      %cst_112 = arith.constant 1.000000e-03 : f32
      %914 = vector.broadcast %cst_112 : f32 to vector<1x1x128xf32>
      %915 = arith.cmpf ole, %905, %914 : vector<1x1x128xf32>
      %cst_113 = arith.constant 1.000000e+00 : f32
      %cst_114 = arith.constant 0.000000e+00 : f32
      %916 = vector.broadcast %cst_113 : f32 to vector<1x1x128xf32>
      %917 = vector.broadcast %cst_114 : f32 to vector<1x1x128xf32>
      %918 = arith.select %915, %916, %917 : vector<1x1x128xi1>, vector<1x1x128xf32>
      %919 = arith.maximumf %728, %918 : vector<1x1x128xf32>
      %920 = vector.extract_strided_slice %19 {offsets = [0, 0, 0], sizes = [1, 16, 128], strides = [1, 1, 1]} : vector<16x16x128xf32> to vector<1x16x128xf32>
      %921 = vector.extract_strided_slice %910 {offsets = [0, 0, 0], sizes = [1, 1, 128], strides = [1, 1, 1]} : vector<1x16x128xf32> to vector<1x1x128xf32>
      %922 = vector.broadcast %921 : vector<1x1x128xf32> to vector<1x16x128xf32>
      %923 = arith.mulf %920, %922 : vector<1x16x128xf32>
      %924 = vector.extract_strided_slice %19 {offsets = [1, 0, 0], sizes = [1, 16, 128], strides = [1, 1, 1]} : vector<16x16x128xf32> to vector<1x16x128xf32>
      %925 = vector.extract_strided_slice %910 {offsets = [0, 1, 0], sizes = [1, 1, 128], strides = [1, 1, 1]} : vector<1x16x128xf32> to vector<1x1x128xf32>
      %926 = vector.broadcast %925 : vector<1x1x128xf32> to vector<1x16x128xf32>
      %927 = arith.mulf %924, %926 : vector<1x16x128xf32>
      %928 = vector.extract_strided_slice %19 {offsets = [2, 0, 0], sizes = [1, 16, 128], strides = [1, 1, 1]} : vector<16x16x128xf32> to vector<1x16x128xf32>
      %929 = vector.extract_strided_slice %910 {offsets = [0, 2, 0], sizes = [1, 1, 128], strides = [1, 1, 1]} : vector<1x16x128xf32> to vector<1x1x128xf32>
      %930 = vector.broadcast %929 : vector<1x1x128xf32> to vector<1x16x128xf32>
      %931 = arith.mulf %928, %930 : vector<1x16x128xf32>
      %932 = vector.extract_strided_slice %19 {offsets = [3, 0, 0], sizes = [1, 16, 128], strides = [1, 1, 1]} : vector<16x16x128xf32> to vector<1x16x128xf32>
      %933 = vector.extract_strided_slice %910 {offsets = [0, 3, 0], sizes = [1, 1, 128], strides = [1, 1, 1]} : vector<1x16x128xf32> to vector<1x1x128xf32>
      %934 = vector.broadcast %933 : vector<1x1x128xf32> to vector<1x16x128xf32>
      %935 = arith.mulf %932, %934 : vector<1x16x128xf32>
      %936 = vector.extract_strided_slice %19 {offsets = [4, 0, 0], sizes = [1, 16, 128], strides = [1, 1, 1]} : vector<16x16x128xf32> to vector<1x16x128xf32>
      %937 = vector.extract_strided_slice %910 {offsets = [0, 4, 0], sizes = [1, 1, 128], strides = [1, 1, 1]} : vector<1x16x128xf32> to vector<1x1x128xf32>
      %938 = vector.broadcast %937 : vector<1x1x128xf32> to vector<1x16x128xf32>
      %939 = arith.mulf %936, %938 : vector<1x16x128xf32>
      %940 = vector.extract_strided_slice %19 {offsets = [5, 0, 0], sizes = [1, 16, 128], strides = [1, 1, 1]} : vector<16x16x128xf32> to vector<1x16x128xf32>
      %941 = vector.extract_strided_slice %910 {offsets = [0, 5, 0], sizes = [1, 1, 128], strides = [1, 1, 1]} : vector<1x16x128xf32> to vector<1x1x128xf32>
      %942 = vector.broadcast %941 : vector<1x1x128xf32> to vector<1x16x128xf32>
      %943 = arith.mulf %940, %942 : vector<1x16x128xf32>
      %944 = vector.extract_strided_slice %19 {offsets = [6, 0, 0], sizes = [1, 16, 128], strides = [1, 1, 1]} : vector<16x16x128xf32> to vector<1x16x128xf32>
      %945 = vector.extract_strided_slice %910 {offsets = [0, 6, 0], sizes = [1, 1, 128], strides = [1, 1, 1]} : vector<1x16x128xf32> to vector<1x1x128xf32>
      %946 = vector.broadcast %945 : vector<1x1x128xf32> to vector<1x16x128xf32>
      %947 = arith.mulf %944, %946 : vector<1x16x128xf32>
      %948 = vector.extract_strided_slice %19 {offsets = [7, 0, 0], sizes = [1, 16, 128], strides = [1, 1, 1]} : vector<16x16x128xf32> to vector<1x16x128xf32>
      %949 = vector.extract_strided_slice %910 {offsets = [0, 7, 0], sizes = [1, 1, 128], strides = [1, 1, 1]} : vector<1x16x128xf32> to vector<1x1x128xf32>
      %950 = vector.broadcast %949 : vector<1x1x128xf32> to vector<1x16x128xf32>
      %951 = arith.mulf %948, %950 : vector<1x16x128xf32>
      %952 = vector.extract_strided_slice %19 {offsets = [8, 0, 0], sizes = [1, 16, 128], strides = [1, 1, 1]} : vector<16x16x128xf32> to vector<1x16x128xf32>
      %953 = vector.extract_strided_slice %910 {offsets = [0, 8, 0], sizes = [1, 1, 128], strides = [1, 1, 1]} : vector<1x16x128xf32> to vector<1x1x128xf32>
      %954 = vector.broadcast %953 : vector<1x1x128xf32> to vector<1x16x128xf32>
      %955 = arith.mulf %952, %954 : vector<1x16x128xf32>
      %956 = vector.extract_strided_slice %19 {offsets = [9, 0, 0], sizes = [1, 16, 128], strides = [1, 1, 1]} : vector<16x16x128xf32> to vector<1x16x128xf32>
      %957 = vector.extract_strided_slice %910 {offsets = [0, 9, 0], sizes = [1, 1, 128], strides = [1, 1, 1]} : vector<1x16x128xf32> to vector<1x1x128xf32>
      %958 = vector.broadcast %957 : vector<1x1x128xf32> to vector<1x16x128xf32>
      %959 = arith.mulf %956, %958 : vector<1x16x128xf32>
      %960 = vector.extract_strided_slice %19 {offsets = [10, 0, 0], sizes = [1, 16, 128], strides = [1, 1, 1]} : vector<16x16x128xf32> to vector<1x16x128xf32>
      %961 = vector.extract_strided_slice %910 {offsets = [0, 10, 0], sizes = [1, 1, 128], strides = [1, 1, 1]} : vector<1x16x128xf32> to vector<1x1x128xf32>
      %962 = vector.broadcast %961 : vector<1x1x128xf32> to vector<1x16x128xf32>
      %963 = arith.mulf %960, %962 : vector<1x16x128xf32>
      %964 = vector.extract_strided_slice %19 {offsets = [11, 0, 0], sizes = [1, 16, 128], strides = [1, 1, 1]} : vector<16x16x128xf32> to vector<1x16x128xf32>
      %965 = vector.extract_strided_slice %910 {offsets = [0, 11, 0], sizes = [1, 1, 128], strides = [1, 1, 1]} : vector<1x16x128xf32> to vector<1x1x128xf32>
      %966 = vector.broadcast %965 : vector<1x1x128xf32> to vector<1x16x128xf32>
      %967 = arith.mulf %964, %966 : vector<1x16x128xf32>
      %968 = vector.extract_strided_slice %19 {offsets = [12, 0, 0], sizes = [1, 16, 128], strides = [1, 1, 1]} : vector<16x16x128xf32> to vector<1x16x128xf32>
      %969 = vector.extract_strided_slice %910 {offsets = [0, 12, 0], sizes = [1, 1, 128], strides = [1, 1, 1]} : vector<1x16x128xf32> to vector<1x1x128xf32>
      %970 = vector.broadcast %969 : vector<1x1x128xf32> to vector<1x16x128xf32>
      %971 = arith.mulf %968, %970 : vector<1x16x128xf32>
      %972 = vector.extract_strided_slice %19 {offsets = [13, 0, 0], sizes = [1, 16, 128], strides = [1, 1, 1]} : vector<16x16x128xf32> to vector<1x16x128xf32>
      %973 = vector.extract_strided_slice %910 {offsets = [0, 13, 0], sizes = [1, 1, 128], strides = [1, 1, 1]} : vector<1x16x128xf32> to vector<1x1x128xf32>
      %974 = vector.broadcast %973 : vector<1x1x128xf32> to vector<1x16x128xf32>
      %975 = arith.mulf %972, %974 : vector<1x16x128xf32>
      %976 = vector.extract_strided_slice %19 {offsets = [14, 0, 0], sizes = [1, 16, 128], strides = [1, 1, 1]} : vector<16x16x128xf32> to vector<1x16x128xf32>
      %977 = vector.extract_strided_slice %910 {offsets = [0, 14, 0], sizes = [1, 1, 128], strides = [1, 1, 1]} : vector<1x16x128xf32> to vector<1x1x128xf32>
      %978 = vector.broadcast %977 : vector<1x1x128xf32> to vector<1x16x128xf32>
      %979 = arith.mulf %976, %978 : vector<1x16x128xf32>
      %980 = vector.extract_strided_slice %19 {offsets = [15, 0, 0], sizes = [1, 16, 128], strides = [1, 1, 1]} : vector<16x16x128xf32> to vector<1x16x128xf32>
      %981 = vector.extract_strided_slice %910 {offsets = [0, 15, 0], sizes = [1, 1, 128], strides = [1, 1, 1]} : vector<1x16x128xf32> to vector<1x1x128xf32>
      %982 = vector.broadcast %981 : vector<1x1x128xf32> to vector<1x16x128xf32>
      %983 = arith.mulf %980, %982 : vector<1x16x128xf32>
      %984 = arith.addf %923, %927 : vector<1x16x128xf32>
      %985 = arith.addf %931, %935 : vector<1x16x128xf32>
      %986 = arith.addf %939, %943 : vector<1x16x128xf32>
      %987 = arith.addf %947, %951 : vector<1x16x128xf32>
      %988 = arith.addf %955, %959 : vector<1x16x128xf32>
      %989 = arith.addf %963, %967 : vector<1x16x128xf32>
      %990 = arith.addf %971, %975 : vector<1x16x128xf32>
      %991 = arith.addf %979, %983 : vector<1x16x128xf32>
      %992 = arith.addf %984, %985 : vector<1x16x128xf32>
      %993 = arith.addf %986, %987 : vector<1x16x128xf32>
      %994 = arith.addf %988, %989 : vector<1x16x128xf32>
      %995 = arith.addf %990, %991 : vector<1x16x128xf32>
      %996 = arith.addf %992, %993 : vector<1x16x128xf32>
      %997 = arith.addf %994, %995 : vector<1x16x128xf32>
      %998 = arith.addf %996, %997 : vector<1x16x128xf32>
      %999 = tpu.reciprocal %998 {approx = true} : vector<1x16x128xf32> -> vector<1x16x128xf32>
      %1000 = arith.mulf %59, %999 : vector<1x16x128xf32>
      %cst_115 = arith.constant 1.000000e+00 : f32
      %1001 = vector.broadcast %cst_115 : f32 to vector<1x16x128xf32>
      %1002 = arith.select %39, %1000, %1001 : vector<1x16x128xi1>, vector<1x16x128xf32>
      %1003 = vector.extract_strided_slice %33 {offsets = [0, 0, 0], sizes = [1, 16, 128], strides = [1, 1, 1]} : vector<16x16x128xf32> to vector<1x16x128xf32>
      %1004 = vector.extract_strided_slice %1002 {offsets = [0, 0, 0], sizes = [1, 1, 128], strides = [1, 1, 1]} : vector<1x16x128xf32> to vector<1x1x128xf32>
      %1005 = vector.broadcast %1004 : vector<1x1x128xf32> to vector<1x16x128xf32>
      %1006 = arith.mulf %1003, %1005 : vector<1x16x128xf32>
      %1007 = vector.extract_strided_slice %33 {offsets = [1, 0, 0], sizes = [1, 16, 128], strides = [1, 1, 1]} : vector<16x16x128xf32> to vector<1x16x128xf32>
      %1008 = vector.extract_strided_slice %1002 {offsets = [0, 1, 0], sizes = [1, 1, 128], strides = [1, 1, 1]} : vector<1x16x128xf32> to vector<1x1x128xf32>
      %1009 = vector.broadcast %1008 : vector<1x1x128xf32> to vector<1x16x128xf32>
      %1010 = arith.mulf %1007, %1009 : vector<1x16x128xf32>
      %1011 = vector.extract_strided_slice %33 {offsets = [2, 0, 0], sizes = [1, 16, 128], strides = [1, 1, 1]} : vector<16x16x128xf32> to vector<1x16x128xf32>
      %1012 = vector.extract_strided_slice %1002 {offsets = [0, 2, 0], sizes = [1, 1, 128], strides = [1, 1, 1]} : vector<1x16x128xf32> to vector<1x1x128xf32>
      %1013 = vector.broadcast %1012 : vector<1x1x128xf32> to vector<1x16x128xf32>
      %1014 = arith.mulf %1011, %1013 : vector<1x16x128xf32>
      %1015 = vector.extract_strided_slice %33 {offsets = [3, 0, 0], sizes = [1, 16, 128], strides = [1, 1, 1]} : vector<16x16x128xf32> to vector<1x16x128xf32>
      %1016 = vector.extract_strided_slice %1002 {offsets = [0, 3, 0], sizes = [1, 1, 128], strides = [1, 1, 1]} : vector<1x16x128xf32> to vector<1x1x128xf32>
      %1017 = vector.broadcast %1016 : vector<1x1x128xf32> to vector<1x16x128xf32>
      %1018 = arith.mulf %1015, %1017 : vector<1x16x128xf32>
      %1019 = vector.extract_strided_slice %33 {offsets = [4, 0, 0], sizes = [1, 16, 128], strides = [1, 1, 1]} : vector<16x16x128xf32> to vector<1x16x128xf32>
      %1020 = vector.extract_strided_slice %1002 {offsets = [0, 4, 0], sizes = [1, 1, 128], strides = [1, 1, 1]} : vector<1x16x128xf32> to vector<1x1x128xf32>
      %1021 = vector.broadcast %1020 : vector<1x1x128xf32> to vector<1x16x128xf32>
      %1022 = arith.mulf %1019, %1021 : vector<1x16x128xf32>
      %1023 = vector.extract_strided_slice %33 {offsets = [5, 0, 0], sizes = [1, 16, 128], strides = [1, 1, 1]} : vector<16x16x128xf32> to vector<1x16x128xf32>
      %1024 = vector.extract_strided_slice %1002 {offsets = [0, 5, 0], sizes = [1, 1, 128], strides = [1, 1, 1]} : vector<1x16x128xf32> to vector<1x1x128xf32>
      %1025 = vector.broadcast %1024 : vector<1x1x128xf32> to vector<1x16x128xf32>
      %1026 = arith.mulf %1023, %1025 : vector<1x16x128xf32>
      %1027 = vector.extract_strided_slice %33 {offsets = [6, 0, 0], sizes = [1, 16, 128], strides = [1, 1, 1]} : vector<16x16x128xf32> to vector<1x16x128xf32>
      %1028 = vector.extract_strided_slice %1002 {offsets = [0, 6, 0], sizes = [1, 1, 128], strides = [1, 1, 1]} : vector<1x16x128xf32> to vector<1x1x128xf32>
      %1029 = vector.broadcast %1028 : vector<1x1x128xf32> to vector<1x16x128xf32>
      %1030 = arith.mulf %1027, %1029 : vector<1x16x128xf32>
      %1031 = vector.extract_strided_slice %33 {offsets = [7, 0, 0], sizes = [1, 16, 128], strides = [1, 1, 1]} : vector<16x16x128xf32> to vector<1x16x128xf32>
      %1032 = vector.extract_strided_slice %1002 {offsets = [0, 7, 0], sizes = [1, 1, 128], strides = [1, 1, 1]} : vector<1x16x128xf32> to vector<1x1x128xf32>
      %1033 = vector.broadcast %1032 : vector<1x1x128xf32> to vector<1x16x128xf32>
      %1034 = arith.mulf %1031, %1033 : vector<1x16x128xf32>
      %1035 = vector.extract_strided_slice %33 {offsets = [8, 0, 0], sizes = [1, 16, 128], strides = [1, 1, 1]} : vector<16x16x128xf32> to vector<1x16x128xf32>
      %1036 = vector.extract_strided_slice %1002 {offsets = [0, 8, 0], sizes = [1, 1, 128], strides = [1, 1, 1]} : vector<1x16x128xf32> to vector<1x1x128xf32>
      %1037 = vector.broadcast %1036 : vector<1x1x128xf32> to vector<1x16x128xf32>
      %1038 = arith.mulf %1035, %1037 : vector<1x16x128xf32>
      %1039 = vector.extract_strided_slice %33 {offsets = [9, 0, 0], sizes = [1, 16, 128], strides = [1, 1, 1]} : vector<16x16x128xf32> to vector<1x16x128xf32>
      %1040 = vector.extract_strided_slice %1002 {offsets = [0, 9, 0], sizes = [1, 1, 128], strides = [1, 1, 1]} : vector<1x16x128xf32> to vector<1x1x128xf32>
      %1041 = vector.broadcast %1040 : vector<1x1x128xf32> to vector<1x16x128xf32>
      %1042 = arith.mulf %1039, %1041 : vector<1x16x128xf32>
      %1043 = vector.extract_strided_slice %33 {offsets = [10, 0, 0], sizes = [1, 16, 128], strides = [1, 1, 1]} : vector<16x16x128xf32> to vector<1x16x128xf32>
      %1044 = vector.extract_strided_slice %1002 {offsets = [0, 10, 0], sizes = [1, 1, 128], strides = [1, 1, 1]} : vector<1x16x128xf32> to vector<1x1x128xf32>
      %1045 = vector.broadcast %1044 : vector<1x1x128xf32> to vector<1x16x128xf32>
      %1046 = arith.mulf %1043, %1045 : vector<1x16x128xf32>
      %1047 = vector.extract_strided_slice %33 {offsets = [11, 0, 0], sizes = [1, 16, 128], strides = [1, 1, 1]} : vector<16x16x128xf32> to vector<1x16x128xf32>
      %1048 = vector.extract_strided_slice %1002 {offsets = [0, 11, 0], sizes = [1, 1, 128], strides = [1, 1, 1]} : vector<1x16x128xf32> to vector<1x1x128xf32>
      %1049 = vector.broadcast %1048 : vector<1x1x128xf32> to vector<1x16x128xf32>
      %1050 = arith.mulf %1047, %1049 : vector<1x16x128xf32>
      %1051 = vector.extract_strided_slice %33 {offsets = [12, 0, 0], sizes = [1, 16, 128], strides = [1, 1, 1]} : vector<16x16x128xf32> to vector<1x16x128xf32>
      %1052 = vector.extract_strided_slice %1002 {offsets = [0, 12, 0], sizes = [1, 1, 128], strides = [1, 1, 1]} : vector<1x16x128xf32> to vector<1x1x128xf32>
      %1053 = vector.broadcast %1052 : vector<1x1x128xf32> to vector<1x16x128xf32>
      %1054 = arith.mulf %1051, %1053 : vector<1x16x128xf32>
      %1055 = vector.extract_strided_slice %33 {offsets = [13, 0, 0], sizes = [1, 16, 128], strides = [1, 1, 1]} : vector<16x16x128xf32> to vector<1x16x128xf32>
      %1056 = vector.extract_strided_slice %1002 {offsets = [0, 13, 0], sizes = [1, 1, 128], strides = [1, 1, 1]} : vector<1x16x128xf32> to vector<1x1x128xf32>
      %1057 = vector.broadcast %1056 : vector<1x1x128xf32> to vector<1x16x128xf32>
      %1058 = arith.mulf %1055, %1057 : vector<1x16x128xf32>
      %1059 = vector.extract_strided_slice %33 {offsets = [14, 0, 0], sizes = [1, 16, 128], strides = [1, 1, 1]} : vector<16x16x128xf32> to vector<1x16x128xf32>
      %1060 = vector.extract_strided_slice %1002 {offsets = [0, 14, 0], sizes = [1, 1, 128], strides = [1, 1, 1]} : vector<1x16x128xf32> to vector<1x1x128xf32>
      %1061 = vector.broadcast %1060 : vector<1x1x128xf32> to vector<1x16x128xf32>
      %1062 = arith.mulf %1059, %1061 : vector<1x16x128xf32>
      %1063 = vector.extract_strided_slice %33 {offsets = [15, 0, 0], sizes = [1, 16, 128], strides = [1, 1, 1]} : vector<16x16x128xf32> to vector<1x16x128xf32>
      %1064 = vector.extract_strided_slice %1002 {offsets = [0, 15, 0], sizes = [1, 1, 128], strides = [1, 1, 1]} : vector<1x16x128xf32> to vector<1x1x128xf32>
      %1065 = vector.broadcast %1064 : vector<1x1x128xf32> to vector<1x16x128xf32>
      %1066 = arith.mulf %1063, %1065 : vector<1x16x128xf32>
      %1067 = arith.addf %1006, %1010 : vector<1x16x128xf32>
      %1068 = arith.addf %1014, %1018 : vector<1x16x128xf32>
      %1069 = arith.addf %1022, %1026 : vector<1x16x128xf32>
      %1070 = arith.addf %1030, %1034 : vector<1x16x128xf32>
      %1071 = arith.addf %1038, %1042 : vector<1x16x128xf32>
      %1072 = arith.addf %1046, %1050 : vector<1x16x128xf32>
      %1073 = arith.addf %1054, %1058 : vector<1x16x128xf32>
      %1074 = arith.addf %1062, %1066 : vector<1x16x128xf32>
      %1075 = arith.addf %1067, %1068 : vector<1x16x128xf32>
      %1076 = arith.addf %1069, %1070 : vector<1x16x128xf32>
      %1077 = arith.addf %1071, %1072 : vector<1x16x128xf32>
      %1078 = arith.addf %1073, %1074 : vector<1x16x128xf32>
      %1079 = arith.addf %1075, %1076 : vector<1x16x128xf32>
      %1080 = arith.addf %1077, %1078 : vector<1x16x128xf32>
      %1081 = arith.addf %1079, %1080 : vector<1x16x128xf32>
      %1082 = tpu.reciprocal %1081 {approx = true} : vector<1x16x128xf32> -> vector<1x16x128xf32>
      %1083 = arith.mulf %49, %1082 : vector<1x16x128xf32>
      %cst_116 = arith.constant 1.000000e+00 : f32
      %1084 = vector.broadcast %cst_116 : f32 to vector<1x16x128xf32>
      %1085 = arith.select %37, %1083, %1084 : vector<1x16x128xi1>, vector<1x16x128xf32>
      %1086 = arith.subf %910, %1085 : vector<1x16x128xf32>
      %1087 = math.absf %1086 : vector<1x16x128xf32>
      %cst_117 = arith.constant dense<0.000000e+00> : vector<1x128xf32>
      %1088 = vector.multi_reduction <add>, %1087, %cst_117 [1] : vector<1x16x128xf32> to vector<1x128xf32>
      %1089 = vector.shape_cast %1088 : vector<1x128xf32> to vector<1x1x128xf32>
      %1090 = arith.subf %913, %1002 : vector<1x16x128xf32>
      %1091 = math.absf %1090 : vector<1x16x128xf32>
      %cst_118 = arith.constant dense<0.000000e+00> : vector<1x128xf32>
      %1092 = vector.multi_reduction <add>, %1091, %cst_118 [1] : vector<1x16x128xf32> to vector<1x128xf32>
      %1093 = vector.shape_cast %1092 : vector<1x128xf32> to vector<1x1x128xf32>
      %1094 = arith.mulf %1089, %1089 : vector<1x1x128xf32>
      %1095 = arith.mulf %1093, %1093 : vector<1x1x128xf32>
      %1096 = arith.addf %1094, %1095 : vector<1x1x128xf32>
      %cst_119 = arith.constant 5.000000e-01 : f32
      %1097 = vector.broadcast %cst_119 : f32 to vector<1x1x128xf32>
      %1098 = arith.cmpf ogt, %919, %1097 : vector<1x1x128xf32>
      %1099 = vector.shape_cast %1098 : vector<1x1x128xi1> to vector<1x1x128xi1>
      %1100 = vector.broadcast %1099 : vector<1x1x128xi1> to vector<1x16x128xi1>
      %1101 = arith.select %1100, %910, %1085 : vector<1x16x128xi1>, vector<1x16x128xf32>
      %1102 = vector.shape_cast %1098 : vector<1x1x128xi1> to vector<1x1x128xi1>
      %1103 = vector.broadcast %1102 : vector<1x1x128xi1> to vector<1x16x128xi1>
      %1104 = arith.select %1103, %913, %1002 : vector<1x16x128xi1>, vector<1x16x128xf32>
      %cst_120 = arith.constant 1.000000e-03 : f32
      %1105 = vector.broadcast %cst_120 : f32 to vector<1x1x128xf32>
      %1106 = arith.cmpf ole, %1096, %1105 : vector<1x1x128xf32>
      %cst_121 = arith.constant 1.000000e+00 : f32
      %cst_122 = arith.constant 0.000000e+00 : f32
      %1107 = vector.broadcast %cst_121 : f32 to vector<1x1x128xf32>
      %1108 = vector.broadcast %cst_122 : f32 to vector<1x1x128xf32>
      %1109 = arith.select %1106, %1107, %1108 : vector<1x1x128xi1>, vector<1x1x128xf32>
      %1110 = arith.maximumf %919, %1109 : vector<1x1x128xf32>
      %1111 = vector.extract_strided_slice %19 {offsets = [0, 0, 0], sizes = [1, 16, 128], strides = [1, 1, 1]} : vector<16x16x128xf32> to vector<1x16x128xf32>
      %1112 = vector.extract_strided_slice %1101 {offsets = [0, 0, 0], sizes = [1, 1, 128], strides = [1, 1, 1]} : vector<1x16x128xf32> to vector<1x1x128xf32>
      %1113 = vector.broadcast %1112 : vector<1x1x128xf32> to vector<1x16x128xf32>
      %1114 = arith.mulf %1111, %1113 : vector<1x16x128xf32>
      %1115 = vector.extract_strided_slice %19 {offsets = [1, 0, 0], sizes = [1, 16, 128], strides = [1, 1, 1]} : vector<16x16x128xf32> to vector<1x16x128xf32>
      %1116 = vector.extract_strided_slice %1101 {offsets = [0, 1, 0], sizes = [1, 1, 128], strides = [1, 1, 1]} : vector<1x16x128xf32> to vector<1x1x128xf32>
      %1117 = vector.broadcast %1116 : vector<1x1x128xf32> to vector<1x16x128xf32>
      %1118 = arith.mulf %1115, %1117 : vector<1x16x128xf32>
      %1119 = vector.extract_strided_slice %19 {offsets = [2, 0, 0], sizes = [1, 16, 128], strides = [1, 1, 1]} : vector<16x16x128xf32> to vector<1x16x128xf32>
      %1120 = vector.extract_strided_slice %1101 {offsets = [0, 2, 0], sizes = [1, 1, 128], strides = [1, 1, 1]} : vector<1x16x128xf32> to vector<1x1x128xf32>
      %1121 = vector.broadcast %1120 : vector<1x1x128xf32> to vector<1x16x128xf32>
      %1122 = arith.mulf %1119, %1121 : vector<1x16x128xf32>
      %1123 = vector.extract_strided_slice %19 {offsets = [3, 0, 0], sizes = [1, 16, 128], strides = [1, 1, 1]} : vector<16x16x128xf32> to vector<1x16x128xf32>
      %1124 = vector.extract_strided_slice %1101 {offsets = [0, 3, 0], sizes = [1, 1, 128], strides = [1, 1, 1]} : vector<1x16x128xf32> to vector<1x1x128xf32>
      %1125 = vector.broadcast %1124 : vector<1x1x128xf32> to vector<1x16x128xf32>
      %1126 = arith.mulf %1123, %1125 : vector<1x16x128xf32>
      %1127 = vector.extract_strided_slice %19 {offsets = [4, 0, 0], sizes = [1, 16, 128], strides = [1, 1, 1]} : vector<16x16x128xf32> to vector<1x16x128xf32>
      %1128 = vector.extract_strided_slice %1101 {offsets = [0, 4, 0], sizes = [1, 1, 128], strides = [1, 1, 1]} : vector<1x16x128xf32> to vector<1x1x128xf32>
      %1129 = vector.broadcast %1128 : vector<1x1x128xf32> to vector<1x16x128xf32>
      %1130 = arith.mulf %1127, %1129 : vector<1x16x128xf32>
      %1131 = vector.extract_strided_slice %19 {offsets = [5, 0, 0], sizes = [1, 16, 128], strides = [1, 1, 1]} : vector<16x16x128xf32> to vector<1x16x128xf32>
      %1132 = vector.extract_strided_slice %1101 {offsets = [0, 5, 0], sizes = [1, 1, 128], strides = [1, 1, 1]} : vector<1x16x128xf32> to vector<1x1x128xf32>
      %1133 = vector.broadcast %1132 : vector<1x1x128xf32> to vector<1x16x128xf32>
      %1134 = arith.mulf %1131, %1133 : vector<1x16x128xf32>
      %1135 = vector.extract_strided_slice %19 {offsets = [6, 0, 0], sizes = [1, 16, 128], strides = [1, 1, 1]} : vector<16x16x128xf32> to vector<1x16x128xf32>
      %1136 = vector.extract_strided_slice %1101 {offsets = [0, 6, 0], sizes = [1, 1, 128], strides = [1, 1, 1]} : vector<1x16x128xf32> to vector<1x1x128xf32>
      %1137 = vector.broadcast %1136 : vector<1x1x128xf32> to vector<1x16x128xf32>
      %1138 = arith.mulf %1135, %1137 : vector<1x16x128xf32>
      %1139 = vector.extract_strided_slice %19 {offsets = [7, 0, 0], sizes = [1, 16, 128], strides = [1, 1, 1]} : vector<16x16x128xf32> to vector<1x16x128xf32>
      %1140 = vector.extract_strided_slice %1101 {offsets = [0, 7, 0], sizes = [1, 1, 128], strides = [1, 1, 1]} : vector<1x16x128xf32> to vector<1x1x128xf32>
      %1141 = vector.broadcast %1140 : vector<1x1x128xf32> to vector<1x16x128xf32>
      %1142 = arith.mulf %1139, %1141 : vector<1x16x128xf32>
      %1143 = vector.extract_strided_slice %19 {offsets = [8, 0, 0], sizes = [1, 16, 128], strides = [1, 1, 1]} : vector<16x16x128xf32> to vector<1x16x128xf32>
      %1144 = vector.extract_strided_slice %1101 {offsets = [0, 8, 0], sizes = [1, 1, 128], strides = [1, 1, 1]} : vector<1x16x128xf32> to vector<1x1x128xf32>
      %1145 = vector.broadcast %1144 : vector<1x1x128xf32> to vector<1x16x128xf32>
      %1146 = arith.mulf %1143, %1145 : vector<1x16x128xf32>
      %1147 = vector.extract_strided_slice %19 {offsets = [9, 0, 0], sizes = [1, 16, 128], strides = [1, 1, 1]} : vector<16x16x128xf32> to vector<1x16x128xf32>
      %1148 = vector.extract_strided_slice %1101 {offsets = [0, 9, 0], sizes = [1, 1, 128], strides = [1, 1, 1]} : vector<1x16x128xf32> to vector<1x1x128xf32>
      %1149 = vector.broadcast %1148 : vector<1x1x128xf32> to vector<1x16x128xf32>
      %1150 = arith.mulf %1147, %1149 : vector<1x16x128xf32>
      %1151 = vector.extract_strided_slice %19 {offsets = [10, 0, 0], sizes = [1, 16, 128], strides = [1, 1, 1]} : vector<16x16x128xf32> to vector<1x16x128xf32>
      %1152 = vector.extract_strided_slice %1101 {offsets = [0, 10, 0], sizes = [1, 1, 128], strides = [1, 1, 1]} : vector<1x16x128xf32> to vector<1x1x128xf32>
      %1153 = vector.broadcast %1152 : vector<1x1x128xf32> to vector<1x16x128xf32>
      %1154 = arith.mulf %1151, %1153 : vector<1x16x128xf32>
      %1155 = vector.extract_strided_slice %19 {offsets = [11, 0, 0], sizes = [1, 16, 128], strides = [1, 1, 1]} : vector<16x16x128xf32> to vector<1x16x128xf32>
      %1156 = vector.extract_strided_slice %1101 {offsets = [0, 11, 0], sizes = [1, 1, 128], strides = [1, 1, 1]} : vector<1x16x128xf32> to vector<1x1x128xf32>
      %1157 = vector.broadcast %1156 : vector<1x1x128xf32> to vector<1x16x128xf32>
      %1158 = arith.mulf %1155, %1157 : vector<1x16x128xf32>
      %1159 = vector.extract_strided_slice %19 {offsets = [12, 0, 0], sizes = [1, 16, 128], strides = [1, 1, 1]} : vector<16x16x128xf32> to vector<1x16x128xf32>
      %1160 = vector.extract_strided_slice %1101 {offsets = [0, 12, 0], sizes = [1, 1, 128], strides = [1, 1, 1]} : vector<1x16x128xf32> to vector<1x1x128xf32>
      %1161 = vector.broadcast %1160 : vector<1x1x128xf32> to vector<1x16x128xf32>
      %1162 = arith.mulf %1159, %1161 : vector<1x16x128xf32>
      %1163 = vector.extract_strided_slice %19 {offsets = [13, 0, 0], sizes = [1, 16, 128], strides = [1, 1, 1]} : vector<16x16x128xf32> to vector<1x16x128xf32>
      %1164 = vector.extract_strided_slice %1101 {offsets = [0, 13, 0], sizes = [1, 1, 128], strides = [1, 1, 1]} : vector<1x16x128xf32> to vector<1x1x128xf32>
      %1165 = vector.broadcast %1164 : vector<1x1x128xf32> to vector<1x16x128xf32>
      %1166 = arith.mulf %1163, %1165 : vector<1x16x128xf32>
      %1167 = vector.extract_strided_slice %19 {offsets = [14, 0, 0], sizes = [1, 16, 128], strides = [1, 1, 1]} : vector<16x16x128xf32> to vector<1x16x128xf32>
      %1168 = vector.extract_strided_slice %1101 {offsets = [0, 14, 0], sizes = [1, 1, 128], strides = [1, 1, 1]} : vector<1x16x128xf32> to vector<1x1x128xf32>
      %1169 = vector.broadcast %1168 : vector<1x1x128xf32> to vector<1x16x128xf32>
      %1170 = arith.mulf %1167, %1169 : vector<1x16x128xf32>
      %1171 = vector.extract_strided_slice %19 {offsets = [15, 0, 0], sizes = [1, 16, 128], strides = [1, 1, 1]} : vector<16x16x128xf32> to vector<1x16x128xf32>
      %1172 = vector.extract_strided_slice %1101 {offsets = [0, 15, 0], sizes = [1, 1, 128], strides = [1, 1, 1]} : vector<1x16x128xf32> to vector<1x1x128xf32>
      %1173 = vector.broadcast %1172 : vector<1x1x128xf32> to vector<1x16x128xf32>
      %1174 = arith.mulf %1171, %1173 : vector<1x16x128xf32>
      %1175 = arith.addf %1114, %1118 : vector<1x16x128xf32>
      %1176 = arith.addf %1122, %1126 : vector<1x16x128xf32>
      %1177 = arith.addf %1130, %1134 : vector<1x16x128xf32>
      %1178 = arith.addf %1138, %1142 : vector<1x16x128xf32>
      %1179 = arith.addf %1146, %1150 : vector<1x16x128xf32>
      %1180 = arith.addf %1154, %1158 : vector<1x16x128xf32>
      %1181 = arith.addf %1162, %1166 : vector<1x16x128xf32>
      %1182 = arith.addf %1170, %1174 : vector<1x16x128xf32>
      %1183 = arith.addf %1175, %1176 : vector<1x16x128xf32>
      %1184 = arith.addf %1177, %1178 : vector<1x16x128xf32>
      %1185 = arith.addf %1179, %1180 : vector<1x16x128xf32>
      %1186 = arith.addf %1181, %1182 : vector<1x16x128xf32>
      %1187 = arith.addf %1183, %1184 : vector<1x16x128xf32>
      %1188 = arith.addf %1185, %1186 : vector<1x16x128xf32>
      %1189 = arith.addf %1187, %1188 : vector<1x16x128xf32>
      %1190 = tpu.reciprocal %1189 {approx = true} : vector<1x16x128xf32> -> vector<1x16x128xf32>
      %1191 = arith.mulf %59, %1190 : vector<1x16x128xf32>
      %cst_123 = arith.constant 1.000000e+00 : f32
      %1192 = vector.broadcast %cst_123 : f32 to vector<1x16x128xf32>
      %1193 = arith.select %39, %1191, %1192 : vector<1x16x128xi1>, vector<1x16x128xf32>
      %1194 = vector.extract_strided_slice %33 {offsets = [0, 0, 0], sizes = [1, 16, 128], strides = [1, 1, 1]} : vector<16x16x128xf32> to vector<1x16x128xf32>
      %1195 = vector.extract_strided_slice %1193 {offsets = [0, 0, 0], sizes = [1, 1, 128], strides = [1, 1, 1]} : vector<1x16x128xf32> to vector<1x1x128xf32>
      %1196 = vector.broadcast %1195 : vector<1x1x128xf32> to vector<1x16x128xf32>
      %1197 = arith.mulf %1194, %1196 : vector<1x16x128xf32>
      %1198 = vector.extract_strided_slice %33 {offsets = [1, 0, 0], sizes = [1, 16, 128], strides = [1, 1, 1]} : vector<16x16x128xf32> to vector<1x16x128xf32>
      %1199 = vector.extract_strided_slice %1193 {offsets = [0, 1, 0], sizes = [1, 1, 128], strides = [1, 1, 1]} : vector<1x16x128xf32> to vector<1x1x128xf32>
      %1200 = vector.broadcast %1199 : vector<1x1x128xf32> to vector<1x16x128xf32>
      %1201 = arith.mulf %1198, %1200 : vector<1x16x128xf32>
      %1202 = vector.extract_strided_slice %33 {offsets = [2, 0, 0], sizes = [1, 16, 128], strides = [1, 1, 1]} : vector<16x16x128xf32> to vector<1x16x128xf32>
      %1203 = vector.extract_strided_slice %1193 {offsets = [0, 2, 0], sizes = [1, 1, 128], strides = [1, 1, 1]} : vector<1x16x128xf32> to vector<1x1x128xf32>
      %1204 = vector.broadcast %1203 : vector<1x1x128xf32> to vector<1x16x128xf32>
      %1205 = arith.mulf %1202, %1204 : vector<1x16x128xf32>
      %1206 = vector.extract_strided_slice %33 {offsets = [3, 0, 0], sizes = [1, 16, 128], strides = [1, 1, 1]} : vector<16x16x128xf32> to vector<1x16x128xf32>
      %1207 = vector.extract_strided_slice %1193 {offsets = [0, 3, 0], sizes = [1, 1, 128], strides = [1, 1, 1]} : vector<1x16x128xf32> to vector<1x1x128xf32>
      %1208 = vector.broadcast %1207 : vector<1x1x128xf32> to vector<1x16x128xf32>
      %1209 = arith.mulf %1206, %1208 : vector<1x16x128xf32>
      %1210 = vector.extract_strided_slice %33 {offsets = [4, 0, 0], sizes = [1, 16, 128], strides = [1, 1, 1]} : vector<16x16x128xf32> to vector<1x16x128xf32>
      %1211 = vector.extract_strided_slice %1193 {offsets = [0, 4, 0], sizes = [1, 1, 128], strides = [1, 1, 1]} : vector<1x16x128xf32> to vector<1x1x128xf32>
      %1212 = vector.broadcast %1211 : vector<1x1x128xf32> to vector<1x16x128xf32>
      %1213 = arith.mulf %1210, %1212 : vector<1x16x128xf32>
      %1214 = vector.extract_strided_slice %33 {offsets = [5, 0, 0], sizes = [1, 16, 128], strides = [1, 1, 1]} : vector<16x16x128xf32> to vector<1x16x128xf32>
      %1215 = vector.extract_strided_slice %1193 {offsets = [0, 5, 0], sizes = [1, 1, 128], strides = [1, 1, 1]} : vector<1x16x128xf32> to vector<1x1x128xf32>
      %1216 = vector.broadcast %1215 : vector<1x1x128xf32> to vector<1x16x128xf32>
      %1217 = arith.mulf %1214, %1216 : vector<1x16x128xf32>
      %1218 = vector.extract_strided_slice %33 {offsets = [6, 0, 0], sizes = [1, 16, 128], strides = [1, 1, 1]} : vector<16x16x128xf32> to vector<1x16x128xf32>
      %1219 = vector.extract_strided_slice %1193 {offsets = [0, 6, 0], sizes = [1, 1, 128], strides = [1, 1, 1]} : vector<1x16x128xf32> to vector<1x1x128xf32>
      %1220 = vector.broadcast %1219 : vector<1x1x128xf32> to vector<1x16x128xf32>
      %1221 = arith.mulf %1218, %1220 : vector<1x16x128xf32>
      %1222 = vector.extract_strided_slice %33 {offsets = [7, 0, 0], sizes = [1, 16, 128], strides = [1, 1, 1]} : vector<16x16x128xf32> to vector<1x16x128xf32>
      %1223 = vector.extract_strided_slice %1193 {offsets = [0, 7, 0], sizes = [1, 1, 128], strides = [1, 1, 1]} : vector<1x16x128xf32> to vector<1x1x128xf32>
      %1224 = vector.broadcast %1223 : vector<1x1x128xf32> to vector<1x16x128xf32>
      %1225 = arith.mulf %1222, %1224 : vector<1x16x128xf32>
      %1226 = vector.extract_strided_slice %33 {offsets = [8, 0, 0], sizes = [1, 16, 128], strides = [1, 1, 1]} : vector<16x16x128xf32> to vector<1x16x128xf32>
      %1227 = vector.extract_strided_slice %1193 {offsets = [0, 8, 0], sizes = [1, 1, 128], strides = [1, 1, 1]} : vector<1x16x128xf32> to vector<1x1x128xf32>
      %1228 = vector.broadcast %1227 : vector<1x1x128xf32> to vector<1x16x128xf32>
      %1229 = arith.mulf %1226, %1228 : vector<1x16x128xf32>
      %1230 = vector.extract_strided_slice %33 {offsets = [9, 0, 0], sizes = [1, 16, 128], strides = [1, 1, 1]} : vector<16x16x128xf32> to vector<1x16x128xf32>
      %1231 = vector.extract_strided_slice %1193 {offsets = [0, 9, 0], sizes = [1, 1, 128], strides = [1, 1, 1]} : vector<1x16x128xf32> to vector<1x1x128xf32>
      %1232 = vector.broadcast %1231 : vector<1x1x128xf32> to vector<1x16x128xf32>
      %1233 = arith.mulf %1230, %1232 : vector<1x16x128xf32>
      %1234 = vector.extract_strided_slice %33 {offsets = [10, 0, 0], sizes = [1, 16, 128], strides = [1, 1, 1]} : vector<16x16x128xf32> to vector<1x16x128xf32>
      %1235 = vector.extract_strided_slice %1193 {offsets = [0, 10, 0], sizes = [1, 1, 128], strides = [1, 1, 1]} : vector<1x16x128xf32> to vector<1x1x128xf32>
      %1236 = vector.broadcast %1235 : vector<1x1x128xf32> to vector<1x16x128xf32>
      %1237 = arith.mulf %1234, %1236 : vector<1x16x128xf32>
      %1238 = vector.extract_strided_slice %33 {offsets = [11, 0, 0], sizes = [1, 16, 128], strides = [1, 1, 1]} : vector<16x16x128xf32> to vector<1x16x128xf32>
      %1239 = vector.extract_strided_slice %1193 {offsets = [0, 11, 0], sizes = [1, 1, 128], strides = [1, 1, 1]} : vector<1x16x128xf32> to vector<1x1x128xf32>
      %1240 = vector.broadcast %1239 : vector<1x1x128xf32> to vector<1x16x128xf32>
      %1241 = arith.mulf %1238, %1240 : vector<1x16x128xf32>
      %1242 = vector.extract_strided_slice %33 {offsets = [12, 0, 0], sizes = [1, 16, 128], strides = [1, 1, 1]} : vector<16x16x128xf32> to vector<1x16x128xf32>
      %1243 = vector.extract_strided_slice %1193 {offsets = [0, 12, 0], sizes = [1, 1, 128], strides = [1, 1, 1]} : vector<1x16x128xf32> to vector<1x1x128xf32>
      %1244 = vector.broadcast %1243 : vector<1x1x128xf32> to vector<1x16x128xf32>
      %1245 = arith.mulf %1242, %1244 : vector<1x16x128xf32>
      %1246 = vector.extract_strided_slice %33 {offsets = [13, 0, 0], sizes = [1, 16, 128], strides = [1, 1, 1]} : vector<16x16x128xf32> to vector<1x16x128xf32>
      %1247 = vector.extract_strided_slice %1193 {offsets = [0, 13, 0], sizes = [1, 1, 128], strides = [1, 1, 1]} : vector<1x16x128xf32> to vector<1x1x128xf32>
      %1248 = vector.broadcast %1247 : vector<1x1x128xf32> to vector<1x16x128xf32>
      %1249 = arith.mulf %1246, %1248 : vector<1x16x128xf32>
      %1250 = vector.extract_strided_slice %33 {offsets = [14, 0, 0], sizes = [1, 16, 128], strides = [1, 1, 1]} : vector<16x16x128xf32> to vector<1x16x128xf32>
      %1251 = vector.extract_strided_slice %1193 {offsets = [0, 14, 0], sizes = [1, 1, 128], strides = [1, 1, 1]} : vector<1x16x128xf32> to vector<1x1x128xf32>
      %1252 = vector.broadcast %1251 : vector<1x1x128xf32> to vector<1x16x128xf32>
      %1253 = arith.mulf %1250, %1252 : vector<1x16x128xf32>
      %1254 = vector.extract_strided_slice %33 {offsets = [15, 0, 0], sizes = [1, 16, 128], strides = [1, 1, 1]} : vector<16x16x128xf32> to vector<1x16x128xf32>
      %1255 = vector.extract_strided_slice %1193 {offsets = [0, 15, 0], sizes = [1, 1, 128], strides = [1, 1, 1]} : vector<1x16x128xf32> to vector<1x1x128xf32>
      %1256 = vector.broadcast %1255 : vector<1x1x128xf32> to vector<1x16x128xf32>
      %1257 = arith.mulf %1254, %1256 : vector<1x16x128xf32>
      %1258 = arith.addf %1197, %1201 : vector<1x16x128xf32>
      %1259 = arith.addf %1205, %1209 : vector<1x16x128xf32>
      %1260 = arith.addf %1213, %1217 : vector<1x16x128xf32>
      %1261 = arith.addf %1221, %1225 : vector<1x16x128xf32>
      %1262 = arith.addf %1229, %1233 : vector<1x16x128xf32>
      %1263 = arith.addf %1237, %1241 : vector<1x16x128xf32>
      %1264 = arith.addf %1245, %1249 : vector<1x16x128xf32>
      %1265 = arith.addf %1253, %1257 : vector<1x16x128xf32>
      %1266 = arith.addf %1258, %1259 : vector<1x16x128xf32>
      %1267 = arith.addf %1260, %1261 : vector<1x16x128xf32>
      %1268 = arith.addf %1262, %1263 : vector<1x16x128xf32>
      %1269 = arith.addf %1264, %1265 : vector<1x16x128xf32>
      %1270 = arith.addf %1266, %1267 : vector<1x16x128xf32>
      %1271 = arith.addf %1268, %1269 : vector<1x16x128xf32>
      %1272 = arith.addf %1270, %1271 : vector<1x16x128xf32>
      %1273 = tpu.reciprocal %1272 {approx = true} : vector<1x16x128xf32> -> vector<1x16x128xf32>
      %1274 = arith.mulf %49, %1273 : vector<1x16x128xf32>
      %cst_124 = arith.constant 1.000000e+00 : f32
      %1275 = vector.broadcast %cst_124 : f32 to vector<1x16x128xf32>
      %1276 = arith.select %37, %1274, %1275 : vector<1x16x128xi1>, vector<1x16x128xf32>
      %1277 = arith.subf %1101, %1276 : vector<1x16x128xf32>
      %1278 = math.absf %1277 : vector<1x16x128xf32>
      %cst_125 = arith.constant dense<0.000000e+00> : vector<1x128xf32>
      %1279 = vector.multi_reduction <add>, %1278, %cst_125 [1] : vector<1x16x128xf32> to vector<1x128xf32>
      %1280 = vector.shape_cast %1279 : vector<1x128xf32> to vector<1x1x128xf32>
      %1281 = arith.subf %1104, %1193 : vector<1x16x128xf32>
      %1282 = math.absf %1281 : vector<1x16x128xf32>
      %cst_126 = arith.constant dense<0.000000e+00> : vector<1x128xf32>
      %1283 = vector.multi_reduction <add>, %1282, %cst_126 [1] : vector<1x16x128xf32> to vector<1x128xf32>
      %1284 = vector.shape_cast %1283 : vector<1x128xf32> to vector<1x1x128xf32>
      %1285 = arith.mulf %1280, %1280 : vector<1x1x128xf32>
      %1286 = arith.mulf %1284, %1284 : vector<1x1x128xf32>
      %1287 = arith.addf %1285, %1286 : vector<1x1x128xf32>
      %cst_127 = arith.constant 5.000000e-01 : f32
      %1288 = vector.broadcast %cst_127 : f32 to vector<1x1x128xf32>
      %1289 = arith.cmpf ogt, %1110, %1288 : vector<1x1x128xf32>
      %1290 = vector.shape_cast %1289 : vector<1x1x128xi1> to vector<1x1x128xi1>
      %1291 = vector.broadcast %1290 : vector<1x1x128xi1> to vector<1x16x128xi1>
      %1292 = arith.select %1291, %1101, %1276 : vector<1x16x128xi1>, vector<1x16x128xf32>
      %1293 = vector.shape_cast %1289 : vector<1x1x128xi1> to vector<1x1x128xi1>
      %1294 = vector.broadcast %1293 : vector<1x1x128xi1> to vector<1x16x128xi1>
      %1295 = arith.select %1294, %1104, %1193 : vector<1x16x128xi1>, vector<1x16x128xf32>
      %cst_128 = arith.constant 1.000000e-03 : f32
      %1296 = vector.broadcast %cst_128 : f32 to vector<1x1x128xf32>
      %1297 = arith.cmpf ole, %1287, %1296 : vector<1x1x128xf32>
      %cst_129 = arith.constant 1.000000e+00 : f32
      %cst_130 = arith.constant 0.000000e+00 : f32
      %1298 = vector.broadcast %cst_129 : f32 to vector<1x1x128xf32>
      %1299 = vector.broadcast %cst_130 : f32 to vector<1x1x128xf32>
      %1300 = arith.select %1297, %1298, %1299 : vector<1x1x128xi1>, vector<1x1x128xf32>
      %1301 = arith.maximumf %1110, %1300 : vector<1x1x128xf32>
      %c5_i32_131 = arith.constant 5 : i32
      %1302 = arith.addi %arg6, %c5_i32_131 : i32
      scf.yield %1302, %1292, %1295, %1301 : i32, vector<1x16x128xf32>, vector<1x16x128xf32>, vector<1x1x128xf32>
    }
    %c1_i32_23 = arith.constant 1 : i32
    %71 = vector.broadcast %c1_i32_23 : i32 to vector<1x1x128xi32>
    %72 = arith.subi %3, %71 : vector<1x1x128xi32>
    %73 = vector.broadcast %72 : vector<1x1x128xi32> to vector<1x16x128xi32>
    %74 = arith.cmpi slt, %35, %73 : vector<1x16x128xi32>
    %75 = vector.extract_strided_slice %70#1 {offsets = [0, 0, 0], sizes = [1, 1, 128], strides = [1, 1, 1]} : vector<1x16x128xf32> to vector<1x1x128xf32>
    %c1_i32_24 = arith.constant 1 : i32
    %76 = vector.broadcast %c1_i32_24 : i32 to vector<1x1x128xi32>
    %77 = arith.subi %1, %76 : vector<1x1x128xi32>
    %c0_i32_25 = arith.constant 0 : i32
    %78 = vector.broadcast %c0_i32_25 : i32 to vector<1x1x128xi32>
    %79 = arith.cmpi sgt, %77, %78 : vector<1x1x128xi32>
    %80 = vector.broadcast %79 : vector<1x1x128xi1> to vector<1x16x128xi1>
    %81 = arith.andi %80, %74 : vector<1x16x128xi1>
    %82 = vector.extract_strided_slice %19 {offsets = [0, 0, 0], sizes = [1, 16, 128], strides = [1, 1, 1]} : vector<16x16x128xf32> to vector<1x16x128xf32>
    %83 = vector.broadcast %75 : vector<1x1x128xf32> to vector<1x16x128xf32>
    %84 = arith.mulf %82, %83 : vector<1x16x128xf32>
    %85 = arith.mulf %84, %70#2 : vector<1x16x128xf32>
    %cst_26 = arith.constant 0.000000e+00 : f32
    %86 = vector.broadcast %cst_26 : f32 to vector<1x16x128xf32>
    %87 = arith.select %81, %85, %86 : vector<1x16x128xi1>, vector<1x16x128xf32>
    %88 = vector.shape_cast %87 : vector<1x16x128xf32> to vector<16x128xf32>
    %c0_27 = arith.constant 0 : index
    %c0_28 = arith.constant 0 : index
    %c0_29 = arith.constant 0 : index
    %89 = vector.load %arg5[%c0_27, %c0_28, %c0_29] : memref<16x16x128xf32, #tpu.memory_space<vmem>>, vector<1x16x128xf32>
    %90 = vector.shape_cast %89 : vector<1x16x128xf32> to vector<16x128xf32>
    %91 = vector.shape_cast %88 : vector<16x128xf32> to vector<1x16x128xf32>
    tpu.vector_store %arg5[%c0_27, %c0_28, %c0_29], %91 {strides = array<i32>} : memref<16x16x128xf32, #tpu.memory_space<vmem>>, vector<1x16x128xf32>,
    %92 = vector.extract_strided_slice %70#1 {offsets = [0, 1, 0], sizes = [1, 1, 128], strides = [1, 1, 1]} : vector<1x16x128xf32> to vector<1x1x128xf32>
    %c1_i32_30 = arith.constant 1 : i32
    %93 = vector.broadcast %c1_i32_30 : i32 to vector<1x1x128xi32>
    %94 = arith.subi %1, %93 : vector<1x1x128xi32>
    %c1_i32_31 = arith.constant 1 : i32
    %95 = vector.broadcast %c1_i32_31 : i32 to vector<1x1x128xi32>
    %96 = arith.cmpi sgt, %94, %95 : vector<1x1x128xi32>
    %97 = vector.broadcast %96 : vector<1x1x128xi1> to vector<1x16x128xi1>
    %98 = arith.andi %97, %74 : vector<1x16x128xi1>
    %99 = vector.extract_strided_slice %19 {offsets = [1, 0, 0], sizes = [1, 16, 128], strides = [1, 1, 1]} : vector<16x16x128xf32> to vector<1x16x128xf32>
    %100 = vector.broadcast %92 : vector<1x1x128xf32> to vector<1x16x128xf32>
    %101 = arith.mulf %99, %100 : vector<1x16x128xf32>
    %102 = arith.mulf %101, %70#2 : vector<1x16x128xf32>
    %cst_32 = arith.constant 0.000000e+00 : f32
    %103 = vector.broadcast %cst_32 : f32 to vector<1x16x128xf32>
    %104 = arith.select %98, %102, %103 : vector<1x16x128xi1>, vector<1x16x128xf32>
    %105 = vector.shape_cast %104 : vector<1x16x128xf32> to vector<16x128xf32>
    %c1 = arith.constant 1 : index
    %c0_33 = arith.constant 0 : index
    %c0_34 = arith.constant 0 : index
    %106 = vector.load %arg5[%c1, %c0_33, %c0_34] : memref<16x16x128xf32, #tpu.memory_space<vmem>>, vector<1x16x128xf32>
    %107 = vector.shape_cast %106 : vector<1x16x128xf32> to vector<16x128xf32>
    %108 = vector.shape_cast %105 : vector<16x128xf32> to vector<1x16x128xf32>
    tpu.vector_store %arg5[%c1, %c0_33, %c0_34], %108 {strides = array<i32>} : memref<16x16x128xf32, #tpu.memory_space<vmem>>, vector<1x16x128xf32>,
    %109 = vector.extract_strided_slice %70#1 {offsets = [0, 2, 0], sizes = [1, 1, 128], strides = [1, 1, 1]} : vector<1x16x128xf32> to vector<1x1x128xf32>
    %c1_i32_35 = arith.constant 1 : i32
    %110 = vector.broadcast %c1_i32_35 : i32 to vector<1x1x128xi32>
    %111 = arith.subi %1, %110 : vector<1x1x128xi32>
    %c2_i32 = arith.constant 2 : i32
    %112 = vector.broadcast %c2_i32 : i32 to vector<1x1x128xi32>
    %113 = arith.cmpi sgt, %111, %112 : vector<1x1x128xi32>
    %114 = vector.broadcast %113 : vector<1x1x128xi1> to vector<1x16x128xi1>
    %115 = arith.andi %114, %74 : vector<1x16x128xi1>
    %116 = vector.extract_strided_slice %19 {offsets = [2, 0, 0], sizes = [1, 16, 128], strides = [1, 1, 1]} : vector<16x16x128xf32> to vector<1x16x128xf32>
    %117 = vector.broadcast %109 : vector<1x1x128xf32> to vector<1x16x128xf32>
    %118 = arith.mulf %116, %117 : vector<1x16x128xf32>
    %119 = arith.mulf %118, %70#2 : vector<1x16x128xf32>
    %cst_36 = arith.constant 0.000000e+00 : f32
    %120 = vector.broadcast %cst_36 : f32 to vector<1x16x128xf32>
    %121 = arith.select %115, %119, %120 : vector<1x16x128xi1>, vector<1x16x128xf32>
    %122 = vector.shape_cast %121 : vector<1x16x128xf32> to vector<16x128xf32>
    %c2 = arith.constant 2 : index
    %c0_37 = arith.constant 0 : index
    %c0_38 = arith.constant 0 : index
    %123 = vector.load %arg5[%c2, %c0_37, %c0_38] : memref<16x16x128xf32, #tpu.memory_space<vmem>>, vector<1x16x128xf32>
    %124 = vector.shape_cast %123 : vector<1x16x128xf32> to vector<16x128xf32>
    %125 = vector.shape_cast %122 : vector<16x128xf32> to vector<1x16x128xf32>
    tpu.vector_store %arg5[%c2, %c0_37, %c0_38], %125 {strides = array<i32>} : memref<16x16x128xf32, #tpu.memory_space<vmem>>, vector<1x16x128xf32>,
    %126 = vector.extract_strided_slice %70#1 {offsets = [0, 3, 0], sizes = [1, 1, 128], strides = [1, 1, 1]} : vector<1x16x128xf32> to vector<1x1x128xf32>
    %c1_i32_39 = arith.constant 1 : i32
    %127 = vector.broadcast %c1_i32_39 : i32 to vector<1x1x128xi32>
    %128 = arith.subi %1, %127 : vector<1x1x128xi32>
    %c3_i32 = arith.constant 3 : i32
    %129 = vector.broadcast %c3_i32 : i32 to vector<1x1x128xi32>
    %130 = arith.cmpi sgt, %128, %129 : vector<1x1x128xi32>
    %131 = vector.broadcast %130 : vector<1x1x128xi1> to vector<1x16x128xi1>
    %132 = arith.andi %131, %74 : vector<1x16x128xi1>
    %133 = vector.extract_strided_slice %19 {offsets = [3, 0, 0], sizes = [1, 16, 128], strides = [1, 1, 1]} : vector<16x16x128xf32> to vector<1x16x128xf32>
    %134 = vector.broadcast %126 : vector<1x1x128xf32> to vector<1x16x128xf32>
    %135 = arith.mulf %133, %134 : vector<1x16x128xf32>
    %136 = arith.mulf %135, %70#2 : vector<1x16x128xf32>
    %cst_40 = arith.constant 0.000000e+00 : f32
    %137 = vector.broadcast %cst_40 : f32 to vector<1x16x128xf32>
    %138 = arith.select %132, %136, %137 : vector<1x16x128xi1>, vector<1x16x128xf32>
    %139 = vector.shape_cast %138 : vector<1x16x128xf32> to vector<16x128xf32>
    %c3 = arith.constant 3 : index
    %c0_41 = arith.constant 0 : index
    %c0_42 = arith.constant 0 : index
    %140 = vector.load %arg5[%c3, %c0_41, %c0_42] : memref<16x16x128xf32, #tpu.memory_space<vmem>>, vector<1x16x128xf32>
    %141 = vector.shape_cast %140 : vector<1x16x128xf32> to vector<16x128xf32>
    %142 = vector.shape_cast %139 : vector<16x128xf32> to vector<1x16x128xf32>
    tpu.vector_store %arg5[%c3, %c0_41, %c0_42], %142 {strides = array<i32>} : memref<16x16x128xf32, #tpu.memory_space<vmem>>, vector<1x16x128xf32>,
    %143 = vector.extract_strided_slice %70#1 {offsets = [0, 4, 0], sizes = [1, 1, 128], strides = [1, 1, 1]} : vector<1x16x128xf32> to vector<1x1x128xf32>
    %c1_i32_43 = arith.constant 1 : i32
    %144 = vector.broadcast %c1_i32_43 : i32 to vector<1x1x128xi32>
    %145 = arith.subi %1, %144 : vector<1x1x128xi32>
    %c4_i32 = arith.constant 4 : i32
    %146 = vector.broadcast %c4_i32 : i32 to vector<1x1x128xi32>
    %147 = arith.cmpi sgt, %145, %146 : vector<1x1x128xi32>
    %148 = vector.broadcast %147 : vector<1x1x128xi1> to vector<1x16x128xi1>
    %149 = arith.andi %148, %74 : vector<1x16x128xi1>
    %150 = vector.extract_strided_slice %19 {offsets = [4, 0, 0], sizes = [1, 16, 128], strides = [1, 1, 1]} : vector<16x16x128xf32> to vector<1x16x128xf32>
    %151 = vector.broadcast %143 : vector<1x1x128xf32> to vector<1x16x128xf32>
    %152 = arith.mulf %150, %151 : vector<1x16x128xf32>
    %153 = arith.mulf %152, %70#2 : vector<1x16x128xf32>
    %cst_44 = arith.constant 0.000000e+00 : f32
    %154 = vector.broadcast %cst_44 : f32 to vector<1x16x128xf32>
    %155 = arith.select %149, %153, %154 : vector<1x16x128xi1>, vector<1x16x128xf32>
    %156 = vector.shape_cast %155 : vector<1x16x128xf32> to vector<16x128xf32>
    %c4 = arith.constant 4 : index
    %c0_45 = arith.constant 0 : index
    %c0_46 = arith.constant 0 : index
    %157 = vector.load %arg5[%c4, %c0_45, %c0_46] : memref<16x16x128xf32, #tpu.memory_space<vmem>>, vector<1x16x128xf32>
    %158 = vector.shape_cast %157 : vector<1x16x128xf32> to vector<16x128xf32>
    %159 = vector.shape_cast %156 : vector<16x128xf32> to vector<1x16x128xf32>
    tpu.vector_store %arg5[%c4, %c0_45, %c0_46], %159 {strides = array<i32>} : memref<16x16x128xf32, #tpu.memory_space<vmem>>, vector<1x16x128xf32>,
    %160 = vector.extract_strided_slice %70#1 {offsets = [0, 5, 0], sizes = [1, 1, 128], strides = [1, 1, 1]} : vector<1x16x128xf32> to vector<1x1x128xf32>
    %c1_i32_47 = arith.constant 1 : i32
    %161 = vector.broadcast %c1_i32_47 : i32 to vector<1x1x128xi32>
    %162 = arith.subi %1, %161 : vector<1x1x128xi32>
    %c5_i32 = arith.constant 5 : i32
    %163 = vector.broadcast %c5_i32 : i32 to vector<1x1x128xi32>
    %164 = arith.cmpi sgt, %162, %163 : vector<1x1x128xi32>
    %165 = vector.broadcast %164 : vector<1x1x128xi1> to vector<1x16x128xi1>
    %166 = arith.andi %165, %74 : vector<1x16x128xi1>
    %167 = vector.extract_strided_slice %19 {offsets = [5, 0, 0], sizes = [1, 16, 128], strides = [1, 1, 1]} : vector<16x16x128xf32> to vector<1x16x128xf32>
    %168 = vector.broadcast %160 : vector<1x1x128xf32> to vector<1x16x128xf32>
    %169 = arith.mulf %167, %168 : vector<1x16x128xf32>
    %170 = arith.mulf %169, %70#2 : vector<1x16x128xf32>
    %cst_48 = arith.constant 0.000000e+00 : f32
    %171 = vector.broadcast %cst_48 : f32 to vector<1x16x128xf32>
    %172 = arith.select %166, %170, %171 : vector<1x16x128xi1>, vector<1x16x128xf32>
    %173 = vector.shape_cast %172 : vector<1x16x128xf32> to vector<16x128xf32>
    %c5 = arith.constant 5 : index
    %c0_49 = arith.constant 0 : index
    %c0_50 = arith.constant 0 : index
    %174 = vector.load %arg5[%c5, %c0_49, %c0_50] : memref<16x16x128xf32, #tpu.memory_space<vmem>>, vector<1x16x128xf32>
    %175 = vector.shape_cast %174 : vector<1x16x128xf32> to vector<16x128xf32>
    %176 = vector.shape_cast %173 : vector<16x128xf32> to vector<1x16x128xf32>
    tpu.vector_store %arg5[%c5, %c0_49, %c0_50], %176 {strides = array<i32>} : memref<16x16x128xf32, #tpu.memory_space<vmem>>, vector<1x16x128xf32>,
    %177 = vector.extract_strided_slice %70#1 {offsets = [0, 6, 0], sizes = [1, 1, 128], strides = [1, 1, 1]} : vector<1x16x128xf32> to vector<1x1x128xf32>
    %c1_i32_51 = arith.constant 1 : i32
    %178 = vector.broadcast %c1_i32_51 : i32 to vector<1x1x128xi32>
    %179 = arith.subi %1, %178 : vector<1x1x128xi32>
    %c6_i32 = arith.constant 6 : i32
    %180 = vector.broadcast %c6_i32 : i32 to vector<1x1x128xi32>
    %181 = arith.cmpi sgt, %179, %180 : vector<1x1x128xi32>
    %182 = vector.broadcast %181 : vector<1x1x128xi1> to vector<1x16x128xi1>
    %183 = arith.andi %182, %74 : vector<1x16x128xi1>
    %184 = vector.extract_strided_slice %19 {offsets = [6, 0, 0], sizes = [1, 16, 128], strides = [1, 1, 1]} : vector<16x16x128xf32> to vector<1x16x128xf32>
    %185 = vector.broadcast %177 : vector<1x1x128xf32> to vector<1x16x128xf32>
    %186 = arith.mulf %184, %185 : vector<1x16x128xf32>
    %187 = arith.mulf %186, %70#2 : vector<1x16x128xf32>
    %cst_52 = arith.constant 0.000000e+00 : f32
    %188 = vector.broadcast %cst_52 : f32 to vector<1x16x128xf32>
    %189 = arith.select %183, %187, %188 : vector<1x16x128xi1>, vector<1x16x128xf32>
    %190 = vector.shape_cast %189 : vector<1x16x128xf32> to vector<16x128xf32>
    %c6 = arith.constant 6 : index
    %c0_53 = arith.constant 0 : index
    %c0_54 = arith.constant 0 : index
    %191 = vector.load %arg5[%c6, %c0_53, %c0_54] : memref<16x16x128xf32, #tpu.memory_space<vmem>>, vector<1x16x128xf32>
    %192 = vector.shape_cast %191 : vector<1x16x128xf32> to vector<16x128xf32>
    %193 = vector.shape_cast %190 : vector<16x128xf32> to vector<1x16x128xf32>
    tpu.vector_store %arg5[%c6, %c0_53, %c0_54], %193 {strides = array<i32>} : memref<16x16x128xf32, #tpu.memory_space<vmem>>, vector<1x16x128xf32>,
    %194 = vector.extract_strided_slice %70#1 {offsets = [0, 7, 0], sizes = [1, 1, 128], strides = [1, 1, 1]} : vector<1x16x128xf32> to vector<1x1x128xf32>
    %c1_i32_55 = arith.constant 1 : i32
    %195 = vector.broadcast %c1_i32_55 : i32 to vector<1x1x128xi32>
    %196 = arith.subi %1, %195 : vector<1x1x128xi32>
    %c7_i32 = arith.constant 7 : i32
    %197 = vector.broadcast %c7_i32 : i32 to vector<1x1x128xi32>
    %198 = arith.cmpi sgt, %196, %197 : vector<1x1x128xi32>
    %199 = vector.broadcast %198 : vector<1x1x128xi1> to vector<1x16x128xi1>
    %200 = arith.andi %199, %74 : vector<1x16x128xi1>
    %201 = vector.extract_strided_slice %19 {offsets = [7, 0, 0], sizes = [1, 16, 128], strides = [1, 1, 1]} : vector<16x16x128xf32> to vector<1x16x128xf32>
    %202 = vector.broadcast %194 : vector<1x1x128xf32> to vector<1x16x128xf32>
    %203 = arith.mulf %201, %202 : vector<1x16x128xf32>
    %204 = arith.mulf %203, %70#2 : vector<1x16x128xf32>
    %cst_56 = arith.constant 0.000000e+00 : f32
    %205 = vector.broadcast %cst_56 : f32 to vector<1x16x128xf32>
    %206 = arith.select %200, %204, %205 : vector<1x16x128xi1>, vector<1x16x128xf32>
    %207 = vector.shape_cast %206 : vector<1x16x128xf32> to vector<16x128xf32>
    %c7 = arith.constant 7 : index
    %c0_57 = arith.constant 0 : index
    %c0_58 = arith.constant 0 : index
    %208 = vector.load %arg5[%c7, %c0_57, %c0_58] : memref<16x16x128xf32, #tpu.memory_space<vmem>>, vector<1x16x128xf32>
    %209 = vector.shape_cast %208 : vector<1x16x128xf32> to vector<16x128xf32>
    %210 = vector.shape_cast %207 : vector<16x128xf32> to vector<1x16x128xf32>
    tpu.vector_store %arg5[%c7, %c0_57, %c0_58], %210 {strides = array<i32>} : memref<16x16x128xf32, #tpu.memory_space<vmem>>, vector<1x16x128xf32>,
    %211 = vector.extract_strided_slice %70#1 {offsets = [0, 8, 0], sizes = [1, 1, 128], strides = [1, 1, 1]} : vector<1x16x128xf32> to vector<1x1x128xf32>
    %c1_i32_59 = arith.constant 1 : i32
    %212 = vector.broadcast %c1_i32_59 : i32 to vector<1x1x128xi32>
    %213 = arith.subi %1, %212 : vector<1x1x128xi32>
    %c8_i32 = arith.constant 8 : i32
    %214 = vector.broadcast %c8_i32 : i32 to vector<1x1x128xi32>
    %215 = arith.cmpi sgt, %213, %214 : vector<1x1x128xi32>
    %216 = vector.broadcast %215 : vector<1x1x128xi1> to vector<1x16x128xi1>
    %217 = arith.andi %216, %74 : vector<1x16x128xi1>
    %218 = vector.extract_strided_slice %19 {offsets = [8, 0, 0], sizes = [1, 16, 128], strides = [1, 1, 1]} : vector<16x16x128xf32> to vector<1x16x128xf32>
    %219 = vector.broadcast %211 : vector<1x1x128xf32> to vector<1x16x128xf32>
    %220 = arith.mulf %218, %219 : vector<1x16x128xf32>
    %221 = arith.mulf %220, %70#2 : vector<1x16x128xf32>
    %cst_60 = arith.constant 0.000000e+00 : f32
    %222 = vector.broadcast %cst_60 : f32 to vector<1x16x128xf32>
    %223 = arith.select %217, %221, %222 : vector<1x16x128xi1>, vector<1x16x128xf32>
    %224 = vector.shape_cast %223 : vector<1x16x128xf32> to vector<16x128xf32>
    %c8 = arith.constant 8 : index
    %c0_61 = arith.constant 0 : index
    %c0_62 = arith.constant 0 : index
    %225 = vector.load %arg5[%c8, %c0_61, %c0_62] : memref<16x16x128xf32, #tpu.memory_space<vmem>>, vector<1x16x128xf32>
    %226 = vector.shape_cast %225 : vector<1x16x128xf32> to vector<16x128xf32>
    %227 = vector.shape_cast %224 : vector<16x128xf32> to vector<1x16x128xf32>
    tpu.vector_store %arg5[%c8, %c0_61, %c0_62], %227 {strides = array<i32>} : memref<16x16x128xf32, #tpu.memory_space<vmem>>, vector<1x16x128xf32>,
    %228 = vector.extract_strided_slice %70#1 {offsets = [0, 9, 0], sizes = [1, 1, 128], strides = [1, 1, 1]} : vector<1x16x128xf32> to vector<1x1x128xf32>
    %c1_i32_63 = arith.constant 1 : i32
    %229 = vector.broadcast %c1_i32_63 : i32 to vector<1x1x128xi32>
    %230 = arith.subi %1, %229 : vector<1x1x128xi32>
    %c9_i32 = arith.constant 9 : i32
    %231 = vector.broadcast %c9_i32 : i32 to vector<1x1x128xi32>
    %232 = arith.cmpi sgt, %230, %231 : vector<1x1x128xi32>
    %233 = vector.broadcast %232 : vector<1x1x128xi1> to vector<1x16x128xi1>
    %234 = arith.andi %233, %74 : vector<1x16x128xi1>
    %235 = vector.extract_strided_slice %19 {offsets = [9, 0, 0], sizes = [1, 16, 128], strides = [1, 1, 1]} : vector<16x16x128xf32> to vector<1x16x128xf32>
    %236 = vector.broadcast %228 : vector<1x1x128xf32> to vector<1x16x128xf32>
    %237 = arith.mulf %235, %236 : vector<1x16x128xf32>
    %238 = arith.mulf %237, %70#2 : vector<1x16x128xf32>
    %cst_64 = arith.constant 0.000000e+00 : f32
    %239 = vector.broadcast %cst_64 : f32 to vector<1x16x128xf32>
    %240 = arith.select %234, %238, %239 : vector<1x16x128xi1>, vector<1x16x128xf32>
    %241 = vector.shape_cast %240 : vector<1x16x128xf32> to vector<16x128xf32>
    %c9 = arith.constant 9 : index
    %c0_65 = arith.constant 0 : index
    %c0_66 = arith.constant 0 : index
    %242 = vector.load %arg5[%c9, %c0_65, %c0_66] : memref<16x16x128xf32, #tpu.memory_space<vmem>>, vector<1x16x128xf32>
    %243 = vector.shape_cast %242 : vector<1x16x128xf32> to vector<16x128xf32>
    %244 = vector.shape_cast %241 : vector<16x128xf32> to vector<1x16x128xf32>
    tpu.vector_store %arg5[%c9, %c0_65, %c0_66], %244 {strides = array<i32>} : memref<16x16x128xf32, #tpu.memory_space<vmem>>, vector<1x16x128xf32>,
    %245 = vector.extract_strided_slice %70#1 {offsets = [0, 10, 0], sizes = [1, 1, 128], strides = [1, 1, 1]} : vector<1x16x128xf32> to vector<1x1x128xf32>
    %c1_i32_67 = arith.constant 1 : i32
    %246 = vector.broadcast %c1_i32_67 : i32 to vector<1x1x128xi32>
    %247 = arith.subi %1, %246 : vector<1x1x128xi32>
    %c10_i32 = arith.constant 10 : i32
    %248 = vector.broadcast %c10_i32 : i32 to vector<1x1x128xi32>
    %249 = arith.cmpi sgt, %247, %248 : vector<1x1x128xi32>
    %250 = vector.broadcast %249 : vector<1x1x128xi1> to vector<1x16x128xi1>
    %251 = arith.andi %250, %74 : vector<1x16x128xi1>
    %252 = vector.extract_strided_slice %19 {offsets = [10, 0, 0], sizes = [1, 16, 128], strides = [1, 1, 1]} : vector<16x16x128xf32> to vector<1x16x128xf32>
    %253 = vector.broadcast %245 : vector<1x1x128xf32> to vector<1x16x128xf32>
    %254 = arith.mulf %252, %253 : vector<1x16x128xf32>
    %255 = arith.mulf %254, %70#2 : vector<1x16x128xf32>
    %cst_68 = arith.constant 0.000000e+00 : f32
    %256 = vector.broadcast %cst_68 : f32 to vector<1x16x128xf32>
    %257 = arith.select %251, %255, %256 : vector<1x16x128xi1>, vector<1x16x128xf32>
    %258 = vector.shape_cast %257 : vector<1x16x128xf32> to vector<16x128xf32>
    %c10 = arith.constant 10 : index
    %c0_69 = arith.constant 0 : index
    %c0_70 = arith.constant 0 : index
    %259 = vector.load %arg5[%c10, %c0_69, %c0_70] : memref<16x16x128xf32, #tpu.memory_space<vmem>>, vector<1x16x128xf32>
    %260 = vector.shape_cast %259 : vector<1x16x128xf32> to vector<16x128xf32>
    %261 = vector.shape_cast %258 : vector<16x128xf32> to vector<1x16x128xf32>
    tpu.vector_store %arg5[%c10, %c0_69, %c0_70], %261 {strides = array<i32>} : memref<16x16x128xf32, #tpu.memory_space<vmem>>, vector<1x16x128xf32>,
    %262 = vector.extract_strided_slice %70#1 {offsets = [0, 11, 0], sizes = [1, 1, 128], strides = [1, 1, 1]} : vector<1x16x128xf32> to vector<1x1x128xf32>
    %c1_i32_71 = arith.constant 1 : i32
    %263 = vector.broadcast %c1_i32_71 : i32 to vector<1x1x128xi32>
    %264 = arith.subi %1, %263 : vector<1x1x128xi32>
    %c11_i32 = arith.constant 11 : i32
    %265 = vector.broadcast %c11_i32 : i32 to vector<1x1x128xi32>
    %266 = arith.cmpi sgt, %264, %265 : vector<1x1x128xi32>
    %267 = vector.broadcast %266 : vector<1x1x128xi1> to vector<1x16x128xi1>
    %268 = arith.andi %267, %74 : vector<1x16x128xi1>
    %269 = vector.extract_strided_slice %19 {offsets = [11, 0, 0], sizes = [1, 16, 128], strides = [1, 1, 1]} : vector<16x16x128xf32> to vector<1x16x128xf32>
    %270 = vector.broadcast %262 : vector<1x1x128xf32> to vector<1x16x128xf32>
    %271 = arith.mulf %269, %270 : vector<1x16x128xf32>
    %272 = arith.mulf %271, %70#2 : vector<1x16x128xf32>
    %cst_72 = arith.constant 0.000000e+00 : f32
    %273 = vector.broadcast %cst_72 : f32 to vector<1x16x128xf32>
    %274 = arith.select %268, %272, %273 : vector<1x16x128xi1>, vector<1x16x128xf32>
    %275 = vector.shape_cast %274 : vector<1x16x128xf32> to vector<16x128xf32>
    %c11 = arith.constant 11 : index
    %c0_73 = arith.constant 0 : index
    %c0_74 = arith.constant 0 : index
    %276 = vector.load %arg5[%c11, %c0_73, %c0_74] : memref<16x16x128xf32, #tpu.memory_space<vmem>>, vector<1x16x128xf32>
    %277 = vector.shape_cast %276 : vector<1x16x128xf32> to vector<16x128xf32>
    %278 = vector.shape_cast %275 : vector<16x128xf32> to vector<1x16x128xf32>
    tpu.vector_store %arg5[%c11, %c0_73, %c0_74], %278 {strides = array<i32>} : memref<16x16x128xf32, #tpu.memory_space<vmem>>, vector<1x16x128xf32>,
    %279 = vector.extract_strided_slice %70#1 {offsets = [0, 12, 0], sizes = [1, 1, 128], strides = [1, 1, 1]} : vector<1x16x128xf32> to vector<1x1x128xf32>
    %c1_i32_75 = arith.constant 1 : i32
    %280 = vector.broadcast %c1_i32_75 : i32 to vector<1x1x128xi32>
    %281 = arith.subi %1, %280 : vector<1x1x128xi32>
    %c12_i32 = arith.constant 12 : i32
    %282 = vector.broadcast %c12_i32 : i32 to vector<1x1x128xi32>
    %283 = arith.cmpi sgt, %281, %282 : vector<1x1x128xi32>
    %284 = vector.broadcast %283 : vector<1x1x128xi1> to vector<1x16x128xi1>
    %285 = arith.andi %284, %74 : vector<1x16x128xi1>
    %286 = vector.extract_strided_slice %19 {offsets = [12, 0, 0], sizes = [1, 16, 128], strides = [1, 1, 1]} : vector<16x16x128xf32> to vector<1x16x128xf32>
    %287 = vector.broadcast %279 : vector<1x1x128xf32> to vector<1x16x128xf32>
    %288 = arith.mulf %286, %287 : vector<1x16x128xf32>
    %289 = arith.mulf %288, %70#2 : vector<1x16x128xf32>
    %cst_76 = arith.constant 0.000000e+00 : f32
    %290 = vector.broadcast %cst_76 : f32 to vector<1x16x128xf32>
    %291 = arith.select %285, %289, %290 : vector<1x16x128xi1>, vector<1x16x128xf32>
    %292 = vector.shape_cast %291 : vector<1x16x128xf32> to vector<16x128xf32>
    %c12 = arith.constant 12 : index
    %c0_77 = arith.constant 0 : index
    %c0_78 = arith.constant 0 : index
    %293 = vector.load %arg5[%c12, %c0_77, %c0_78] : memref<16x16x128xf32, #tpu.memory_space<vmem>>, vector<1x16x128xf32>
    %294 = vector.shape_cast %293 : vector<1x16x128xf32> to vector<16x128xf32>
    %295 = vector.shape_cast %292 : vector<16x128xf32> to vector<1x16x128xf32>
    tpu.vector_store %arg5[%c12, %c0_77, %c0_78], %295 {strides = array<i32>} : memref<16x16x128xf32, #tpu.memory_space<vmem>>, vector<1x16x128xf32>,
    %296 = vector.extract_strided_slice %70#1 {offsets = [0, 13, 0], sizes = [1, 1, 128], strides = [1, 1, 1]} : vector<1x16x128xf32> to vector<1x1x128xf32>
    %c1_i32_79 = arith.constant 1 : i32
    %297 = vector.broadcast %c1_i32_79 : i32 to vector<1x1x128xi32>
    %298 = arith.subi %1, %297 : vector<1x1x128xi32>
    %c13_i32 = arith.constant 13 : i32
    %299 = vector.broadcast %c13_i32 : i32 to vector<1x1x128xi32>
    %300 = arith.cmpi sgt, %298, %299 : vector<1x1x128xi32>
    %301 = vector.broadcast %300 : vector<1x1x128xi1> to vector<1x16x128xi1>
    %302 = arith.andi %301, %74 : vector<1x16x128xi1>
    %303 = vector.extract_strided_slice %19 {offsets = [13, 0, 0], sizes = [1, 16, 128], strides = [1, 1, 1]} : vector<16x16x128xf32> to vector<1x16x128xf32>
    %304 = vector.broadcast %296 : vector<1x1x128xf32> to vector<1x16x128xf32>
    %305 = arith.mulf %303, %304 : vector<1x16x128xf32>
    %306 = arith.mulf %305, %70#2 : vector<1x16x128xf32>
    %cst_80 = arith.constant 0.000000e+00 : f32
    %307 = vector.broadcast %cst_80 : f32 to vector<1x16x128xf32>
    %308 = arith.select %302, %306, %307 : vector<1x16x128xi1>, vector<1x16x128xf32>
    %309 = vector.shape_cast %308 : vector<1x16x128xf32> to vector<16x128xf32>
    %c13 = arith.constant 13 : index
    %c0_81 = arith.constant 0 : index
    %c0_82 = arith.constant 0 : index
    %310 = vector.load %arg5[%c13, %c0_81, %c0_82] : memref<16x16x128xf32, #tpu.memory_space<vmem>>, vector<1x16x128xf32>
    %311 = vector.shape_cast %310 : vector<1x16x128xf32> to vector<16x128xf32>
    %312 = vector.shape_cast %309 : vector<16x128xf32> to vector<1x16x128xf32>
    tpu.vector_store %arg5[%c13, %c0_81, %c0_82], %312 {strides = array<i32>} : memref<16x16x128xf32, #tpu.memory_space<vmem>>, vector<1x16x128xf32>,
    %313 = vector.extract_strided_slice %70#1 {offsets = [0, 14, 0], sizes = [1, 1, 128], strides = [1, 1, 1]} : vector<1x16x128xf32> to vector<1x1x128xf32>
    %c1_i32_83 = arith.constant 1 : i32
    %314 = vector.broadcast %c1_i32_83 : i32 to vector<1x1x128xi32>
    %315 = arith.subi %1, %314 : vector<1x1x128xi32>
    %c14_i32 = arith.constant 14 : i32
    %316 = vector.broadcast %c14_i32 : i32 to vector<1x1x128xi32>
    %317 = arith.cmpi sgt, %315, %316 : vector<1x1x128xi32>
    %318 = vector.broadcast %317 : vector<1x1x128xi1> to vector<1x16x128xi1>
    %319 = arith.andi %318, %74 : vector<1x16x128xi1>
    %320 = vector.extract_strided_slice %19 {offsets = [14, 0, 0], sizes = [1, 16, 128], strides = [1, 1, 1]} : vector<16x16x128xf32> to vector<1x16x128xf32>
    %321 = vector.broadcast %313 : vector<1x1x128xf32> to vector<1x16x128xf32>
    %322 = arith.mulf %320, %321 : vector<1x16x128xf32>
    %323 = arith.mulf %322, %70#2 : vector<1x16x128xf32>
    %cst_84 = arith.constant 0.000000e+00 : f32
    %324 = vector.broadcast %cst_84 : f32 to vector<1x16x128xf32>
    %325 = arith.select %319, %323, %324 : vector<1x16x128xi1>, vector<1x16x128xf32>
    %326 = vector.shape_cast %325 : vector<1x16x128xf32> to vector<16x128xf32>
    %c14 = arith.constant 14 : index
    %c0_85 = arith.constant 0 : index
    %c0_86 = arith.constant 0 : index
    %327 = vector.load %arg5[%c14, %c0_85, %c0_86] : memref<16x16x128xf32, #tpu.memory_space<vmem>>, vector<1x16x128xf32>
    %328 = vector.shape_cast %327 : vector<1x16x128xf32> to vector<16x128xf32>
    %329 = vector.shape_cast %326 : vector<16x128xf32> to vector<1x16x128xf32>
    tpu.vector_store %arg5[%c14, %c0_85, %c0_86], %329 {strides = array<i32>} : memref<16x16x128xf32, #tpu.memory_space<vmem>>, vector<1x16x128xf32>,
    %330 = vector.extract_strided_slice %70#1 {offsets = [0, 15, 0], sizes = [1, 1, 128], strides = [1, 1, 1]} : vector<1x16x128xf32> to vector<1x1x128xf32>
    %c1_i32_87 = arith.constant 1 : i32
    %331 = vector.broadcast %c1_i32_87 : i32 to vector<1x1x128xi32>
    %332 = arith.subi %1, %331 : vector<1x1x128xi32>
    %c15_i32 = arith.constant 15 : i32
    %333 = vector.broadcast %c15_i32 : i32 to vector<1x1x128xi32>
    %334 = arith.cmpi sgt, %332, %333 : vector<1x1x128xi32>
    %335 = vector.broadcast %334 : vector<1x1x128xi1> to vector<1x16x128xi1>
    %336 = arith.andi %335, %74 : vector<1x16x128xi1>
    %337 = vector.extract_strided_slice %19 {offsets = [15, 0, 0], sizes = [1, 16, 128], strides = [1, 1, 1]} : vector<16x16x128xf32> to vector<1x16x128xf32>
    %338 = vector.broadcast %330 : vector<1x1x128xf32> to vector<1x16x128xf32>
    %339 = arith.mulf %337, %338 : vector<1x16x128xf32>
    %340 = arith.mulf %339, %70#2 : vector<1x16x128xf32>
    %cst_88 = arith.constant 0.000000e+00 : f32
    %341 = vector.broadcast %cst_88 : f32 to vector<1x16x128xf32>
    %342 = arith.select %336, %340, %341 : vector<1x16x128xi1>, vector<1x16x128xf32>
    %343 = vector.shape_cast %342 : vector<1x16x128xf32> to vector<16x128xf32>
    %c15 = arith.constant 15 : index
    %c0_89 = arith.constant 0 : index
    %c0_90 = arith.constant 0 : index
    %344 = vector.load %arg5[%c15, %c0_89, %c0_90] : memref<16x16x128xf32, #tpu.memory_space<vmem>>, vector<1x16x128xf32>
    %345 = vector.shape_cast %344 : vector<1x16x128xf32> to vector<16x128xf32>
    %346 = vector.shape_cast %343 : vector<16x128xf32> to vector<1x16x128xf32>
    tpu.vector_store %arg5[%c15, %c0_89, %c0_90], %346 {strides = array<i32>} : memref<16x16x128xf32, #tpu.memory_space<vmem>>, vector<1x16x128xf32>,
    return
  }
  func.func @transform_0(%arg0: i32) -> (i32, i32) {
    %c0_i32 = arith.constant 0 : i32
    %c0_i32_0 = arith.constant 0 : i32
    return %c0_i32, %arg0 : i32, i32
  }
  func.func @transform_1(%arg0: i32) -> (i32, i32) {
    %c0_i32 = arith.constant 0 : i32
    %c0_i32_0 = arith.constant 0 : i32
    return %c0_i32, %arg0 : i32, i32
  }
  func.func @transform_2(%arg0: i32) -> (i32, i32, i32) {
    %c0_i32 = arith.constant 0 : i32
    %c0_i32_0 = arith.constant 0 : i32
    %c0_i32_1 = arith.constant 0 : i32
    return %c0_i32, %c0_i32_0, %arg0 : i32, i32, i32
  }
  func.func @transform_3(%arg0: i32) -> (i32, i32, i32) {
    %c0_i32 = arith.constant 0 : i32
    %c0_i32_0 = arith.constant 0 : i32
    %c0_i32_1 = arith.constant 0 : i32
    return %c0_i32, %c0_i32_0, %arg0 : i32, i32, i32
  }
  func.func @transform_4(%arg0: i32) -> (i32, i32, i32) {
    %c0_i32 = arith.constant 0 : i32
    %c0_i32_0 = arith.constant 0 : i32
    %c0_i32_1 = arith.constant 0 : i32
    return %c0_i32, %c0_i32_0, %arg0 : i32, i32, i32
  }
}

</mosaic_0001>

<llo_original>
// kernel: tpu_custom_call.1
$region0: #{tpu_custom_call.1}
  #allocation0 [shape = 'u32[]', space=smem, size = 0x4, offset = 0x4, fixed_abs, tag = 'smem constant byte address 0x4 - core index']
  #allocation1 [shape = 'u32[144,128]{1,0:T(1,128)}', space=vmem, size = 0x12000, scoped, tag = 'internal scratch']
  %s0 = inlined_call_operand.hbm [shape: s32[1,128], index: 0, kind: input, shape index: {}]
  %s1 = inlined_call_operand.vmem [shape: s32[1,128], index: 1, kind: input, shape index: {}]
  %s2 = inlined_call_operand.hbm [shape: f32[16,16,128], index: 2, kind: input, shape index: {}]
  %s3 = inlined_call_operand.hbm [shape: f32[16,16,128], index: 3, kind: input, shape index: {}]
  %s4 = inlined_call_operand.hbm [shape: f32[16,16,128], index: 4, kind: output, shape index: {}]
  %s5 = sld [smem:[#allocation0]]
  $region45: #{tpu_custom_call.1} parent=0
    _
  %s7 = ssub.s32 1, %s5
  %s8 = scalar_select 0, %s7, %s5
  $region1: #{tpu_custom_call.1} parent=0
    #allocation2 [shape = 'u8[512]{0}', space=vmem, size = 0x400, scoped, tag = 'input window, operand 0, single buffered']
    #allocation3 [shape = 's32[1]{0}', space=sflag, size = 0x4, scoped, tag = 'scoped memory for tpu_custom_call.1']
    #allocation4 [shape = 's32[1]{0}', space=sflag, size = 0x4, scoped, tag = 'scoped memory for tpu_custom_call.1']
    #allocation5 [shape = 'u8[131072]{0}', space=vmem, size = 0x20000, scoped, tag = 'input window, operand 2, single buffered']
    #allocation6 [shape = 's32[1]{0}', space=sflag, size = 0x4, scoped, tag = 'scoped memory for tpu_custom_call.1']
    #allocation7 [shape = 'u8[131072]{0}', space=vmem, size = 0x20000, scoped, tag = 'input window, operand 3, single buffered']
    #allocation8 [shape = 'u8[131072]{0}', space=vmem, size = 0x20000, scoped, tag = 'output window, operand 0, single buffered']
    %9 = vsyncpa [#allocation3], 0
    %10 = vsyncpa [#allocation6], 0
    %11 = vsyncpa [#allocation4], 0
    // Predicated region
    $region2: #{tpu_custom_call.1} parent=1 // pred_check
      _
    $region3: #{tpu_custom_call.1} parent=1 // pred_check_branch
      %13 = sbr.rel (0) target = $region5
    $region4: #{tpu_custom_call.1} parent=1 // pred_region
      %s15 = ssub.s32 16, 16
      %16 = vsyncadd [#allocation3], %s15
      %s18 = sshll.u32 [#allocation2], 4
      %s19 = int_to_ptr.vmem [resolvable:$true] %s18
      %21 = dma.hbm_to_vmem [thread:$0]  %s0, 16, %s19, [#allocation3]
    $region5: #{tpu_custom_call.1} parent=1 // pred_fallthru
      _
    // Predicated region
    $region6: #{tpu_custom_call.1} parent=1 // pred_check
      _
    $region7: #{tpu_custom_call.1} parent=1 // pred_check_branch
      %23 = sbr.rel (0) target = $region9
    $region8: #{tpu_custom_call.1} parent=1 // pred_region
      _
    $region9: #{tpu_custom_call.1} parent=1 // pred_fallthru
      _
    // Predicated region
    $region10: #{tpu_custom_call.1} parent=1 // pred_check
      _
    $region11: #{tpu_custom_call.1} parent=1 // pred_check_branch
      %25 = sbr.rel (0) target = $region13
    $region12: #{tpu_custom_call.1} parent=1 // pred_region
      %s27 = ssub.s32 4096, 4096
      %28 = vsyncadd [#allocation6], %s27
      %s29 = sshll.u32 [#allocation5], 4
      %s30 = int_to_ptr.vmem [resolvable:$true] %s29
      %35 = dma.hbm_to_vmem [thread:$0]  %s2, 4096, %s30, [#allocation6], 128, 128, 8
    $region13: #{tpu_custom_call.1} parent=1 // pred_fallthru
      _
    // Predicated region
    $region14: #{tpu_custom_call.1} parent=1 // pred_check
      _
    $region15: #{tpu_custom_call.1} parent=1 // pred_check_branch
      %37 = sbr.rel (0) target = $region17
    $region16: #{tpu_custom_call.1} parent=1 // pred_region
      %s39 = ssub.s32 4096, 4096
      %40 = vsyncadd [#allocation6], %s39
      %s41 = sshll.u32 [#allocation7], 4
      %s42 = int_to_ptr.vmem [resolvable:$true] %s41
      %47 = dma.hbm_to_vmem [thread:$0]  %s3, 4096, %s42, [#allocation6], 128, 128, 8
    $region17: #{tpu_custom_call.1} parent=1 // pred_fallthru
      _
    // Predicated region
    $region18: #{tpu_custom_call.1} parent=1 // pred_check
      _
    $region19: #{tpu_custom_call.1} parent=1 // pred_check_branch
      %49 = sbr.rel (0) target = $region21
    $region20: #{tpu_custom_call.1} parent=1 // pred_region
      %50 = dma.done [#allocation3], 16
    $region21: #{tpu_custom_call.1} parent=1 // pred_fallthru
      _
    // Predicated region
    $region22: #{tpu_custom_call.1} parent=1 // pred_check
      _
    $region23: #{tpu_custom_call.1} parent=1 // pred_check_branch
      %52 = sbr.rel (0) target = $region25
    $region24: #{tpu_custom_call.1} parent=1 // pred_region
      %53 = dma.done [#allocation6], 4096
    $region25: #{tpu_custom_call.1} parent=1 // pred_fallthru
      _
    // Predicated region
    $region26: #{tpu_custom_call.1} parent=1 // pred_check
      _
    $region27: #{tpu_custom_call.1} parent=1 // pred_check_branch
      %55 = sbr.rel (0) target = $region29
    $region28: #{tpu_custom_call.1} parent=1 // pred_region
      %56 = dma.done [#allocation6], 4096
    $region29: #{tpu_custom_call.1} parent=1 // pred_fallthru
      _
    %v57 = vld [vmem:[#allocation2] sm:$0x1]
    %v58 = vld [vmem:[%s1] sm:$0x1]
    %v59 = vcvt.s32.f32 %v57
    %v60 = vcvt.s32.f32 %v58
    %v61 = vlaneseq
    %v62 = vshrl.u32 %v61, 7
    %v63 = vadd.s32 %v62, 8
    %vm64 = vcmp.gt.s32.totalorder %v57, 0
    %vm65 = vcmp.gt.s32.totalorder %v57, 1
    %vm66 = vcmp.gt.s32.totalorder %v57, 2
    %vm67 = vcmp.gt.s32.totalorder %v57, 3
    %vm68 = vcmp.gt.s32.totalorder %v57, 4
    %vm69 = vcmp.gt.s32.totalorder %v57, 5
    %vm70 = vcmp.gt.s32.totalorder %v57, 6
    %vm71 = vcmp.gt.s32.totalorder %v57, 7
    %vm72 = vcmp.gt.s32.totalorder %v57, 8
    %vm73 = vcmp.gt.s32.totalorder %v57, 9
    %vm74 = vcmp.gt.s32.totalorder %v57, 10
    %vm75 = vcmp.gt.s32.totalorder %v57, 11
    %vm76 = vcmp.gt.s32.totalorder %v57, 12
    %vm77 = vcmp.gt.s32.totalorder %v57, 13
    %vm78 = vcmp.gt.s32.totalorder %v57, 14
    %vm79 = vcmp.gt.s32.totalorder %v57, 15
    %v80 = vlaneseq
    %v81 = vshrl.u32 %v80, 7
    %v82 = vsub.s32 0, %v81
    %v83 = vrot.slane %v58, %v82
    %vm84 = vcmp.lt.s32.totalorder %v62, %v83
    %vm85 = vcmp.lt.s32.totalorder %v63, %v83
    %v86 = vsel %vm64, 1, 0
    %v87 = vsel %vm65, 1, 0
    %v88 = vsel %vm66, 1, 0
    %v89 = vsel %vm67, 1, 0
    %v90 = vsel %vm68, 1, 0
    %v91 = vsel %vm69, 1, 0
    %v92 = vsel %vm70, 1, 0
    %v93 = vsel %vm71, 1, 0
    %v94 = vsel %vm72, 1, 0
    %v95 = vsel %vm73, 1, 0
    %v96 = vsel %vm74, 1, 0
    %v97 = vsel %vm75, 1, 0
    %v98 = vsel %vm76, 1, 0
    %v99 = vsel %vm77, 1, 0
    %v100 = vsel %vm78, 1, 0
    %v101 = vsel %vm79, 1, 0
    %v102 = vlaneseq
    %v103 = vshrl.u32 %v102, 7
    %v104 = vsub.s32 0, %v103
    %v105 = vrot.slane %v86, %v104
    %v106 = vlaneseq
    %v107 = vshrl.u32 %v106, 7
    %v108 = vsub.s32 0, %v107
    %v109 = vrot.slane %v87, %v108
    %v110 = vlaneseq
    %v111 = vshrl.u32 %v110, 7
    %v112 = vsub.s32 0, %v111
    %v113 = vrot.slane %v88, %v112
    %v114 = vlaneseq
    %v115 = vshrl.u32 %v114, 7
    %v116 = vsub.s32 0, %v115
    %v117 = vrot.slane %v89, %v116
    %v118 = vlaneseq
    %v119 = vshrl.u32 %v118, 7
    %v120 = vsub.s32 0, %v119
    %v121 = vrot.slane %v90, %v120
    %v122 = vlaneseq
    %v123 = vshrl.u32 %v122, 7
    %v124 = vsub.s32 0, %v123
    %v125 = vrot.slane %v91, %v124
    %v126 = vlaneseq
    %v127 = vshrl.u32 %v126, 7
    %v128 = vsub.s32 0, %v127
    %v129 = vrot.slane %v92, %v128
    %v130 = vlaneseq
    %v131 = vshrl.u32 %v130, 7
    %v132 = vsub.s32 0, %v131
    %v133 = vrot.slane %v93, %v132
    %v134 = vlaneseq
    %v135 = vshrl.u32 %v134, 7
    %v136 = vsub.s32 0, %v135
    %v137 = vrot.slane %v94, %v136
    %v138 = vlaneseq
    %v139 = vshrl.u32 %v138, 7
    %v140 = vsub.s32 0, %v139
    %v141 = vrot.slane %v95, %v140
    %v142 = vlaneseq
    %v143 = vshrl.u32 %v142, 7
    %v144 = vsub.s32 0, %v143
    %v145 = vrot.slane %v96, %v144
    %v146 = vlaneseq
    %v147 = vshrl.u32 %v146, 7
    %v148 = vsub.s32 0, %v147
    %v149 = vrot.slane %v97, %v148
    %v150 = vlaneseq
    %v151 = vshrl.u32 %v150, 7
    %v152 = vsub.s32 0, %v151
    %v153 = vrot.slane %v98, %v152
    %v154 = vlaneseq
    %v155 = vshrl.u32 %v154, 7
    %v156 = vsub.s32 0, %v155
    %v157 = vrot.slane %v99, %v156
    %v158 = vlaneseq
    %v159 = vshrl.u32 %v158, 7
    %v160 = vsub.s32 0, %v159
    %v161 = vrot.slane %v100, %v160
    %v162 = vlaneseq
    %v163 = vshrl.u32 %v162, 7
    %v164 = vsub.s32 0, %v163
    %v165 = vrot.slane %v101, %v164
    %vm166 = vcmp.eq.s32.totalorder %v105, 1
    %vm167 = vcmp.eq.s32.totalorder %v109, 1
    %vm168 = vcmp.eq.s32.totalorder %v113, 1
    %vm169 = vcmp.eq.s32.totalorder %v117, 1
    %vm170 = vcmp.eq.s32.totalorder %v121, 1
    %vm171 = vcmp.eq.s32.totalorder %v125, 1
    %vm172 = vcmp.eq.s32.totalorder %v129, 1
    %vm173 = vcmp.eq.s32.totalorder %v133, 1
    %vm174 = vcmp.eq.s32.totalorder %v137, 1
    %vm175 = vcmp.eq.s32.totalorder %v141, 1
    %vm176 = vcmp.eq.s32.totalorder %v145, 1
    %vm177 = vcmp.eq.s32.totalorder %v149, 1
    %vm178 = vcmp.eq.s32.totalorder %v153, 1
    %vm179 = vcmp.eq.s32.totalorder %v157, 1
    %vm180 = vcmp.eq.s32.totalorder %v161, 1
    %vm181 = vcmp.eq.s32.totalorder %v165, 1
    %v182 = vsel %vm84, 1, 0
    %v183 = vsel %vm85, 1, 0
    %vm184 = vcmp.eq.s32.totalorder %v182, 1
    %vm185 = vcmp.eq.s32.totalorder %v183, 1
    %vm186 = vmand %vm166, %vm184
    %vm187 = vmand %vm166, %vm185
    %vm188 = vmand %vm167, %vm184
    %vm189 = vmand %vm167, %vm185
    %vm190 = vmand %vm168, %vm184
    %vm191 = vmand %vm168, %vm185
    %vm192 = vmand %vm169, %vm184
    %vm193 = vmand %vm169, %vm185
    %vm194 = vmand %vm170, %vm184
    %vm195 = vmand %vm170, %vm185
    %vm196 = vmand %vm171, %vm184
    %vm197 = vmand %vm171, %vm185
    %vm198 = vmand %vm172, %vm184
    %vm199 = vmand %vm172, %vm185
    %vm200 = vmand %vm173, %vm184
    %vm201 = vmand %vm173, %vm185
    %vm202 = vmand %vm174, %vm184
    %vm203 = vmand %vm174, %vm185
    %vm204 = vmand %vm175, %vm184
    %vm205 = vmand %vm175, %vm185
    %vm206 = vmand %vm176, %vm184
    %vm207 = vmand %vm176, %vm185
    %vm208 = vmand %vm177, %vm184
    %vm209 = vmand %vm177, %vm185
    %vm210 = vmand %vm178, %vm184
    %vm211 = vmand %vm178, %vm185
    %vm212 = vmand %vm179, %vm184
    %vm213 = vmand %vm179, %vm185
    %vm214 = vmand %vm180, %vm184
    %vm215 = vmand %vm180, %vm185
    %vm216 = vmand %vm181, %vm184
    %vm217 = vmand %vm181, %vm185
    %v218 = vld [vmem:[#allocation5] sm:$0xff]
    %v219 = vld [vmem:[#allocation5 + $0x8] sm:$0xff]
    %v220 = vld [vmem:[#allocation5 + $0x10] sm:$0xff]
    %v221 = vld [vmem:[#allocation5 + $0x18] sm:$0xff]
    %v222 = vld [vmem:[#allocation5 + $0x20] sm:$0xff]
    %v223 = vld [vmem:[#allocation5 + $0x28] sm:$0xff]
    %v224 = vld [vmem:[#allocation5 + $0x30] sm:$0xff]
    %v225 = vld [vmem:[#allocation5 + $0x38] sm:$0xff]
    %v226 = vld [vmem:[#allocation5 + $0x40] sm:$0xff]
    %v227 = vld [vmem:[#allocation5 + $0x48] sm:$0xff]
    %v228 = vld [vmem:[#allocation5 + $0x50] sm:$0xff]
    %v229 = vld [vmem:[#allocation5 + $0x58] sm:$0xff]
    %v230 = vld [vmem:[#allocation5 + $0x60] sm:$0xff]
    %v231 = vld [vmem:[#allocation5 + $0x68] sm:$0xff]
    %v232 = vld [vmem:[#allocation5 + $0x70] sm:$0xff]
    %v233 = vld [vmem:[#allocation5 + $0x78] sm:$0xff]
    %v234 = vld [vmem:[#allocation5 + $0x80] sm:$0xff]
    %v235 = vld [vmem:[#allocation5 + $0x88] sm:$0xff]
    %v236 = vld [vmem:[#allocation5 + $0x90] sm:$0xff]
    %v237 = vld [vmem:[#allocation5 + $0x98] sm:$0xff]
    %v238 = vld [vmem:[#allocation5 + $0xa0] sm:$0xff]
    %v239 = vld [vmem:[#allocation5 + $0xa8] sm:$0xff]
    %v240 = vld [vmem:[#allocation5 + $0xb0] sm:$0xff]
    %v241 = vld [vmem:[#allocation5 + $0xb8] sm:$0xff]
    %v242 = vld [vmem:[#allocation5 + $0xc0] sm:$0xff]
    %v243 = vld [vmem:[#allocation5 + $0xc8] sm:$0xff]
    %v244 = vld [vmem:[#allocation5 + $0xd0] sm:$0xff]
    %v245 = vld [vmem:[#allocation5 + $0xd8] sm:$0xff]
    %v246 = vld [vmem:[#allocation5 + $0xe0] sm:$0xff]
    %v247 = vld [vmem:[#allocation5 + $0xe8] sm:$0xff]
    %v248 = vld [vmem:[#allocation5 + $0xf0] sm:$0xff]
    %v249 = vld [vmem:[#allocation5 + $0xf8] sm:$0xff]
    %v250 = vadd.f32 %v218, 0.0001
    %v251 = vadd.f32 %v219, 0.0001
    %v252 = vadd.f32 %v220, 0.0001
    %v253 = vadd.f32 %v221, 0.0001
    %v254 = vadd.f32 %v222, 0.0001
    %v255 = vadd.f32 %v223, 0.0001
    %v256 = vadd.f32 %v224, 0.0001
    %v257 = vadd.f32 %v225, 0.0001
    %v258 = vadd.f32 %v226, 0.0001
    %v259 = vadd.f32 %v227, 0.0001
    %v260 = vadd.f32 %v228, 0.0001
    %v261 = vadd.f32 %v229, 0.0001
    %v262 = vadd.f32 %v230, 0.0001
    %v263 = vadd.f32 %v231, 0.0001
    %v264 = vadd.f32 %v232, 0.0001
    %v265 = vadd.f32 %v233, 0.0001
    %v266 = vadd.f32 %v234, 0.0001
    %v267 = vadd.f32 %v235, 0.0001
    %v268 = vadd.f32 %v236, 0.0001
    %v269 = vadd.f32 %v237, 0.0001
    %v270 = vadd.f32 %v238, 0.0001
    %v271 = vadd.f32 %v239, 0.0001
    %v272 = vadd.f32 %v240, 0.0001
    %v273 = vadd.f32 %v241, 0.0001
    %v274 = vadd.f32 %v242, 0.0001
    %v275 = vadd.f32 %v243, 0.0001
    %v276 = vadd.f32 %v244, 0.0001
    %v277 = vadd.f32 %v245, 0.0001
    %v278 = vadd.f32 %v246, 0.0001
    %v279 = vadd.f32 %v247, 0.0001
    %v280 = vadd.f32 %v248, 0.0001
    %v281 = vadd.f32 %v249, 0.0001
    %v282 = vsel %vm186, %v250, 0.0
    %v283 = vsel %vm187, %v251, 0.0
    %v284 = vsel %vm188, %v252, 0.0
    %v285 = vsel %vm189, %v253, 0.0
    %v286 = vsel %vm190, %v254, 0.0
    %v287 = vsel %vm191, %v255, 0.0
    %v288 = vsel %vm192, %v256, 0.0
    %v289 = vsel %vm193, %v257, 0.0
    %v290 = vsel %vm194, %v258, 0.0
    %v291 = vsel %vm195, %v259, 0.0
    %v292 = vsel %vm196, %v260, 0.0
    %v293 = vsel %vm197, %v261, 0.0
    %v294 = vsel %vm198, %v262, 0.0
    %v295 = vsel %vm199, %v263, 0.0
    %v296 = vsel %vm200, %v264, 0.0
    %v297 = vsel %vm201, %v265, 0.0
    %v298 = vsel %vm202, %v266, 0.0
    %v299 = vsel %vm203, %v267, 0.0
    %v300 = vsel %vm204, %v268, 0.0
    %v301 = vsel %vm205, %v269, 0.0
    %v302 = vsel %vm206, %v270, 0.0
    %v303 = vsel %vm207, %v271, 0.0
    %v304 = vsel %vm208, %v272, 0.0
    %v305 = vsel %vm209, %v273, 0.0
    %v306 = vsel %vm210, %v274, 0.0
    %v307 = vsel %vm211, %v275, 0.0
    %v308 = vsel %vm212, %v276, 0.0
    %v309 = vsel %vm213, %v277, 0.0
    %v310 = vsel %vm214, %v278, 0.0
    %v311 = vsel %vm215, %v279, 0.0
    %v312 = vsel %vm216, %v280, 0.0
    %v313 = vsel %vm217, %v281, 0.0
    %vm314 = vcmp.gt.s32.totalorder %v58, 0
    %vm315 = vcmp.gt.s32.totalorder %v58, 1
    %vm316 = vcmp.gt.s32.totalorder %v58, 2
    %vm317 = vcmp.gt.s32.totalorder %v58, 3
    %vm318 = vcmp.gt.s32.totalorder %v58, 4
    %vm319 = vcmp.gt.s32.totalorder %v58, 5
    %vm320 = vcmp.gt.s32.totalorder %v58, 6
    %vm321 = vcmp.gt.s32.totalorder %v58, 7
    %vm322 = vcmp.gt.s32.totalorder %v58, 8
    %vm323 = vcmp.gt.s32.totalorder %v58, 9
    %vm324 = vcmp.gt.s32.totalorder %v58, 10
    %vm325 = vcmp.gt.s32.totalorder %v58, 11
    %vm326 = vcmp.gt.s32.totalorder %v58, 12
    %vm327 = vcmp.gt.s32.totalorder %v58, 13
    %vm328 = vcmp.gt.s32.totalorder %v58, 14
    %vm329 = vcmp.gt.s32.totalorder %v58, 15
    %v330 = vlaneseq
    %v331 = vshrl.u32 %v330, 7
    %v332 = vsub.s32 0, %v331
    %v333 = vrot.slane %v57, %v332
    %vm334 = vcmp.lt.s32.totalorder %v62, %v333
    %vm335 = vcmp.lt.s32.totalorder %v63, %v333
    %v336 = vsel %vm314, 1, 0
    %v337 = vsel %vm315, 1, 0
    %v338 = vsel %vm316, 1, 0
    %v339 = vsel %vm317, 1, 0
    %v340 = vsel %vm318, 1, 0
    %v341 = vsel %vm319, 1, 0
    %v342 = vsel %vm320, 1, 0
    %v343 = vsel %vm321, 1, 0
    %v344 = vsel %vm322, 1, 0
    %v345 = vsel %vm323, 1, 0
    %v346 = vsel %vm324, 1, 0
    %v347 = vsel %vm325, 1, 0
    %v348 = vsel %vm326, 1, 0
    %v349 = vsel %vm327, 1, 0
    %v350 = vsel %vm328, 1, 0
    %v351 = vsel %vm329, 1, 0
    %v352 = vlaneseq
    %v353 = vshrl.u32 %v352, 7
    %v354 = vsub.s32 0, %v353
    %v355 = vrot.slane %v336, %v354
    %v356 = vlaneseq
    %v357 = vshrl.u32 %v356, 7
    %v358 = vsub.s32 0, %v357
    %v359 = vrot.slane %v337, %v358
    %v360 = vlaneseq
    %v361 = vshrl.u32 %v360, 7
    %v362 = vsub.s32 0, %v361
    %v363 = vrot.slane %v338, %v362
    %v364 = vlaneseq
    %v365 = vshrl.u32 %v364, 7
    %v366 = vsub.s32 0, %v365
    %v367 = vrot.slane %v339, %v366
    %v368 = vlaneseq
    %v369 = vshrl.u32 %v368, 7
    %v370 = vsub.s32 0, %v369
    %v371 = vrot.slane %v340, %v370
    %v372 = vlaneseq
    %v373 = vshrl.u32 %v372, 7
    %v374 = vsub.s32 0, %v373
    %v375 = vrot.slane %v341, %v374
    %v376 = vlaneseq
    %v377 = vshrl.u32 %v376, 7
    %v378 = vsub.s32 0, %v377
    %v379 = vrot.slane %v342, %v378
    %v380 = vlaneseq
    %v381 = vshrl.u32 %v380, 7
    %v382 = vsub.s32 0, %v381
    %v383 = vrot.slane %v343, %v382
    %v384 = vlaneseq
    %v385 = vshrl.u32 %v384, 7
    %v386 = vsub.s32 0, %v385
    %v387 = vrot.slane %v344, %v386
    %v388 = vlaneseq
    %v389 = vshrl.u32 %v388, 7
    %v390 = vsub.s32 0, %v389
    %v391 = vrot.slane %v345, %v390
    %v392 = vlaneseq
    %v393 = vshrl.u32 %v392, 7
    %v394 = vsub.s32 0, %v393
    %v395 = vrot.slane %v346, %v394
    %v396 = vlaneseq
    %v397 = vshrl.u32 %v396, 7
    %v398 = vsub.s32 0, %v397
    %v399 = vrot.slane %v347, %v398
    %v400 = vlaneseq
    %v401 = vshrl.u32 %v400, 7
    %v402 = vsub.s32 0, %v401
    %v403 = vrot.slane %v348, %v402
    %v404 = vlaneseq
    %v405 = vshrl.u32 %v404, 7
    %v406 = vsub.s32 0, %v405
    %v407 = vrot.slane %v349, %v406
    %v408 = vlaneseq
    %v409 = vshrl.u32 %v408, 7
    %v410 = vsub.s32 0, %v409
    %v411 = vrot.slane %v350, %v410
    %v412 = vlaneseq
    %v413 = vshrl.u32 %v412, 7
    %v414 = vsub.s32 0, %v413
    %v415 = vrot.slane %v351, %v414
    %vm416 = vcmp.eq.s32.totalorder %v355, 1
    %vm417 = vcmp.eq.s32.totalorder %v359, 1
    %vm418 = vcmp.eq.s32.totalorder %v363, 1
    %vm419 = vcmp.eq.s32.totalorder %v367, 1
    %vm420 = vcmp.eq.s32.totalorder %v371, 1
    %vm421 = vcmp.eq.s32.totalorder %v375, 1
    %vm422 = vcmp.eq.s32.totalorder %v379, 1
    %vm423 = vcmp.eq.s32.totalorder %v383, 1
    %vm424 = vcmp.eq.s32.totalorder %v387, 1
    %vm425 = vcmp.eq.s32.totalorder %v391, 1
    %vm426 = vcmp.eq.s32.totalorder %v395, 1
    %vm427 = vcmp.eq.s32.totalorder %v399, 1
    %vm428 = vcmp.eq.s32.totalorder %v403, 1
    %vm429 = vcmp.eq.s32.totalorder %v407, 1
    %vm430 = vcmp.eq.s32.totalorder %v411, 1
    %vm431 = vcmp.eq.s32.totalorder %v415, 1
    %v432 = vsel %vm334, 1, 0
    %v433 = vsel %vm335, 1, 0
    %vm434 = vcmp.eq.s32.totalorder %v432, 1
    %vm435 = vcmp.eq.s32.totalorder %v433, 1
    %vm436 = vmand %vm416, %vm434
    %vm437 = vmand %vm416, %vm435
    %vm438 = vmand %vm417, %vm434
    %vm439 = vmand %vm417, %vm435
    %vm440 = vmand %vm418, %vm434
    %vm441 = vmand %vm418, %vm435
    %vm442 = vmand %vm419, %vm434
    %vm443 = vmand %vm419, %vm435
    %vm444 = vmand %vm420, %vm434
    %vm445 = vmand %vm420, %vm435
    %vm446 = vmand %vm421, %vm434
    %vm447 = vmand %vm421, %vm435
    %vm448 = vmand %vm422, %vm434
    %vm449 = vmand %vm422, %vm435
    %vm450 = vmand %vm423, %vm434
    %vm451 = vmand %vm423, %vm435
    %vm452 = vmand %vm424, %vm434
    %vm453 = vmand %vm424, %vm435
    %vm454 = vmand %vm425, %vm434
    %vm455 = vmand %vm425, %vm435
    %vm456 = vmand %vm426, %vm434
    %vm457 = vmand %vm426, %vm435
    %vm458 = vmand %vm427, %vm434
    %vm459 = vmand %vm427, %vm435
    %vm460 = vmand %vm428, %vm434
    %vm461 = vmand %vm428, %vm435
    %vm462 = vmand %vm429, %vm434
    %vm463 = vmand %vm429, %vm435
    %vm464 = vmand %vm430, %vm434
    %vm465 = vmand %vm430, %vm435
    %vm466 = vmand %vm431, %vm434
    %vm467 = vmand %vm431, %vm435
    %v468 = vld [vmem:[#allocation7] sm:$0xff]
    %v469 = vld [vmem:[#allocation7 + $0x8] sm:$0xff]
    %v470 = vld [vmem:[#allocation7 + $0x10] sm:$0xff]
    %v471 = vld [vmem:[#allocation7 + $0x18] sm:$0xff]
    %v472 = vld [vmem:[#allocation7 + $0x20] sm:$0xff]
    %v473 = vld [vmem:[#allocation7 + $0x28] sm:$0xff]
    %v474 = vld [vmem:[#allocation7 + $0x30] sm:$0xff]
    %v475 = vld [vmem:[#allocation7 + $0x38] sm:$0xff]
    %v476 = vld [vmem:[#allocation7 + $0x40] sm:$0xff]
    %v477 = vld [vmem:[#allocation7 + $0x48] sm:$0xff]
    %v478 = vld [vmem:[#allocation7 + $0x50] sm:$0xff]
    %v479 = vld [vmem:[#allocation7 + $0x58] sm:$0xff]
    %v480 = vld [vmem:[#allocation7 + $0x60] sm:$0xff]
    %v481 = vld [vmem:[#allocation7 + $0x68] sm:$0xff]
    %v482 = vld [vmem:[#allocation7 + $0x70] sm:$0xff]
    %v483 = vld [vmem:[#allocation7 + $0x78] sm:$0xff]
    %v484 = vld [vmem:[#allocation7 + $0x80] sm:$0xff]
    %v485 = vld [vmem:[#allocation7 + $0x88] sm:$0xff]
    %v486 = vld [vmem:[#allocation7 + $0x90] sm:$0xff]
    %v487 = vld [vmem:[#allocation7 + $0x98] sm:$0xff]
    %v488 = vld [vmem:[#allocation7 + $0xa0] sm:$0xff]
    %v489 = vld [vmem:[#allocation7 + $0xa8] sm:$0xff]
    %v490 = vld [vmem:[#allocation7 + $0xb0] sm:$0xff]
    %v491 = vld [vmem:[#allocation7 + $0xb8] sm:$0xff]
    %v492 = vld [vmem:[#allocation7 + $0xc0] sm:$0xff]
    %v493 = vld [vmem:[#allocation7 + $0xc8] sm:$0xff]
    %v494 = vld [vmem:[#allocation7 + $0xd0] sm:$0xff]
    %v495 = vld [vmem:[#allocation7 + $0xd8] sm:$0xff]
    %v496 = vld [vmem:[#allocation7 + $0xe0] sm:$0xff]
    %v497 = vld [vmem:[#allocation7 + $0xe8] sm:$0xff]
    %v498 = vld [vmem:[#allocation7 + $0xf0] sm:$0xff]
    %v499 = vld [vmem:[#allocation7 + $0xf8] sm:$0xff]
    %v500 = vadd.f32 %v468, 0.0001
    %v501 = vadd.f32 %v469, 0.0001
    %v502 = vadd.f32 %v470, 0.0001
    %v503 = vadd.f32 %v471, 0.0001
    %v504 = vadd.f32 %v472, 0.0001
    %v505 = vadd.f32 %v473, 0.0001
    %v506 = vadd.f32 %v474, 0.0001
    %v507 = vadd.f32 %v475, 0.0001
    %v508 = vadd.f32 %v476, 0.0001
    %v509 = vadd.f32 %v477, 0.0001
    %v510 = vadd.f32 %v478, 0.0001
    %v511 = vadd.f32 %v479, 0.0001
    %v512 = vadd.f32 %v480, 0.0001
    %v513 = vadd.f32 %v481, 0.0001
    %v514 = vadd.f32 %v482, 0.0001
    %v515 = vadd.f32 %v483, 0.0001
    %v516 = vadd.f32 %v484, 0.0001
    %v517 = vadd.f32 %v485, 0.0001
    %v518 = vadd.f32 %v486, 0.0001
    %v519 = vadd.f32 %v487, 0.0001
    %v520 = vadd.f32 %v488, 0.0001
    %v521 = vadd.f32 %v489, 0.0001
    %v522 = vadd.f32 %v490, 0.0001
    %v523 = vadd.f32 %v491, 0.0001
    %v524 = vadd.f32 %v492, 0.0001
    %v525 = vadd.f32 %v493, 0.0001
    %v526 = vadd.f32 %v494, 0.0001
    %v527 = vadd.f32 %v495, 0.0001
    %v528 = vadd.f32 %v496, 0.0001
    %v529 = vadd.f32 %v497, 0.0001
    %v530 = vadd.f32 %v498, 0.0001
    %v531 = vadd.f32 %v499, 0.0001
    %v532 = vsel %vm436, %v500, 0.0
    %v533 = vsel %vm437, %v501, 0.0
    %v534 = vsel %vm438, %v502, 0.0
    %v535 = vsel %vm439, %v503, 0.0
    %v536 = vsel %vm440, %v504, 0.0
    %v537 = vsel %vm441, %v505, 0.0
    %v538 = vsel %vm442, %v506, 0.0
    %v539 = vsel %vm443, %v507, 0.0
    %v540 = vsel %vm444, %v508, 0.0
    %v541 = vsel %vm445, %v509, 0.0
    %v542 = vsel %vm446, %v510, 0.0
    %v543 = vsel %vm447, %v511, 0.0
    %v544 = vsel %vm448, %v512, 0.0
    %v545 = vsel %vm449, %v513, 0.0
    %v546 = vsel %vm450, %v514, 0.0
    %v547 = vsel %vm451, %v515, 0.0
    %v548 = vsel %vm452, %v516, 0.0
    %v549 = vsel %vm453, %v517, 0.0
    %v550 = vsel %vm454, %v518, 0.0
    %v551 = vsel %vm455, %v519, 0.0
    %v552 = vsel %vm456, %v520, 0.0
    %v553 = vsel %vm457, %v521, 0.0
    %v554 = vsel %vm458, %v522, 0.0
    %v555 = vsel %vm459, %v523, 0.0
    %v556 = vsel %vm460, %v524, 0.0
    %v557 = vsel %vm461, %v525, 0.0
    %v558 = vsel %vm462, %v526, 0.0
    %v559 = vsel %vm463, %v527, 0.0
    %v560 = vsel %vm464, %v528, 0.0
    %v561 = vsel %vm465, %v529, 0.0
    %v562 = vsel %vm466, %v530, 0.0
    %v563 = vsel %vm467, %v531, 0.0
    %v564 = vsub.s32 %v57, 1
    %v565 = vlaneseq
    %v566 = vshrl.u32 %v565, 7
    %v567 = vsub.s32 0, %v566
    %v568 = vrot.slane %v564, %v567
    %vm569 = vcmp.eq.s32.totalorder %v62, %v568
    %vm570 = vcmp.eq.s32.totalorder %v63, %v568
    %v571 = vsub.f32 %v60, 1.0
    %v573 = vlaneseq
    %v574 = vshrl.u32 %v573, 7
    %v575 = vsub.s32 0, %v574
    %v576 = vrot.slane %v571, %v575
    %v578 = vsel %vm569, %v576, 1.0
    %v579 = vsel %vm570, %v576, 1.0
    %v580 = vsub.s32 %v58, 1
    %v581 = vlaneseq
    %v582 = vshrl.u32 %v581, 7
    %v583 = vsub.s32 0, %v582
    %v584 = vrot.slane %v580, %v583
    %vm585 = vcmp.eq.s32.totalorder %v62, %v584
    %vm586 = vcmp.eq.s32.totalorder %v63, %v584
    %v587 = vsub.f32 %v59, 1.0
    %v589 = vlaneseq
    %v590 = vshrl.u32 %v589, 7
    %v591 = vsub.s32 0, %v590
    %v592 = vrot.slane %v587, %v591
    %v594 = vsel %vm585, %v592, 1.0
    %v595 = vsel %vm586, %v592, 1.0
    %vm596 = vcmp.le.s32.totalorder %v57, 1
    %vm597 = vcmp.le.s32.totalorder %v58, 1
    %vm598 = vmor %vm596, %vm597
    %v599 = vsel %vm598, 1.0, 0.0
    // While loop
    $region30: #{tpu_custom_call.1} parent=1 // loop_pre_header
      _
    $region31: #{tpu_custom_call.1} parent=1 // loop_header
      %s601 = sphi 0, %s2140
      %v602 = vphi 1.0, %v2133
      %v603 = vphi 1.0, %v2134
      %v604 = vphi 1.0, %v2135
      %v605 = vphi 1.0, %v2136
      %v606 = vphi %v599, %v2139
      %p607 = scmp.lt.s32.totalorder %s601, 100
      %v608 = vsub.f32 1.0, %v606
      %vm609 = vcmask 1040384
      %v610 = vsel %vm609, %v608, -inf
      %611 = vmax.xlane.f32.xlu0 %v610
      %v612 = vpop.xlane.xlu0 %611
      %v613 = vrot.slane %v612, 4
      %v614 = vmax.f32 %v612, %v613
      %v615 = vrot.slane %v614, 2
      %v616 = vmax.f32 %v614, %v615
      %v617 = vrot.slane %v616, 1
      %v618 = vmax.f32 %v616, %v617
      %s619 = vtos %v618
      %p620 = scmp.gt.f32.partialorder %s619, 0.0
      %p621 = pnand %p607, %p620
      %p622 = pneg %p621
    $region32: #{tpu_custom_call.1} parent=1 // loop_header_branch
      %624 = sbr.rel (%p621) target = $region36
    $region33: #{tpu_custom_call.1} parent=1 // loop_body
      %v625 = vlaneseq
      %v626 = vshrl.u32 %v625, 7
      %v627 = vsub.s32 0, %v626
      %v628 = vrot.slane %v602, %v627
      %v629 = vmul.f32 %v282, %v628
      %v630 = vmul.f32 %v283, %v628
      %v631 = vlaneseq
      %v632 = vshrl.u32 %v631, 7
      %v633 = vsub.s32 1, %v632
      %v634 = vrot.slane %v602, %v633
      %v635 = vmul.f32 %v284, %v634
      %v636 = vmul.f32 %v285, %v634
      %v637 = vlaneseq
      %v638 = vshrl.u32 %v637, 7
      %v639 = vsub.s32 2, %v638
      %v640 = vrot.slane %v602, %v639
      %v641 = vmul.f32 %v286, %v640
      %v642 = vmul.f32 %v287, %v640
      %v643 = vlaneseq
      %v644 = vshrl.u32 %v643, 7
      %v645 = vsub.s32 3, %v644
      %v646 = vrot.slane %v602, %v645
      %v647 = vmul.f32 %v288, %v646
      %v648 = vmul.f32 %v289, %v646
      %v649 = vlaneseq
      %v650 = vshrl.u32 %v649, 7
      %v651 = vsub.s32 4, %v650
      %v652 = vrot.slane %v602, %v651
      %v653 = vmul.f32 %v290, %v652
      %v654 = vmul.f32 %v291, %v652
      %v655 = vlaneseq
      %v656 = vshrl.u32 %v655, 7
      %v657 = vsub.s32 5, %v656
      %v658 = vrot.slane %v602, %v657
      %v659 = vmul.f32 %v292, %v658
      %v660 = vmul.f32 %v293, %v658
      %v661 = vlaneseq
      %v662 = vshrl.u32 %v661, 7
      %v663 = vsub.s32 6, %v662
      %v664 = vrot.slane %v602, %v663
      %v665 = vmul.f32 %v294, %v664
      %v666 = vmul.f32 %v295, %v664
      %v667 = vlaneseq
      %v668 = vshrl.u32 %v667, 7
      %v669 = vsub.s32 7, %v668
      %v670 = vrot.slane %v602, %v669
      %v671 = vmul.f32 %v296, %v670
      %v672 = vmul.f32 %v297, %v670
      %v673 = vlaneseq
      %v674 = vshrl.u32 %v673, 7
      %v675 = vsub.s32 0, %v674
      %v676 = vrot.slane %v603, %v675
      %v677 = vmul.f32 %v298, %v676
      %v678 = vmul.f32 %v299, %v676
      %v679 = vlaneseq
      %v680 = vshrl.u32 %v679, 7
      %v681 = vsub.s32 1, %v680
      %v682 = vrot.slane %v603, %v681
      %v683 = vmul.f32 %v300, %v682
      %v684 = vmul.f32 %v301, %v682
      %v685 = vlaneseq
      %v686 = vshrl.u32 %v685, 7
      %v687 = vsub.s32 2, %v686
      %v688 = vrot.slane %v603, %v687
      %v689 = vmul.f32 %v302, %v688
      %v690 = vmul.f32 %v303, %v688
      %v691 = vlaneseq
      %v692 = vshrl.u32 %v691, 7
      %v693 = vsub.s32 3, %v692
      %v694 = vrot.slane %v603, %v693
      %v695 = vmul.f32 %v304, %v694
      %v696 = vmul.f32 %v305, %v694
      %v697 = vlaneseq
      %v698 = vshrl.u32 %v697, 7
      %v699 = vsub.s32 4, %v698
      %v700 = vrot.slane %v603, %v699
      %v701 = vmul.f32 %v306, %v700
      %v702 = vmul.f32 %v307, %v700
      %v703 = vlaneseq
      %v704 = vshrl.u32 %v703, 7
      %v705 = vsub.s32 5, %v704
      %v706 = vrot.slane %v603, %v705
      %v707 = vmul.f32 %v308, %v706
      %v708 = vmul.f32 %v309, %v706
      %v709 = vlaneseq
      %v710 = vshrl.u32 %v709, 7
      %v711 = vsub.s32 6, %v710
      %v712 = vrot.slane %v603, %v711
      %v713 = vmul.f32 %v310, %v712
      %v714 = vmul.f32 %v311, %v712
      %v715 = vlaneseq
      %v716 = vshrl.u32 %v715, 7
      %v717 = vsub.s32 7, %v716
      %v718 = vrot.slane %v603, %v717
      %v719 = vmul.f32 %v312, %v718
      %v720 = vmul.f32 %v313, %v718
      %v721 = vadd.f32 %v629, %v635
      %v722 = vadd.f32 %v630, %v636
      %v723 = vadd.f32 %v641, %v647
      %v724 = vadd.f32 %v642, %v648
      %v725 = vadd.f32 %v653, %v659
      %v726 = vadd.f32 %v654, %v660
      %v727 = vadd.f32 %v665, %v671
      %v728 = vadd.f32 %v666, %v672
      %v729 = vadd.f32 %v677, %v683
      %v730 = vadd.f32 %v678, %v684
      %v731 = vadd.f32 %v689, %v695
      %v732 = vadd.f32 %v690, %v696
      %v733 = vadd.f32 %v701, %v707
      %v734 = vadd.f32 %v702, %v708
      %v735 = vadd.f32 %v713, %v719
      %v736 = vadd.f32 %v714, %v720
      %v737 = vadd.f32 %v721, %v723
      %v738 = vadd.f32 %v722, %v724
      %v739 = vadd.f32 %v725, %v727
      %v740 = vadd.f32 %v726, %v728
      %v741 = vadd.f32 %v729, %v731
      %v742 = vadd.f32 %v730, %v732
      %v743 = vadd.f32 %v733, %v735
      %v744 = vadd.f32 %v734, %v736
      %v745 = vadd.f32 %v737, %v739
      %v746 = vadd.f32 %v738, %v740
      %v747 = vadd.f32 %v741, %v743
      %v748 = vadd.f32 %v742, %v744
      %v749 = vadd.f32 %v745, %v747
      %v750 = vadd.f32 %v746, %v748
      %v751 = vrcp.pop %v749
      %v752 = vrcp.pop %v750
      %v753 = vmul.f32 %v594, %v751
      %v754 = vmul.f32 %v595, %v752
      %v755 = vsel %vm84, %v753, 1.0
      %v756 = vsel %vm85, %v754, 1.0
      %v757 = vlaneseq
      %v758 = vshrl.u32 %v757, 7
      %v759 = vsub.s32 0, %v758
      %v760 = vrot.slane %v755, %v759
      %v761 = vmul.f32 %v532, %v760
      %v762 = vmul.f32 %v533, %v760
      %v763 = vlaneseq
      %v764 = vshrl.u32 %v763, 7
      %v765 = vsub.s32 1, %v764
      %v766 = vrot.slane %v755, %v765
      %v767 = vmul.f32 %v534, %v766
      %v768 = vmul.f32 %v535, %v766
      %v769 = vlaneseq
      %v770 = vshrl.u32 %v769, 7
      %v771 = vsub.s32 2, %v770
      %v772 = vrot.slane %v755, %v771
      %v773 = vmul.f32 %v536, %v772
      %v774 = vmul.f32 %v537, %v772
      %v775 = vlaneseq
      %v776 = vshrl.u32 %v775, 7
      %v777 = vsub.s32 3, %v776
      %v778 = vrot.slane %v755, %v777
      %v779 = vmul.f32 %v538, %v778
      %v780 = vmul.f32 %v539, %v778
      %v781 = vlaneseq
      %v782 = vshrl.u32 %v781, 7
      %v783 = vsub.s32 4, %v782
      %v784 = vrot.slane %v755, %v783
      %v785 = vmul.f32 %v540, %v784
      %v786 = vmul.f32 %v541, %v784
      %v787 = vlaneseq
      %v788 = vshrl.u32 %v787, 7
      %v789 = vsub.s32 5, %v788
      %v790 = vrot.slane %v755, %v789
      %v791 = vmul.f32 %v542, %v790
      %v792 = vmul.f32 %v543, %v790
      %v793 = vlaneseq
      %v794 = vshrl.u32 %v793, 7
      %v795 = vsub.s32 6, %v794
      %v796 = vrot.slane %v755, %v795
      %v797 = vmul.f32 %v544, %v796
      %v798 = vmul.f32 %v545, %v796
      %v799 = vlaneseq
      %v800 = vshrl.u32 %v799, 7
      %v801 = vsub.s32 7, %v800
      %v802 = vrot.slane %v755, %v801
      %v803 = vmul.f32 %v546, %v802
      %v804 = vmul.f32 %v547, %v802
      %v805 = vlaneseq
      %v806 = vshrl.u32 %v805, 7
      %v807 = vsub.s32 0, %v806
      %v808 = vrot.slane %v756, %v807
      %v809 = vmul.f32 %v548, %v808
      %v810 = vmul.f32 %v549, %v808
      %v811 = vlaneseq
      %v812 = vshrl.u32 %v811, 7
      %v813 = vsub.s32 1, %v812
      %v814 = vrot.slane %v756, %v813
      %v815 = vmul.f32 %v550, %v814
      %v816 = vmul.f32 %v551, %v814
      %v817 = vlaneseq
      %v818 = vshrl.u32 %v817, 7
      %v819 = vsub.s32 2, %v818
      %v820 = vrot.slane %v756, %v819
      %v821 = vmul.f32 %v552, %v820
      %v822 = vmul.f32 %v553, %v820
      %v823 = vlaneseq
      %v824 = vshrl.u32 %v823, 7
      %v825 = vsub.s32 3, %v824
      %v826 = vrot.slane %v756, %v825
      %v827 = vmul.f32 %v554, %v826
      %v828 = vmul.f32 %v555, %v826
      %v829 = vlaneseq
      %v830 = vshrl.u32 %v829, 7
      %v831 = vsub.s32 4, %v830
      %v832 = vrot.slane %v756, %v831
      %v833 = vmul.f32 %v556, %v832
      %v834 = vmul.f32 %v557, %v832
      %v835 = vlaneseq
      %v836 = vshrl.u32 %v835, 7
      %v837 = vsub.s32 5, %v836
      %v838 = vrot.slane %v756, %v837
      %v839 = vmul.f32 %v558, %v838
      %v840 = vmul.f32 %v559, %v838
      %v841 = vlaneseq
      %v842 = vshrl.u32 %v841, 7
      %v843 = vsub.s32 6, %v842
      %v844 = vrot.slane %v756, %v843
      %v845 = vmul.f32 %v560, %v844
      %v846 = vmul.f32 %v561, %v844
      %v847 = vlaneseq
      %v848 = vshrl.u32 %v847, 7
      %v849 = vsub.s32 7, %v848
      %v850 = vrot.slane %v756, %v849
      %v851 = vmul.f32 %v562, %v850
      %v852 = vmul.f32 %v563, %v850
      %v853 = vadd.f32 %v761, %v767
      %v854 = vadd.f32 %v762, %v768
      %v855 = vadd.f32 %v773, %v779
      %v856 = vadd.f32 %v774, %v780
      %v857 = vadd.f32 %v785, %v791
      %v858 = vadd.f32 %v786, %v792
      %v859 = vadd.f32 %v797, %v803
      %v860 = vadd.f32 %v798, %v804
      %v861 = vadd.f32 %v809, %v815
      %v862 = vadd.f32 %v810, %v816
      %v863 = vadd.f32 %v821, %v827
      %v864 = vadd.f32 %v822, %v828
      %v865 = vadd.f32 %v833, %v839
      %v866 = vadd.f32 %v834, %v840
      %v867 = vadd.f32 %v845, %v851
      %v868 = vadd.f32 %v846, %v852
      %v869 = vadd.f32 %v853, %v855
      %v870 = vadd.f32 %v854, %v856
      %v871 = vadd.f32 %v857, %v859
      %v872 = vadd.f32 %v858, %v860
      %v873 = vadd.f32 %v861, %v863
      %v874 = vadd.f32 %v862, %v864
      %v875 = vadd.f32 %v865, %v867
      %v876 = vadd.f32 %v866, %v868
      %v877 = vadd.f32 %v869, %v871
      %v878 = vadd.f32 %v870, %v872
      %v879 = vadd.f32 %v873, %v875
      %v880 = vadd.f32 %v874, %v876
      %v881 = vadd.f32 %v877, %v879
      %v882 = vadd.f32 %v878, %v880
      %v883 = vrcp.pop %v881
      %v884 = vrcp.pop %v882
      %v885 = vmul.f32 %v578, %v883
      %v886 = vmul.f32 %v579, %v884
      %v887 = vsel %vm334, %v885, 1.0
      %v888 = vsel %vm335, %v886, 1.0
      %v889 = vsub.f32 %v602, %v887
      %v890 = vsub.f32 %v603, %v888
      %v891 = vand.u32 2147483647, %v889
      %v892 = vand.u32 2147483647, %v890
      %v893 = vadd.f32 %v891, %v892
      %v894 = vrot.slane %v893, 4
      %v895 = vadd.f32 %v893, %v894
      %v896 = vrot.slane %v895, 2
      %v897 = vadd.f32 %v895, %v896
      %v898 = vrot.slane %v897, 1
      %v899 = vadd.f32 %v897, %v898
      %v900 = vsub.f32 %v604, %v755
      %v901 = vsub.f32 %v605, %v756
      %v902 = vand.u32 2147483647, %v900
      %v903 = vand.u32 2147483647, %v901
      %v904 = vadd.f32 %v902, %v903
      %v905 = vrot.slane %v904, 4
      %v906 = vadd.f32 %v904, %v905
      %v907 = vrot.slane %v906, 2
      %v908 = vadd.f32 %v906, %v907
      %v909 = vrot.slane %v908, 1
      %v910 = vadd.f32 %v908, %v909
      %v911 = vmul.f32 %v899, %v899
      %v912 = vmul.f32 %v910, %v910
      %v913 = vadd.f32 %v911, %v912
      %vm914 = vcmp.gt.f32.partialorder %v606, 0.5
      %v915 = vsel %vm914, 1, 0
      %v916 = vlaneseq
      %v917 = vshrl.u32 %v916, 7
      %v918 = vsub.s32 0, %v917
      %v919 = vrot.slane %v915, %v918
      %vm920 = vcmp.eq.s32.totalorder %v919, 1
      %v921 = vsel %vm920, %v602, %v887
      %v922 = vsel %vm920, %v603, %v888
      %v923 = vsel %vm920, %v604, %v755
      %v924 = vsel %vm920, %v605, %v756
      %vm925 = vcmp.le.f32.partialorder %v913, 0.001
      %v926 = vsel %vm925, 1.0, 0.0
      %v927 = vmax.f32 %v606, %v926
      %v928 = vlaneseq
      %v929 = vshrl.u32 %v928, 7
      %v930 = vsub.s32 0, %v929
      %v931 = vrot.slane %v921, %v930
      %v932 = vmul.f32 %v282, %v931
      %v933 = vmul.f32 %v283, %v931
      %v934 = vlaneseq
      %v935 = vshrl.u32 %v934, 7
      %v936 = vsub.s32 1, %v935
      %v937 = vrot.slane %v921, %v936
      %v938 = vmul.f32 %v284, %v937
      %v939 = vmul.f32 %v285, %v937
      %v940 = vlaneseq
      %v941 = vshrl.u32 %v940, 7
      %v942 = vsub.s32 2, %v941
      %v943 = vrot.slane %v921, %v942
      %v944 = vmul.f32 %v286, %v943
      %v945 = vmul.f32 %v287, %v943
      %v946 = vlaneseq
      %v947 = vshrl.u32 %v946, 7
      %v948 = vsub.s32 3, %v947
      %v949 = vrot.slane %v921, %v948
      %v950 = vmul.f32 %v288, %v949
      %v951 = vmul.f32 %v289, %v949
      %v952 = vlaneseq
      %v953 = vshrl.u32 %v952, 7
      %v954 = vsub.s32 4, %v953
      %v955 = vrot.slane %v921, %v954
      %v956 = vmul.f32 %v290, %v955
      %v957 = vmul.f32 %v291, %v955
      %v958 = vlaneseq
      %v959 = vshrl.u32 %v958, 7
      %v960 = vsub.s32 5, %v959
      %v961 = vrot.slane %v921, %v960
      %v962 = vmul.f32 %v292, %v961
      %v963 = vmul.f32 %v293, %v961
      %v964 = vlaneseq
      %v965 = vshrl.u32 %v964, 7
      %v966 = vsub.s32 6, %v965
      %v967 = vrot.slane %v921, %v966
      %v968 = vmul.f32 %v294, %v967
      %v969 = vmul.f32 %v295, %v967
      %v970 = vlaneseq
      %v971 = vshrl.u32 %v970, 7
      %v972 = vsub.s32 7, %v971
      %v973 = vrot.slane %v921, %v972
      %v974 = vmul.f32 %v296, %v973
      %v975 = vmul.f32 %v297, %v973
      %v976 = vlaneseq
      %v977 = vshrl.u32 %v976, 7
      %v978 = vsub.s32 0, %v977
      %v979 = vrot.slane %v922, %v978
      %v980 = vmul.f32 %v298, %v979
      %v981 = vmul.f32 %v299, %v979
      %v982 = vlaneseq
      %v983 = vshrl.u32 %v982, 7
      %v984 = vsub.s32 1, %v983
      %v985 = vrot.slane %v922, %v984
      %v986 = vmul.f32 %v300, %v985
      %v987 = vmul.f32 %v301, %v985
      %v988 = vlaneseq
      %v989 = vshrl.u32 %v988, 7
      %v990 = vsub.s32 2, %v989
      %v991 = vrot.slane %v922, %v990
      %v992 = vmul.f32 %v302, %v991
      %v993 = vmul.f32 %v303, %v991
      %v994 = vlaneseq
      %v995 = vshrl.u32 %v994, 7
      %v996 = vsub.s32 3, %v995
      %v997 = vrot.slane %v922, %v996
      %v998 = vmul.f32 %v304, %v997
      %v999 = vmul.f32 %v305, %v997
      %v1000 = vlaneseq
      %v1001 = vshrl.u32 %v1000, 7
      %v1002 = vsub.s32 4, %v1001
      %v1003 = vrot.slane %v922, %v1002
      %v1004 = vmul.f32 %v306, %v1003
      %v1005 = vmul.f32 %v307, %v1003
      %v1006 = vlaneseq
      %v1007 = vshrl.u32 %v1006, 7
      %v1008 = vsub.s32 5, %v1007
      %v1009 = vrot.slane %v922, %v1008
      %v1010 = vmul.f32 %v308, %v1009
      %v1011 = vmul.f32 %v309, %v1009
      %v1012 = vlaneseq
      %v1013 = vshrl.u32 %v1012, 7
      %v1014 = vsub.s32 6, %v1013
      %v1015 = vrot.slane %v922, %v1014
      %v1016 = vmul.f32 %v310, %v1015
      %v1017 = vmul.f32 %v311, %v1015
      %v1018 = vlaneseq
      %v1019 = vshrl.u32 %v1018, 7
      %v1020 = vsub.s32 7, %v1019
      %v1021 = vrot.slane %v922, %v1020
      %v1022 = vmul.f32 %v312, %v1021
      %v1023 = vmul.f32 %v313, %v1021
      %v1024 = vadd.f32 %v932, %v938
      %v1025 = vadd.f32 %v933, %v939
      %v1026 = vadd.f32 %v944, %v950
      %v1027 = vadd.f32 %v945, %v951
      %v1028 = vadd.f32 %v956, %v962
      %v1029 = vadd.f32 %v957, %v963
      %v1030 = vadd.f32 %v968, %v974
      %v1031 = vadd.f32 %v969, %v975
      %v1032 = vadd.f32 %v980, %v986
      %v1033 = vadd.f32 %v981, %v987
      %v1034 = vadd.f32 %v992, %v998
      %v1035 = vadd.f32 %v993, %v999
      %v1036 = vadd.f32 %v1004, %v1010
      %v1037 = vadd.f32 %v1005, %v1011
      %v1038 = vadd.f32 %v1016, %v1022
      %v1039 = vadd.f32 %v1017, %v1023
      %v1040 = vadd.f32 %v1024, %v1026
      %v1041 = vadd.f32 %v1025, %v1027
      %v1042 = vadd.f32 %v1028, %v1030
      %v1043 = vadd.f32 %v1029, %v1031
      %v1044 = vadd.f32 %v1032, %v1034
      %v1045 = vadd.f32 %v1033, %v1035
      %v1046 = vadd.f32 %v1036, %v1038
      %v1047 = vadd.f32 %v1037, %v1039
      %v1048 = vadd.f32 %v1040, %v1042
      %v1049 = vadd.f32 %v1041, %v1043
      %v1050 = vadd.f32 %v1044, %v1046
      %v1051 = vadd.f32 %v1045, %v1047
      %v1052 = vadd.f32 %v1048, %v1050
      %v1053 = vadd.f32 %v1049, %v1051
      %v1054 = vrcp.pop %v1052
      %v1055 = vrcp.pop %v1053
      %v1056 = vmul.f32 %v594, %v1054
      %v1057 = vmul.f32 %v595, %v1055
      %v1058 = vsel %vm84, %v1056, 1.0
      %v1059 = vsel %vm85, %v1057, 1.0
      %v1060 = vlaneseq
      %v1061 = vshrl.u32 %v1060, 7
      %v1062 = vsub.s32 0, %v1061
      %v1063 = vrot.slane %v1058, %v1062
      %v1064 = vmul.f32 %v532, %v1063
      %v1065 = vmul.f32 %v533, %v1063
      %v1066 = vlaneseq
      %v1067 = vshrl.u32 %v1066, 7
      %v1068 = vsub.s32 1, %v1067
      %v1069 = vrot.slane %v1058, %v1068
      %v1070 = vmul.f32 %v534, %v1069
      %v1071 = vmul.f32 %v535, %v1069
      %v1072 = vlaneseq
      %v1073 = vshrl.u32 %v1072, 7
      %v1074 = vsub.s32 2, %v1073
      %v1075 = vrot.slane %v1058, %v1074
      %v1076 = vmul.f32 %v536, %v1075
      %v1077 = vmul.f32 %v537, %v1075
      %v1078 = vlaneseq
      %v1079 = vshrl.u32 %v1078, 7
      %v1080 = vsub.s32 3, %v1079
      %v1081 = vrot.slane %v1058, %v1080
      %v1082 = vmul.f32 %v538, %v1081
      %v1083 = vmul.f32 %v539, %v1081
      %v1084 = vlaneseq
      %v1085 = vshrl.u32 %v1084, 7
      %v1086 = vsub.s32 4, %v1085
      %v1087 = vrot.slane %v1058, %v1086
      %v1088 = vmul.f32 %v540, %v1087
      %v1089 = vmul.f32 %v541, %v1087
      %v1090 = vlaneseq
      %v1091 = vshrl.u32 %v1090, 7
      %v1092 = vsub.s32 5, %v1091
      %v1093 = vrot.slane %v1058, %v1092
      %v1094 = vmul.f32 %v542, %v1093
      %v1095 = vmul.f32 %v543, %v1093
      %v1096 = vlaneseq
      %v1097 = vshrl.u32 %v1096, 7
      %v1098 = vsub.s32 6, %v1097
      %v1099 = vrot.slane %v1058, %v1098
      %v1100 = vmul.f32 %v544, %v1099
      %v1101 = vmul.f32 %v545, %v1099
      %v1102 = vlaneseq
      %v1103 = vshrl.u32 %v1102, 7
      %v1104 = vsub.s32 7, %v1103
      %v1105 = vrot.slane %v1058, %v1104
      %v1106 = vmul.f32 %v546, %v1105
      %v1107 = vmul.f32 %v547, %v1105
      %v1108 = vlaneseq
      %v1109 = vshrl.u32 %v1108, 7
      %v1110 = vsub.s32 0, %v1109
      %v1111 = vrot.slane %v1059, %v1110
      %v1112 = vmul.f32 %v548, %v1111
      %v1113 = vmul.f32 %v549, %v1111
      %v1114 = vlaneseq
      %v1115 = vshrl.u32 %v1114, 7
      %v1116 = vsub.s32 1, %v1115
      %v1117 = vrot.slane %v1059, %v1116
      %v1118 = vmul.f32 %v550, %v1117
      %v1119 = vmul.f32 %v551, %v1117
      %v1120 = vlaneseq
      %v1121 = vshrl.u32 %v1120, 7
      %v1122 = vsub.s32 2, %v1121
      %v1123 = vrot.slane %v1059, %v1122
      %v1124 = vmul.f32 %v552, %v1123
      %v1125 = vmul.f32 %v553, %v1123
      %v1126 = vlaneseq
      %v1127 = vshrl.u32 %v1126, 7
      %v1128 = vsub.s32 3, %v1127
      %v1129 = vrot.slane %v1059, %v1128
      %v1130 = vmul.f32 %v554, %v1129
      %v1131 = vmul.f32 %v555, %v1129
      %v1132 = vlaneseq
      %v1133 = vshrl.u32 %v1132, 7
      %v1134 = vsub.s32 4, %v1133
      %v1135 = vrot.slane %v1059, %v1134
      %v1136 = vmul.f32 %v556, %v1135
      %v1137 = vmul.f32 %v557, %v1135
      %v1138 = vlaneseq
      %v1139 = vshrl.u32 %v1138, 7
      %v1140 = vsub.s32 5, %v1139
      %v1141 = vrot.slane %v1059, %v1140
      %v1142 = vmul.f32 %v558, %v1141
      %v1143 = vmul.f32 %v559, %v1141
      %v1144 = vlaneseq
      %v1145 = vshrl.u32 %v1144, 7
      %v1146 = vsub.s32 6, %v1145
      %v1147 = vrot.slane %v1059, %v1146
      %v1148 = vmul.f32 %v560, %v1147
      %v1149 = vmul.f32 %v561, %v1147
      %v1150 = vlaneseq
      %v1151 = vshrl.u32 %v1150, 7
      %v1152 = vsub.s32 7, %v1151
      %v1153 = vrot.slane %v1059, %v1152
      %v1154 = vmul.f32 %v562, %v1153
      %v1155 = vmul.f32 %v563, %v1153
      %v1156 = vadd.f32 %v1064, %v1070
      %v1157 = vadd.f32 %v1065, %v1071
      %v1158 = vadd.f32 %v1076, %v1082
      %v1159 = vadd.f32 %v1077, %v1083
      %v1160 = vadd.f32 %v1088, %v1094
      %v1161 = vadd.f32 %v1089, %v1095
      %v1162 = vadd.f32 %v1100, %v1106
      %v1163 = vadd.f32 %v1101, %v1107
      %v1164 = vadd.f32 %v1112, %v1118
      %v1165 = vadd.f32 %v1113, %v1119
      %v1166 = vadd.f32 %v1124, %v1130
      %v1167 = vadd.f32 %v1125, %v1131
      %v1168 = vadd.f32 %v1136, %v1142
      %v1169 = vadd.f32 %v1137, %v1143
      %v1170 = vadd.f32 %v1148, %v1154
      %v1171 = vadd.f32 %v1149, %v1155
      %v1172 = vadd.f32 %v1156, %v1158
      %v1173 = vadd.f32 %v1157, %v1159
      %v1174 = vadd.f32 %v1160, %v1162
      %v1175 = vadd.f32 %v1161, %v1163
      %v1176 = vadd.f32 %v1164, %v1166
      %v1177 = vadd.f32 %v1165, %v1167
      %v1178 = vadd.f32 %v1168, %v1170
      %v1179 = vadd.f32 %v1169, %v1171
      %v1180 = vadd.f32 %v1172, %v1174
      %v1181 = vadd.f32 %v1173, %v1175
      %v1182 = vadd.f32 %v1176, %v1178
      %v1183 = vadd.f32 %v1177, %v1179
      %v1184 = vadd.f32 %v1180, %v1182
      %v1185 = vadd.f32 %v1181, %v1183
      %v1186 = vrcp.pop %v1184
      %v1187 = vrcp.pop %v1185
      %v1188 = vmul.f32 %v578, %v1186
      %v1189 = vmul.f32 %v579, %v1187
      %v1190 = vsel %vm334, %v1188, 1.0
      %v1191 = vsel %vm335, %v1189, 1.0
      %v1192 = vsub.f32 %v921, %v1190
      %v1193 = vsub.f32 %v922, %v1191
      %v1194 = vand.u32 2147483647, %v1192
      %v1195 = vand.u32 2147483647, %v1193
      %v1196 = vadd.f32 %v1194, %v1195
      %v1197 = vrot.slane %v1196, 4
      %v1198 = vadd.f32 %v1196, %v1197
      %v1199 = vrot.slane %v1198, 2
      %v1200 = vadd.f32 %v1198, %v1199
      %v1201 = vrot.slane %v1200, 1
      %v1202 = vadd.f32 %v1200, %v1201
      %v1203 = vsub.f32 %v923, %v1058
      %v1204 = vsub.f32 %v924, %v1059
      %v1205 = vand.u32 2147483647, %v1203
      %v1206 = vand.u32 2147483647, %v1204
      %v1207 = vadd.f32 %v1205, %v1206
      %v1208 = vrot.slane %v1207, 4
      %v1209 = vadd.f32 %v1207, %v1208
      %v1210 = vrot.slane %v1209, 2
      %v1211 = vadd.f32 %v1209, %v1210
      %v1212 = vrot.slane %v1211, 1
      %v1213 = vadd.f32 %v1211, %v1212
      %v1214 = vmul.f32 %v1202, %v1202
      %v1215 = vmul.f32 %v1213, %v1213
      %v1216 = vadd.f32 %v1214, %v1215
      %vm1217 = vcmp.gt.f32.partialorder %v927, 0.5
      %v1218 = vsel %vm1217, 1, 0
      %v1219 = vlaneseq
      %v1220 = vshrl.u32 %v1219, 7
      %v1221 = vsub.s32 0, %v1220
      %v1222 = vrot.slane %v1218, %v1221
      %vm1223 = vcmp.eq.s32.totalorder %v1222, 1
      %v1224 = vsel %vm1223, %v921, %v1190
      %v1225 = vsel %vm1223, %v922, %v1191
      %v1226 = vsel %vm1223, %v923, %v1058
      %v1227 = vsel %vm1223, %v924, %v1059
      %vm1228 = vcmp.le.f32.partialorder %v1216, 0.001
      %v1229 = vsel %vm1228, 1.0, 0.0
      %v1230 = vmax.f32 %v927, %v1229
      %v1231 = vlaneseq
      %v1232 = vshrl.u32 %v1231, 7
      %v1233 = vsub.s32 0, %v1232
      %v1234 = vrot.slane %v1224, %v1233
      %v1235 = vmul.f32 %v282, %v1234
      %v1236 = vmul.f32 %v283, %v1234
      %v1237 = vlaneseq
      %v1238 = vshrl.u32 %v1237, 7
      %v1239 = vsub.s32 1, %v1238
      %v1240 = vrot.slane %v1224, %v1239
      %v1241 = vmul.f32 %v284, %v1240
      %v1242 = vmul.f32 %v285, %v1240
      %v1243 = vlaneseq
      %v1244 = vshrl.u32 %v1243, 7
      %v1245 = vsub.s32 2, %v1244
      %v1246 = vrot.slane %v1224, %v1245
      %v1247 = vmul.f32 %v286, %v1246
      %v1248 = vmul.f32 %v287, %v1246
      %v1249 = vlaneseq
      %v1250 = vshrl.u32 %v1249, 7
      %v1251 = vsub.s32 3, %v1250
      %v1252 = vrot.slane %v1224, %v1251
      %v1253 = vmul.f32 %v288, %v1252
      %v1254 = vmul.f32 %v289, %v1252
      %v1255 = vlaneseq
      %v1256 = vshrl.u32 %v1255, 7
      %v1257 = vsub.s32 4, %v1256
      %v1258 = vrot.slane %v1224, %v1257
      %v1259 = vmul.f32 %v290, %v1258
      %v1260 = vmul.f32 %v291, %v1258
      %v1261 = vlaneseq
      %v1262 = vshrl.u32 %v1261, 7
      %v1263 = vsub.s32 5, %v1262
      %v1264 = vrot.slane %v1224, %v1263
      %v1265 = vmul.f32 %v292, %v1264
      %v1266 = vmul.f32 %v293, %v1264
      %v1267 = vlaneseq
      %v1268 = vshrl.u32 %v1267, 7
      %v1269 = vsub.s32 6, %v1268
      %v1270 = vrot.slane %v1224, %v1269
      %v1271 = vmul.f32 %v294, %v1270
      %v1272 = vmul.f32 %v295, %v1270
      %v1273 = vlaneseq
      %v1274 = vshrl.u32 %v1273, 7
      %v1275 = vsub.s32 7, %v1274
      %v1276 = vrot.slane %v1224, %v1275
      %v1277 = vmul.f32 %v296, %v1276
      %v1278 = vmul.f32 %v297, %v1276
      %v1279 = vlaneseq
      %v1280 = vshrl.u32 %v1279, 7
      %v1281 = vsub.s32 0, %v1280
      %v1282 = vrot.slane %v1225, %v1281
      %v1283 = vmul.f32 %v298, %v1282
      %v1284 = vmul.f32 %v299, %v1282
      %v1285 = vlaneseq
      %v1286 = vshrl.u32 %v1285, 7
      %v1287 = vsub.s32 1, %v1286
      %v1288 = vrot.slane %v1225, %v1287
      %v1289 = vmul.f32 %v300, %v1288
      %v1290 = vmul.f32 %v301, %v1288
      %v1291 = vlaneseq
      %v1292 = vshrl.u32 %v1291, 7
      %v1293 = vsub.s32 2, %v1292
      %v1294 = vrot.slane %v1225, %v1293
      %v1295 = vmul.f32 %v302, %v1294
      %v1296 = vmul.f32 %v303, %v1294
      %v1297 = vlaneseq
      %v1298 = vshrl.u32 %v1297, 7
      %v1299 = vsub.s32 3, %v1298
      %v1300 = vrot.slane %v1225, %v1299
      %v1301 = vmul.f32 %v304, %v1300
      %v1302 = vmul.f32 %v305, %v1300
      %v1303 = vlaneseq
      %v1304 = vshrl.u32 %v1303, 7
      %v1305 = vsub.s32 4, %v1304
      %v1306 = vrot.slane %v1225, %v1305
      %v1307 = vmul.f32 %v306, %v1306
      %v1308 = vmul.f32 %v307, %v1306
      %v1309 = vlaneseq
      %v1310 = vshrl.u32 %v1309, 7
      %v1311 = vsub.s32 5, %v1310
      %v1312 = vrot.slane %v1225, %v1311
      %v1313 = vmul.f32 %v308, %v1312
      %v1314 = vmul.f32 %v309, %v1312
      %v1315 = vlaneseq
      %v1316 = vshrl.u32 %v1315, 7
      %v1317 = vsub.s32 6, %v1316
      %v1318 = vrot.slane %v1225, %v1317
      %v1319 = vmul.f32 %v310, %v1318
      %v1320 = vmul.f32 %v311, %v1318
      %v1321 = vlaneseq
      %v1322 = vshrl.u32 %v1321, 7
      %v1323 = vsub.s32 7, %v1322
      %v1324 = vrot.slane %v1225, %v1323
      %v1325 = vmul.f32 %v312, %v1324
      %v1326 = vmul.f32 %v313, %v1324
      %v1327 = vadd.f32 %v1235, %v1241
      %v1328 = vadd.f32 %v1236, %v1242
      %v1329 = vadd.f32 %v1247, %v1253
      %v1330 = vadd.f32 %v1248, %v1254
      %v1331 = vadd.f32 %v1259, %v1265
      %v1332 = vadd.f32 %v1260, %v1266
      %v1333 = vadd.f32 %v1271, %v1277
      %v1334 = vadd.f32 %v1272, %v1278
      %v1335 = vadd.f32 %v1283, %v1289
      %v1336 = vadd.f32 %v1284, %v1290
      %v1337 = vadd.f32 %v1295, %v1301
      %v1338 = vadd.f32 %v1296, %v1302
      %v1339 = vadd.f32 %v1307, %v1313
      %v1340 = vadd.f32 %v1308, %v1314
      %v1341 = vadd.f32 %v1319, %v1325
      %v1342 = vadd.f32 %v1320, %v1326
      %v1343 = vadd.f32 %v1327, %v1329
      %v1344 = vadd.f32 %v1328, %v1330
      %v1345 = vadd.f32 %v1331, %v1333
      %v1346 = vadd.f32 %v1332, %v1334
      %v1347 = vadd.f32 %v1335, %v1337
      %v1348 = vadd.f32 %v1336, %v1338
      %v1349 = vadd.f32 %v1339, %v1341
      %v1350 = vadd.f32 %v1340, %v1342
      %v1351 = vadd.f32 %v1343, %v1345
      %v1352 = vadd.f32 %v1344, %v1346
      %v1353 = vadd.f32 %v1347, %v1349
      %v1354 = vadd.f32 %v1348, %v1350
      %v1355 = vadd.f32 %v1351, %v1353
      %v1356 = vadd.f32 %v1352, %v1354
      %v1357 = vrcp.pop %v1355
      %v1358 = vrcp.pop %v1356
      %v1359 = vmul.f32 %v594, %v1357
      %v1360 = vmul.f32 %v595, %v1358
      %v1361 = vsel %vm84, %v1359, 1.0
      %v1362 = vsel %vm85, %v1360, 1.0
      %v1363 = vlaneseq
      %v1364 = vshrl.u32 %v1363, 7
      %v1365 = vsub.s32 0, %v1364
      %v1366 = vrot.slane %v1361, %v1365
      %v1367 = vmul.f32 %v532, %v1366
      %v1368 = vmul.f32 %v533, %v1366
      %v1369 = vlaneseq
      %v1370 = vshrl.u32 %v1369, 7
      %v1371 = vsub.s32 1, %v1370
      %v1372 = vrot.slane %v1361, %v1371
      %v1373 = vmul.f32 %v534, %v1372
      %v1374 = vmul.f32 %v535, %v1372
      %v1375 = vlaneseq
      %v1376 = vshrl.u32 %v1375, 7
      %v1377 = vsub.s32 2, %v1376
      %v1378 = vrot.slane %v1361, %v1377
      %v1379 = vmul.f32 %v536, %v1378
      %v1380 = vmul.f32 %v537, %v1378
      %v1381 = vlaneseq
      %v1382 = vshrl.u32 %v1381, 7
      %v1383 = vsub.s32 3, %v1382
      %v1384 = vrot.slane %v1361, %v1383
      %v1385 = vmul.f32 %v538, %v1384
      %v1386 = vmul.f32 %v539, %v1384
      %v1387 = vlaneseq
      %v1388 = vshrl.u32 %v1387, 7
      %v1389 = vsub.s32 4, %v1388
      %v1390 = vrot.slane %v1361, %v1389
      %v1391 = vmul.f32 %v540, %v1390
      %v1392 = vmul.f32 %v541, %v1390
      %v1393 = vlaneseq
      %v1394 = vshrl.u32 %v1393, 7
      %v1395 = vsub.s32 5, %v1394
      %v1396 = vrot.slane %v1361, %v1395
      %v1397 = vmul.f32 %v542, %v1396
      %v1398 = vmul.f32 %v543, %v1396
      %v1399 = vlaneseq
      %v1400 = vshrl.u32 %v1399, 7
      %v1401 = vsub.s32 6, %v1400
      %v1402 = vrot.slane %v1361, %v1401
      %v1403 = vmul.f32 %v544, %v1402
      %v1404 = vmul.f32 %v545, %v1402
      %v1405 = vlaneseq
      %v1406 = vshrl.u32 %v1405, 7
      %v1407 = vsub.s32 7, %v1406
      %v1408 = vrot.slane %v1361, %v1407
      %v1409 = vmul.f32 %v546, %v1408
      %v1410 = vmul.f32 %v547, %v1408
      %v1411 = vlaneseq
      %v1412 = vshrl.u32 %v1411, 7
      %v1413 = vsub.s32 0, %v1412
      %v1414 = vrot.slane %v1362, %v1413
      %v1415 = vmul.f32 %v548, %v1414
      %v1416 = vmul.f32 %v549, %v1414
      %v1417 = vlaneseq
      %v1418 = vshrl.u32 %v1417, 7
      %v1419 = vsub.s32 1, %v1418
      %v1420 = vrot.slane %v1362, %v1419
      %v1421 = vmul.f32 %v550, %v1420
      %v1422 = vmul.f32 %v551, %v1420
      %v1423 = vlaneseq
      %v1424 = vshrl.u32 %v1423, 7
      %v1425 = vsub.s32 2, %v1424
      %v1426 = vrot.slane %v1362, %v1425
      %v1427 = vmul.f32 %v552, %v1426
      %v1428 = vmul.f32 %v553, %v1426
      %v1429 = vlaneseq
      %v1430 = vshrl.u32 %v1429, 7
      %v1431 = vsub.s32 3, %v1430
      %v1432 = vrot.slane %v1362, %v1431
      %v1433 = vmul.f32 %v554, %v1432
      %v1434 = vmul.f32 %v555, %v1432
      %v1435 = vlaneseq
      %v1436 = vshrl.u32 %v1435, 7
      %v1437 = vsub.s32 4, %v1436
      %v1438 = vrot.slane %v1362, %v1437
      %v1439 = vmul.f32 %v556, %v1438
      %v1440 = vmul.f32 %v557, %v1438
      %v1441 = vlaneseq
      %v1442 = vshrl.u32 %v1441, 7
      %v1443 = vsub.s32 5, %v1442
      %v1444 = vrot.slane %v1362, %v1443
      %v1445 = vmul.f32 %v558, %v1444
      %v1446 = vmul.f32 %v559, %v1444
      %v1447 = vlaneseq
      %v1448 = vshrl.u32 %v1447, 7
      %v1449 = vsub.s32 6, %v1448
      %v1450 = vrot.slane %v1362, %v1449
      %v1451 = vmul.f32 %v560, %v1450
      %v1452 = vmul.f32 %v561, %v1450
      %v1453 = vlaneseq
      %v1454 = vshrl.u32 %v1453, 7
      %v1455 = vsub.s32 7, %v1454
      %v1456 = vrot.slane %v1362, %v1455
      %v1457 = vmul.f32 %v562, %v1456
      %v1458 = vmul.f32 %v563, %v1456
      %v1459 = vadd.f32 %v1367, %v1373
      %v1460 = vadd.f32 %v1368, %v1374
      %v1461 = vadd.f32 %v1379, %v1385
      %v1462 = vadd.f32 %v1380, %v1386
      %v1463 = vadd.f32 %v1391, %v1397
      %v1464 = vadd.f32 %v1392, %v1398
      %v1465 = vadd.f32 %v1403, %v1409
      %v1466 = vadd.f32 %v1404, %v1410
      %v1467 = vadd.f32 %v1415, %v1421
      %v1468 = vadd.f32 %v1416, %v1422
      %v1469 = vadd.f32 %v1427, %v1433
      %v1470 = vadd.f32 %v1428, %v1434
      %v1471 = vadd.f32 %v1439, %v1445
      %v1472 = vadd.f32 %v1440, %v1446
      %v1473 = vadd.f32 %v1451, %v1457
      %v1474 = vadd.f32 %v1452, %v1458
      %v1475 = vadd.f32 %v1459, %v1461
      %v1476 = vadd.f32 %v1460, %v1462
      %v1477 = vadd.f32 %v1463, %v1465
      %v1478 = vadd.f32 %v1464, %v1466
      %v1479 = vadd.f32 %v1467, %v1469
      %v1480 = vadd.f32 %v1468, %v1470
      %v1481 = vadd.f32 %v1471, %v1473
      %v1482 = vadd.f32 %v1472, %v1474
      %v1483 = vadd.f32 %v1475, %v1477
      %v1484 = vadd.f32 %v1476, %v1478
      %v1485 = vadd.f32 %v1479, %v1481
      %v1486 = vadd.f32 %v1480, %v1482
      %v1487 = vadd.f32 %v1483, %v1485
      %v1488 = vadd.f32 %v1484, %v1486
      %v1489 = vrcp.pop %v1487
      %v1490 = vrcp.pop %v1488
      %v1491 = vmul.f32 %v578, %v1489
      %v1492 = vmul.f32 %v579, %v1490
      %v1493 = vsel %vm334, %v1491, 1.0
      %v1494 = vsel %vm335, %v1492, 1.0
      %v1495 = vsub.f32 %v1224, %v1493
      %v1496 = vsub.f32 %v1225, %v1494
      %v1497 = vand.u32 2147483647, %v1495
      %v1498 = vand.u32 2147483647, %v1496
      %v1499 = vadd.f32 %v1497, %v1498
      %v1500 = vrot.slane %v1499, 4
      %v1501 = vadd.f32 %v1499, %v1500
      %v1502 = vrot.slane %v1501, 2
      %v1503 = vadd.f32 %v1501, %v1502
      %v1504 = vrot.slane %v1503, 1
      %v1505 = vadd.f32 %v1503, %v1504
      %v1506 = vsub.f32 %v1226, %v1361
      %v1507 = vsub.f32 %v1227, %v1362
      %v1508 = vand.u32 2147483647, %v1506
      %v1509 = vand.u32 2147483647, %v1507
      %v1510 = vadd.f32 %v1508, %v1509
      %v1511 = vrot.slane %v1510, 4
      %v1512 = vadd.f32 %v1510, %v1511
      %v1513 = vrot.slane %v1512, 2
      %v1514 = vadd.f32 %v1512, %v1513
      %v1515 = vrot.slane %v1514, 1
      %v1516 = vadd.f32 %v1514, %v1515
      %v1517 = vmul.f32 %v1505, %v1505
      %v1518 = vmul.f32 %v1516, %v1516
      %v1519 = vadd.f32 %v1517, %v1518
      %vm1520 = vcmp.gt.f32.partialorder %v1230, 0.5
      %v1521 = vsel %vm1520, 1, 0
      %v1522 = vlaneseq
      %v1523 = vshrl.u32 %v1522, 7
      %v1524 = vsub.s32 0, %v1523
      %v1525 = vrot.slane %v1521, %v1524
      %vm1526 = vcmp.eq.s32.totalorder %v1525, 1
      %v1527 = vsel %vm1526, %v1224, %v1493
      %v1528 = vsel %vm1526, %v1225, %v1494
      %v1529 = vsel %vm1526, %v1226, %v1361
      %v1530 = vsel %vm1526, %v1227, %v1362
      %vm1531 = vcmp.le.f32.partialorder %v1519, 0.001
      %v1532 = vsel %vm1531, 1.0, 0.0
      %v1533 = vmax.f32 %v1230, %v1532
      %v1534 = vlaneseq
      %v1535 = vshrl.u32 %v1534, 7
      %v1536 = vsub.s32 0, %v1535
      %v1537 = vrot.slane %v1527, %v1536
      %v1538 = vmul.f32 %v282, %v1537
      %v1539 = vmul.f32 %v283, %v1537
      %v1540 = vlaneseq
      %v1541 = vshrl.u32 %v1540, 7
      %v1542 = vsub.s32 1, %v1541
      %v1543 = vrot.slane %v1527, %v1542
      %v1544 = vmul.f32 %v284, %v1543
      %v1545 = vmul.f32 %v285, %v1543
      %v1546 = vlaneseq
      %v1547 = vshrl.u32 %v1546, 7
      %v1548 = vsub.s32 2, %v1547
      %v1549 = vrot.slane %v1527, %v1548
      %v1550 = vmul.f32 %v286, %v1549
      %v1551 = vmul.f32 %v287, %v1549
      %v1552 = vlaneseq
      %v1553 = vshrl.u32 %v1552, 7
      %v1554 = vsub.s32 3, %v1553
      %v1555 = vrot.slane %v1527, %v1554
      %v1556 = vmul.f32 %v288, %v1555
      %v1557 = vmul.f32 %v289, %v1555
      %v1558 = vlaneseq
      %v1559 = vshrl.u32 %v1558, 7
      %v1560 = vsub.s32 4, %v1559
      %v1561 = vrot.slane %v1527, %v1560
      %v1562 = vmul.f32 %v290, %v1561
      %v1563 = vmul.f32 %v291, %v1561
      %v1564 = vlaneseq
      %v1565 = vshrl.u32 %v1564, 7
      %v1566 = vsub.s32 5, %v1565
      %v1567 = vrot.slane %v1527, %v1566
      %v1568 = vmul.f32 %v292, %v1567
      %v1569 = vmul.f32 %v293, %v1567
      %v1570 = vlaneseq
      %v1571 = vshrl.u32 %v1570, 7
      %v1572 = vsub.s32 6, %v1571
      %v1573 = vrot.slane %v1527, %v1572
      %v1574 = vmul.f32 %v294, %v1573
      %v1575 = vmul.f32 %v295, %v1573
      %v1576 = vlaneseq
      %v1577 = vshrl.u32 %v1576, 7
      %v1578 = vsub.s32 7, %v1577
      %v1579 = vrot.slane %v1527, %v1578
      %v1580 = vmul.f32 %v296, %v1579
      %v1581 = vmul.f32 %v297, %v1579
      %v1582 = vlaneseq
      %v1583 = vshrl.u32 %v1582, 7
      %v1584 = vsub.s32 0, %v1583
      %v1585 = vrot.slane %v1528, %v1584
      %v1586 = vmul.f32 %v298, %v1585
      %v1587 = vmul.f32 %v299, %v1585
      %v1588 = vlaneseq
      %v1589 = vshrl.u32 %v1588, 7
      %v1590 = vsub.s32 1, %v1589
      %v1591 = vrot.slane %v1528, %v1590
      %v1592 = vmul.f32 %v300, %v1591
      %v1593 = vmul.f32 %v301, %v1591
      %v1594 = vlaneseq
      %v1595 = vshrl.u32 %v1594, 7
      %v1596 = vsub.s32 2, %v1595
      %v1597 = vrot.slane %v1528, %v1596
      %v1598 = vmul.f32 %v302, %v1597
      %v1599 = vmul.f32 %v303, %v1597
      %v1600 = vlaneseq
      %v1601 = vshrl.u32 %v1600, 7
      %v1602 = vsub.s32 3, %v1601
      %v1603 = vrot.slane %v1528, %v1602
      %v1604 = vmul.f32 %v304, %v1603
      %v1605 = vmul.f32 %v305, %v1603
      %v1606 = vlaneseq
      %v1607 = vshrl.u32 %v1606, 7
      %v1608 = vsub.s32 4, %v1607
      %v1609 = vrot.slane %v1528, %v1608
      %v1610 = vmul.f32 %v306, %v1609
      %v1611 = vmul.f32 %v307, %v1609
      %v1612 = vlaneseq
      %v1613 = vshrl.u32 %v1612, 7
      %v1614 = vsub.s32 5, %v1613
      %v1615 = vrot.slane %v1528, %v1614
      %v1616 = vmul.f32 %v308, %v1615
      %v1617 = vmul.f32 %v309, %v1615
      %v1618 = vlaneseq
      %v1619 = vshrl.u32 %v1618, 7
      %v1620 = vsub.s32 6, %v1619
      %v1621 = vrot.slane %v1528, %v1620
      %v1622 = vmul.f32 %v310, %v1621
      %v1623 = vmul.f32 %v311, %v1621
      %v1624 = vlaneseq
      %v1625 = vshrl.u32 %v1624, 7
      %v1626 = vsub.s32 7, %v1625
      %v1627 = vrot.slane %v1528, %v1626
      %v1628 = vmul.f32 %v312, %v1627
      %v1629 = vmul.f32 %v313, %v1627
      %v1630 = vadd.f32 %v1538, %v1544
      %v1631 = vadd.f32 %v1539, %v1545
      %v1632 = vadd.f32 %v1550, %v1556
      %v1633 = vadd.f32 %v1551, %v1557
      %v1634 = vadd.f32 %v1562, %v1568
      %v1635 = vadd.f32 %v1563, %v1569
      %v1636 = vadd.f32 %v1574, %v1580
      %v1637 = vadd.f32 %v1575, %v1581
      %v1638 = vadd.f32 %v1586, %v1592
      %v1639 = vadd.f32 %v1587, %v1593
      %v1640 = vadd.f32 %v1598, %v1604
      %v1641 = vadd.f32 %v1599, %v1605
      %v1642 = vadd.f32 %v1610, %v1616
      %v1643 = vadd.f32 %v1611, %v1617
      %v1644 = vadd.f32 %v1622, %v1628
      %v1645 = vadd.f32 %v1623, %v1629
      %v1646 = vadd.f32 %v1630, %v1632
      %v1647 = vadd.f32 %v1631, %v1633
      %v1648 = vadd.f32 %v1634, %v1636
      %v1649 = vadd.f32 %v1635, %v1637
      %v1650 = vadd.f32 %v1638, %v1640
      %v1651 = vadd.f32 %v1639, %v1641
      %v1652 = vadd.f32 %v1642, %v1644
      %v1653 = vadd.f32 %v1643, %v1645
      %v1654 = vadd.f32 %v1646, %v1648
      %v1655 = vadd.f32 %v1647, %v1649
      %v1656 = vadd.f32 %v1650, %v1652
      %v1657 = vadd.f32 %v1651, %v1653
      %v1658 = vadd.f32 %v1654, %v1656
      %v1659 = vadd.f32 %v1655, %v1657
      %v1660 = vrcp.pop %v1658
      %v1661 = vrcp.pop %v1659
      %v1662 = vmul.f32 %v594, %v1660
      %v1663 = vmul.f32 %v595, %v1661
      %v1664 = vsel %vm84, %v1662, 1.0
      %v1665 = vsel %vm85, %v1663, 1.0
      %v1666 = vlaneseq
      %v1667 = vshrl.u32 %v1666, 7
      %v1668 = vsub.s32 0, %v1667
      %v1669 = vrot.slane %v1664, %v1668
      %v1670 = vmul.f32 %v532, %v1669
      %v1671 = vmul.f32 %v533, %v1669
      %v1672 = vlaneseq
      %v1673 = vshrl.u32 %v1672, 7
      %v1674 = vsub.s32 1, %v1673
      %v1675 = vrot.slane %v1664, %v1674
      %v1676 = vmul.f32 %v534, %v1675
      %v1677 = vmul.f32 %v535, %v1675
      %v1678 = vlaneseq
      %v1679 = vshrl.u32 %v1678, 7
      %v1680 = vsub.s32 2, %v1679
      %v1681 = vrot.slane %v1664, %v1680
      %v1682 = vmul.f32 %v536, %v1681
      %v1683 = vmul.f32 %v537, %v1681
      %v1684 = vlaneseq
      %v1685 = vshrl.u32 %v1684, 7
      %v1686 = vsub.s32 3, %v1685
      %v1687 = vrot.slane %v1664, %v1686
      %v1688 = vmul.f32 %v538, %v1687
      %v1689 = vmul.f32 %v539, %v1687
      %v1690 = vlaneseq
      %v1691 = vshrl.u32 %v1690, 7
      %v1692 = vsub.s32 4, %v1691
      %v1693 = vrot.slane %v1664, %v1692
      %v1694 = vmul.f32 %v540, %v1693
      %v1695 = vmul.f32 %v541, %v1693
      %v1696 = vlaneseq
      %v1697 = vshrl.u32 %v1696, 7
      %v1698 = vsub.s32 5, %v1697
      %v1699 = vrot.slane %v1664, %v1698
      %v1700 = vmul.f32 %v542, %v1699
      %v1701 = vmul.f32 %v543, %v1699
      %v1702 = vlaneseq
      %v1703 = vshrl.u32 %v1702, 7
      %v1704 = vsub.s32 6, %v1703
      %v1705 = vrot.slane %v1664, %v1704
      %v1706 = vmul.f32 %v544, %v1705
      %v1707 = vmul.f32 %v545, %v1705
      %v1708 = vlaneseq
      %v1709 = vshrl.u32 %v1708, 7
      %v1710 = vsub.s32 7, %v1709
      %v1711 = vrot.slane %v1664, %v1710
      %v1712 = vmul.f32 %v546, %v1711
      %v1713 = vmul.f32 %v547, %v1711
      %v1714 = vlaneseq
      %v1715 = vshrl.u32 %v1714, 7
      %v1716 = vsub.s32 0, %v1715
      %v1717 = vrot.slane %v1665, %v1716
      %v1718 = vmul.f32 %v548, %v1717
      %v1719 = vmul.f32 %v549, %v1717
      %v1720 = vlaneseq
      %v1721 = vshrl.u32 %v1720, 7
      %v1722 = vsub.s32 1, %v1721
      %v1723 = vrot.slane %v1665, %v1722
      %v1724 = vmul.f32 %v550, %v1723
      %v1725 = vmul.f32 %v551, %v1723
      %v1726 = vlaneseq
      %v1727 = vshrl.u32 %v1726, 7
      %v1728 = vsub.s32 2, %v1727
      %v1729 = vrot.slane %v1665, %v1728
      %v1730 = vmul.f32 %v552, %v1729
      %v1731 = vmul.f32 %v553, %v1729
      %v1732 = vlaneseq
      %v1733 = vshrl.u32 %v1732, 7
      %v1734 = vsub.s32 3, %v1733
      %v1735 = vrot.slane %v1665, %v1734
      %v1736 = vmul.f32 %v554, %v1735
      %v1737 = vmul.f32 %v555, %v1735
      %v1738 = vlaneseq
      %v1739 = vshrl.u32 %v1738, 7
      %v1740 = vsub.s32 4, %v1739
      %v1741 = vrot.slane %v1665, %v1740
      %v1742 = vmul.f32 %v556, %v1741
      %v1743 = vmul.f32 %v557, %v1741
      %v1744 = vlaneseq
      %v1745 = vshrl.u32 %v1744, 7
      %v1746 = vsub.s32 5, %v1745
      %v1747 = vrot.slane %v1665, %v1746
      %v1748 = vmul.f32 %v558, %v1747
      %v1749 = vmul.f32 %v559, %v1747
      %v1750 = vlaneseq
      %v1751 = vshrl.u32 %v1750, 7
      %v1752 = vsub.s32 6, %v1751
      %v1753 = vrot.slane %v1665, %v1752
      %v1754 = vmul.f32 %v560, %v1753
      %v1755 = vmul.f32 %v561, %v1753
      %v1756 = vlaneseq
      %v1757 = vshrl.u32 %v1756, 7
      %v1758 = vsub.s32 7, %v1757
      %v1759 = vrot.slane %v1665, %v1758
      %v1760 = vmul.f32 %v562, %v1759
      %v1761 = vmul.f32 %v563, %v1759
      %v1762 = vadd.f32 %v1670, %v1676
      %v1763 = vadd.f32 %v1671, %v1677
      %v1764 = vadd.f32 %v1682, %v1688
      %v1765 = vadd.f32 %v1683, %v1689
      %v1766 = vadd.f32 %v1694, %v1700
      %v1767 = vadd.f32 %v1695, %v1701
      %v1768 = vadd.f32 %v1706, %v1712
      %v1769 = vadd.f32 %v1707, %v1713
      %v1770 = vadd.f32 %v1718, %v1724
      %v1771 = vadd.f32 %v1719, %v1725
      %v1772 = vadd.f32 %v1730, %v1736
      %v1773 = vadd.f32 %v1731, %v1737
      %v1774 = vadd.f32 %v1742, %v1748
      %v1775 = vadd.f32 %v1743, %v1749
      %v1776 = vadd.f32 %v1754, %v1760
      %v1777 = vadd.f32 %v1755, %v1761
      %v1778 = vadd.f32 %v1762, %v1764
      %v1779 = vadd.f32 %v1763, %v1765
      %v1780 = vadd.f32 %v1766, %v1768
      %v1781 = vadd.f32 %v1767, %v1769
      %v1782 = vadd.f32 %v1770, %v1772
      %v1783 = vadd.f32 %v1771, %v1773
      %v1784 = vadd.f32 %v1774, %v1776
      %v1785 = vadd.f32 %v1775, %v1777
      %v1786 = vadd.f32 %v1778, %v1780
      %v1787 = vadd.f32 %v1779, %v1781
      %v1788 = vadd.f32 %v1782, %v1784
      %v1789 = vadd.f32 %v1783, %v1785
      %v1790 = vadd.f32 %v1786, %v1788
      %v1791 = vadd.f32 %v1787, %v1789
      %v1792 = vrcp.pop %v1790
      %v1793 = vrcp.pop %v1791
      %v1794 = vmul.f32 %v578, %v1792
      %v1795 = vmul.f32 %v579, %v1793
      %v1796 = vsel %vm334, %v1794, 1.0
      %v1797 = vsel %vm335, %v1795, 1.0
      %v1798 = vsub.f32 %v1527, %v1796
      %v1799 = vsub.f32 %v1528, %v1797
      %v1800 = vand.u32 2147483647, %v1798
      %v1801 = vand.u32 2147483647, %v1799
      %v1802 = vadd.f32 %v1800, %v1801
      %v1803 = vrot.slane %v1802, 4
      %v1804 = vadd.f32 %v1802, %v1803
      %v1805 = vrot.slane %v1804, 2
      %v1806 = vadd.f32 %v1804, %v1805
      %v1807 = vrot.slane %v1806, 1
      %v1808 = vadd.f32 %v1806, %v1807
      %v1809 = vsub.f32 %v1529, %v1664
      %v1810 = vsub.f32 %v1530, %v1665
      %v1811 = vand.u32 2147483647, %v1809
      %v1812 = vand.u32 2147483647, %v1810
      %v1813 = vadd.f32 %v1811, %v1812
      %v1814 = vrot.slane %v1813, 4
      %v1815 = vadd.f32 %v1813, %v1814
      %v1816 = vrot.slane %v1815, 2
      %v1817 = vadd.f32 %v1815, %v1816
      %v1818 = vrot.slane %v1817, 1
      %v1819 = vadd.f32 %v1817, %v1818
      %v1820 = vmul.f32 %v1808, %v1808
      %v1821 = vmul.f32 %v1819, %v1819
      %v1822 = vadd.f32 %v1820, %v1821
      %vm1823 = vcmp.gt.f32.partialorder %v1533, 0.5
      %v1824 = vsel %vm1823, 1, 0
      %v1825 = vlaneseq
      %v1826 = vshrl.u32 %v1825, 7
      %v1827 = vsub.s32 0, %v1826
      %v1828 = vrot.slane %v1824, %v1827
      %vm1829 = vcmp.eq.s32.totalorder %v1828, 1
      %v1830 = vsel %vm1829, %v1527, %v1796
      %v1831 = vsel %vm1829, %v1528, %v1797
      %v1832 = vsel %vm1829, %v1529, %v1664
      %v1833 = vsel %vm1829, %v1530, %v1665
      %vm1834 = vcmp.le.f32.partialorder %v1822, 0.001
      %v1835 = vsel %vm1834, 1.0, 0.0
      %v1836 = vmax.f32 %v1533, %v1835
      %v1837 = vlaneseq
      %v1838 = vshrl.u32 %v1837, 7
      %v1839 = vsub.s32 0, %v1838
      %v1840 = vrot.slane %v1830, %v1839
      %v1841 = vmul.f32 %v282, %v1840
      %v1842 = vmul.f32 %v283, %v1840
      %v1843 = vlaneseq
      %v1844 = vshrl.u32 %v1843, 7
      %v1845 = vsub.s32 1, %v1844
      %v1846 = vrot.slane %v1830, %v1845
      %v1847 = vmul.f32 %v284, %v1846
      %v1848 = vmul.f32 %v285, %v1846
      %v1849 = vlaneseq
      %v1850 = vshrl.u32 %v1849, 7
      %v1851 = vsub.s32 2, %v1850
      %v1852 = vrot.slane %v1830, %v1851
      %v1853 = vmul.f32 %v286, %v1852
      %v1854 = vmul.f32 %v287, %v1852
      %v1855 = vlaneseq
      %v1856 = vshrl.u32 %v1855, 7
      %v1857 = vsub.s32 3, %v1856
      %v1858 = vrot.slane %v1830, %v1857
      %v1859 = vmul.f32 %v288, %v1858
      %v1860 = vmul.f32 %v289, %v1858
      %v1861 = vlaneseq
      %v1862 = vshrl.u32 %v1861, 7
      %v1863 = vsub.s32 4, %v1862
      %v1864 = vrot.slane %v1830, %v1863
      %v1865 = vmul.f32 %v290, %v1864
      %v1866 = vmul.f32 %v291, %v1864
      %v1867 = vlaneseq
      %v1868 = vshrl.u32 %v1867, 7
      %v1869 = vsub.s32 5, %v1868
      %v1870 = vrot.slane %v1830, %v1869
      %v1871 = vmul.f32 %v292, %v1870
      %v1872 = vmul.f32 %v293, %v1870
      %v1873 = vlaneseq
      %v1874 = vshrl.u32 %v1873, 7
      %v1875 = vsub.s32 6, %v1874
      %v1876 = vrot.slane %v1830, %v1875
      %v1877 = vmul.f32 %v294, %v1876
      %v1878 = vmul.f32 %v295, %v1876
      %v1879 = vlaneseq
      %v1880 = vshrl.u32 %v1879, 7
      %v1881 = vsub.s32 7, %v1880
      %v1882 = vrot.slane %v1830, %v1881
      %v1883 = vmul.f32 %v296, %v1882
      %v1884 = vmul.f32 %v297, %v1882
      %v1885 = vlaneseq
      %v1886 = vshrl.u32 %v1885, 7
      %v1887 = vsub.s32 0, %v1886
      %v1888 = vrot.slane %v1831, %v1887
      %v1889 = vmul.f32 %v298, %v1888
      %v1890 = vmul.f32 %v299, %v1888
      %v1891 = vlaneseq
      %v1892 = vshrl.u32 %v1891, 7
      %v1893 = vsub.s32 1, %v1892
      %v1894 = vrot.slane %v1831, %v1893
      %v1895 = vmul.f32 %v300, %v1894
      %v1896 = vmul.f32 %v301, %v1894
      %v1897 = vlaneseq
      %v1898 = vshrl.u32 %v1897, 7
      %v1899 = vsub.s32 2, %v1898
      %v1900 = vrot.slane %v1831, %v1899
      %v1901 = vmul.f32 %v302, %v1900
      %v1902 = vmul.f32 %v303, %v1900
      %v1903 = vlaneseq
      %v1904 = vshrl.u32 %v1903, 7
      %v1905 = vsub.s32 3, %v1904
      %v1906 = vrot.slane %v1831, %v1905
      %v1907 = vmul.f32 %v304, %v1906
      %v1908 = vmul.f32 %v305, %v1906
      %v1909 = vlaneseq
      %v1910 = vshrl.u32 %v1909, 7
      %v1911 = vsub.s32 4, %v1910
      %v1912 = vrot.slane %v1831, %v1911
      %v1913 = vmul.f32 %v306, %v1912
      %v1914 = vmul.f32 %v307, %v1912
      %v1915 = vlaneseq
      %v1916 = vshrl.u32 %v1915, 7
      %v1917 = vsub.s32 5, %v1916
      %v1918 = vrot.slane %v1831, %v1917
      %v1919 = vmul.f32 %v308, %v1918
      %v1920 = vmul.f32 %v309, %v1918
      %v1921 = vlaneseq
      %v1922 = vshrl.u32 %v1921, 7
      %v1923 = vsub.s32 6, %v1922
      %v1924 = vrot.slane %v1831, %v1923
      %v1925 = vmul.f32 %v310, %v1924
      %v1926 = vmul.f32 %v311, %v1924
      %v1927 = vlaneseq
      %v1928 = vshrl.u32 %v1927, 7
      %v1929 = vsub.s32 7, %v1928
      %v1930 = vrot.slane %v1831, %v1929
      %v1931 = vmul.f32 %v312, %v1930
      %v1932 = vmul.f32 %v313, %v1930
      %v1933 = vadd.f32 %v1841, %v1847
      %v1934 = vadd.f32 %v1842, %v1848
      %v1935 = vadd.f32 %v1853, %v1859
      %v1936 = vadd.f32 %v1854, %v1860
      %v1937 = vadd.f32 %v1865, %v1871
      %v1938 = vadd.f32 %v1866, %v1872
      %v1939 = vadd.f32 %v1877, %v1883
      %v1940 = vadd.f32 %v1878, %v1884
      %v1941 = vadd.f32 %v1889, %v1895
      %v1942 = vadd.f32 %v1890, %v1896
      %v1943 = vadd.f32 %v1901, %v1907
      %v1944 = vadd.f32 %v1902, %v1908
      %v1945 = vadd.f32 %v1913, %v1919
      %v1946 = vadd.f32 %v1914, %v1920
      %v1947 = vadd.f32 %v1925, %v1931
      %v1948 = vadd.f32 %v1926, %v1932
      %v1949 = vadd.f32 %v1933, %v1935
      %v1950 = vadd.f32 %v1934, %v1936
      %v1951 = vadd.f32 %v1937, %v1939
      %v1952 = vadd.f32 %v1938, %v1940
      %v1953 = vadd.f32 %v1941, %v1943
      %v1954 = vadd.f32 %v1942, %v1944
      %v1955 = vadd.f32 %v1945, %v1947
      %v1956 = vadd.f32 %v1946, %v1948
      %v1957 = vadd.f32 %v1949, %v1951
      %v1958 = vadd.f32 %v1950, %v1952
      %v1959 = vadd.f32 %v1953, %v1955
      %v1960 = vadd.f32 %v1954, %v1956
      %v1961 = vadd.f32 %v1957, %v1959
      %v1962 = vadd.f32 %v1958, %v1960
      %v1963 = vrcp.pop %v1961
      %v1964 = vrcp.pop %v1962
      %v1965 = vmul.f32 %v594, %v1963
      %v1966 = vmul.f32 %v595, %v1964
      %v1967 = vsel %vm84, %v1965, 1.0
      %v1968 = vsel %vm85, %v1966, 1.0
      %v1969 = vlaneseq
      %v1970 = vshrl.u32 %v1969, 7
      %v1971 = vsub.s32 0, %v1970
      %v1972 = vrot.slane %v1967, %v1971
      %v1973 = vmul.f32 %v532, %v1972
      %v1974 = vmul.f32 %v533, %v1972
      %v1975 = vlaneseq
      %v1976 = vshrl.u32 %v1975, 7
      %v1977 = vsub.s32 1, %v1976
      %v1978 = vrot.slane %v1967, %v1977
      %v1979 = vmul.f32 %v534, %v1978
      %v1980 = vmul.f32 %v535, %v1978
      %v1981 = vlaneseq
      %v1982 = vshrl.u32 %v1981, 7
      %v1983 = vsub.s32 2, %v1982
      %v1984 = vrot.slane %v1967, %v1983
      %v1985 = vmul.f32 %v536, %v1984
      %v1986 = vmul.f32 %v537, %v1984
      %v1987 = vlaneseq
      %v1988 = vshrl.u32 %v1987, 7
      %v1989 = vsub.s32 3, %v1988
      %v1990 = vrot.slane %v1967, %v1989
      %v1991 = vmul.f32 %v538, %v1990
      %v1992 = vmul.f32 %v539, %v1990
      %v1993 = vlaneseq
      %v1994 = vshrl.u32 %v1993, 7
      %v1995 = vsub.s32 4, %v1994
      %v1996 = vrot.slane %v1967, %v1995
      %v1997 = vmul.f32 %v540, %v1996
      %v1998 = vmul.f32 %v541, %v1996
      %v1999 = vlaneseq
      %v2000 = vshrl.u32 %v1999, 7
      %v2001 = vsub.s32 5, %v2000
      %v2002 = vrot.slane %v1967, %v2001
      %v2003 = vmul.f32 %v542, %v2002
      %v2004 = vmul.f32 %v543, %v2002
      %v2005 = vlaneseq
      %v2006 = vshrl.u32 %v2005, 7
      %v2007 = vsub.s32 6, %v2006
      %v2008 = vrot.slane %v1967, %v2007
      %v2009 = vmul.f32 %v544, %v2008
      %v2010 = vmul.f32 %v545, %v2008
      %v2011 = vlaneseq
      %v2012 = vshrl.u32 %v2011, 7
      %v2013 = vsub.s32 7, %v2012
      %v2014 = vrot.slane %v1967, %v2013
      %v2015 = vmul.f32 %v546, %v2014
      %v2016 = vmul.f32 %v547, %v2014
      %v2017 = vlaneseq
      %v2018 = vshrl.u32 %v2017, 7
      %v2019 = vsub.s32 0, %v2018
      %v2020 = vrot.slane %v1968, %v2019
      %v2021 = vmul.f32 %v548, %v2020
      %v2022 = vmul.f32 %v549, %v2020
      %v2023 = vlaneseq
      %v2024 = vshrl.u32 %v2023, 7
      %v2025 = vsub.s32 1, %v2024
      %v2026 = vrot.slane %v1968, %v2025
      %v2027 = vmul.f32 %v550, %v2026
      %v2028 = vmul.f32 %v551, %v2026
      %v2029 = vlaneseq
      %v2030 = vshrl.u32 %v2029, 7
      %v2031 = vsub.s32 2, %v2030
      %v2032 = vrot.slane %v1968, %v2031
      %v2033 = vmul.f32 %v552, %v2032
      %v2034 = vmul.f32 %v553, %v2032
      %v2035 = vlaneseq
      %v2036 = vshrl.u32 %v2035, 7
      %v2037 = vsub.s32 3, %v2036
      %v2038 = vrot.slane %v1968, %v2037
      %v2039 = vmul.f32 %v554, %v2038
      %v2040 = vmul.f32 %v555, %v2038
      %v2041 = vlaneseq
      %v2042 = vshrl.u32 %v2041, 7
      %v2043 = vsub.s32 4, %v2042
      %v2044 = vrot.slane %v1968, %v2043
      %v2045 = vmul.f32 %v556, %v2044
      %v2046 = vmul.f32 %v557, %v2044
      %v2047 = vlaneseq
      %v2048 = vshrl.u32 %v2047, 7
      %v2049 = vsub.s32 5, %v2048
      %v2050 = vrot.slane %v1968, %v2049
      %v2051 = vmul.f32 %v558, %v2050
      %v2052 = vmul.f32 %v559, %v2050
      %v2053 = vlaneseq
      %v2054 = vshrl.u32 %v2053, 7
      %v2055 = vsub.s32 6, %v2054
      %v2056 = vrot.slane %v1968, %v2055
      %v2057 = vmul.f32 %v560, %v2056
      %v2058 = vmul.f32 %v561, %v2056
      %v2059 = vlaneseq
      %v2060 = vshrl.u32 %v2059, 7
      %v2061 = vsub.s32 7, %v2060
      %v2062 = vrot.slane %v1968, %v2061
      %v2063 = vmul.f32 %v562, %v2062
      %v2064 = vmul.f32 %v563, %v2062
      %v2065 = vadd.f32 %v1973, %v1979
      %v2066 = vadd.f32 %v1974, %v1980
      %v2067 = vadd.f32 %v1985, %v1991
      %v2068 = vadd.f32 %v1986, %v1992
      %v2069 = vadd.f32 %v1997, %v2003
      %v2070 = vadd.f32 %v1998, %v2004
      %v2071 = vadd.f32 %v2009, %v2015
      %v2072 = vadd.f32 %v2010, %v2016
      %v2073 = vadd.f32 %v2021, %v2027
      %v2074 = vadd.f32 %v2022, %v2028
      %v2075 = vadd.f32 %v2033, %v2039
      %v2076 = vadd.f32 %v2034, %v2040
      %v2077 = vadd.f32 %v2045, %v2051
      %v2078 = vadd.f32 %v2046, %v2052
      %v2079 = vadd.f32 %v2057, %v2063
      %v2080 = vadd.f32 %v2058, %v2064
      %v2081 = vadd.f32 %v2065, %v2067
      %v2082 = vadd.f32 %v2066, %v2068
      %v2083 = vadd.f32 %v2069, %v2071
      %v2084 = vadd.f32 %v2070, %v2072
      %v2085 = vadd.f32 %v2073, %v2075
      %v2086 = vadd.f32 %v2074, %v2076
      %v2087 = vadd.f32 %v2077, %v2079
      %v2088 = vadd.f32 %v2078, %v2080
      %v2089 = vadd.f32 %v2081, %v2083
      %v2090 = vadd.f32 %v2082, %v2084
      %v2091 = vadd.f32 %v2085, %v2087
      %v2092 = vadd.f32 %v2086, %v2088
      %v2093 = vadd.f32 %v2089, %v2091
      %v2094 = vadd.f32 %v2090, %v2092
      %v2095 = vrcp.pop %v2093
      %v2096 = vrcp.pop %v2094
      %v2097 = vmul.f32 %v578, %v2095
      %v2098 = vmul.f32 %v579, %v2096
      %v2099 = vsel %vm334, %v2097, 1.0
      %v2100 = vsel %vm335, %v2098, 1.0
      %v2101 = vsub.f32 %v1830, %v2099
      %v2102 = vsub.f32 %v1831, %v2100
      %v2103 = vand.u32 2147483647, %v2101
      %v2104 = vand.u32 2147483647, %v2102
      %v2105 = vadd.f32 %v2103, %v2104
      %v2106 = vrot.slane %v2105, 4
      %v2107 = vadd.f32 %v2105, %v2106
      %v2108 = vrot.slane %v2107, 2
      %v2109 = vadd.f32 %v2107, %v2108
      %v2110 = vrot.slane %v2109, 1
      %v2111 = vadd.f32 %v2109, %v2110
      %v2112 = vsub.f32 %v1832, %v1967
      %v2113 = vsub.f32 %v1833, %v1968
      %v2114 = vand.u32 2147483647, %v2112
      %v2115 = vand.u32 2147483647, %v2113
      %v2116 = vadd.f32 %v2114, %v2115
      %v2117 = vrot.slane %v2116, 4
      %v2118 = vadd.f32 %v2116, %v2117
      %v2119 = vrot.slane %v2118, 2
      %v2120 = vadd.f32 %v2118, %v2119
      %v2121 = vrot.slane %v2120, 1
      %v2122 = vadd.f32 %v2120, %v2121
      %v2123 = vmul.f32 %v2111, %v2111
      %v2124 = vmul.f32 %v2122, %v2122
      %v2125 = vadd.f32 %v2123, %v2124
      %vm2126 = vcmp.gt.f32.partialorder %v1836, 0.5
      %v2127 = vsel %vm2126, 1, 0
      %v2128 = vlaneseq
      %v2129 = vshrl.u32 %v2128, 7
      %v2130 = vsub.s32 0, %v2129
      %v2131 = vrot.slane %v2127, %v2130
      %vm2132 = vcmp.eq.s32.totalorder %v2131, 1
      %v2133 = vsel %vm2132, %v1830, %v2099
      %v2134 = vsel %vm2132, %v1831, %v2100
      %v2135 = vsel %vm2132, %v1832, %v1967
      %v2136 = vsel %vm2132, %v1833, %v1968
      %vm2137 = vcmp.le.f32.partialorder %v2125, 0.001
      %v2138 = vsel %vm2137, 1.0, 0.0
      %v2139 = vmax.f32 %v1836, %v2138
      %s2140 = sadd.s32 %s601, 5
    $region34: #{tpu_custom_call.1} parent=1 // loop_footer
      _
    $region35: #{tpu_custom_call.1} parent=1 // loop_footer_branch
      %600 = sbr.rel target = $region31
    $region36: #{tpu_custom_call.1} parent=1 // loop_exit
      _
    %vm2141 = vcmp.lt.s32.totalorder %v62, %v584
    %vm2142 = vcmp.lt.s32.totalorder %v63, %v584
    %vm2143 = vcmp.gt.s32.totalorder %v564, 0
    %v2144 = vsel %vm2143, 1, 0
    %v2145 = vlaneseq
    %v2146 = vshrl.u32 %v2145, 7
    %v2147 = vsub.s32 0, %v2146
    %v2148 = vrot.slane %v2144, %v2147
    %vm2149 = vcmp.eq.s32.totalorder %v2148, 1
    %vm2150 = vmand %vm2149, %vm2141
    %vm2151 = vmand %vm2149, %vm2142
    %v2152 = vlaneseq
    %v2153 = vshrl.u32 %v2152, 7
    %v2154 = vsub.s32 0, %v2153
    %v2155 = vrot.slane %v602, %v2154
    %v2156 = vmul.f32 %v282, %v2155
    %v2157 = vmul.f32 %v283, %v2155
    %v2158 = vmul.f32 %v2156, %v604
    %v2159 = vmul.f32 %v2157, %v605
    %v2160 = vsel %vm2150, %v2158, 0.0
    %v2161 = vsel %vm2151, %v2159, 0.0
    %2162 = vst [vmem:[#allocation8] sm:$0xff] %v2160
    %2163 = vst [vmem:[#allocation8 + $0x8] sm:$0xff] %v2161
    %vm2164 = vcmp.gt.s32.totalorder %v564, 1
    %v2165 = vsel %vm2164, 1, 0
    %v2166 = vlaneseq
    %v2167 = vshrl.u32 %v2166, 7
    %v2168 = vsub.s32 0, %v2167
    %v2169 = vrot.slane %v2165, %v2168
    %vm2170 = vcmp.eq.s32.totalorder %v2169, 1
    %vm2171 = vmand %vm2170, %vm2141
    %vm2172 = vmand %vm2170, %vm2142
    %v2173 = vlaneseq
    %v2174 = vshrl.u32 %v2173, 7
    %v2175 = vsub.s32 1, %v2174
    %v2176 = vrot.slane %v602, %v2175
    %v2177 = vmul.f32 %v284, %v2176
    %v2178 = vmul.f32 %v285, %v2176
    %v2179 = vmul.f32 %v2177, %v604
    %v2180 = vmul.f32 %v2178, %v605
    %v2181 = vsel %vm2171, %v2179, 0.0
    %v2182 = vsel %vm2172, %v2180, 0.0
    %s2183 = scalar_lea.vmem [#allocation8], 16
    %2184 = vst [vmem:[%s2183] sm:$0xff] %v2181
    %2185 = vst [vmem:[%s2183 + $0x8] sm:$0xff] %v2182
    %vm2186 = vcmp.gt.s32.totalorder %v564, 2
    %v2187 = vsel %vm2186, 1, 0
    %v2188 = vlaneseq
    %v2189 = vshrl.u32 %v2188, 7
    %v2190 = vsub.s32 0, %v2189
    %v2191 = vrot.slane %v2187, %v2190
    %vm2192 = vcmp.eq.s32.totalorder %v2191, 1
    %vm2193 = vmand %vm2192, %vm2141
    %vm2194 = vmand %vm2192, %vm2142
    %v2195 = vlaneseq
    %v2196 = vshrl.u32 %v2195, 7
    %v2197 = vsub.s32 2, %v2196
    %v2198 = vrot.slane %v602, %v2197
    %v2199 = vmul.f32 %v286, %v2198
    %v2200 = vmul.f32 %v287, %v2198
    %v2201 = vmul.f32 %v2199, %v604
    %v2202 = vmul.f32 %v2200, %v605
    %v2203 = vsel %vm2193, %v2201, 0.0
    %v2204 = vsel %vm2194, %v2202, 0.0
    %s2205 = scalar_lea.vmem [#allocation8], 32
    %2206 = vst [vmem:[%s2205] sm:$0xff] %v2203
    %2207 = vst [vmem:[%s2205 + $0x8] sm:$0xff] %v2204
    %vm2208 = vcmp.gt.s32.totalorder %v564, 3
    %v2209 = vsel %vm2208, 1, 0
    %v2210 = vlaneseq
    %v2211 = vshrl.u32 %v2210, 7
    %v2212 = vsub.s32 0, %v2211
    %v2213 = vrot.slane %v2209, %v2212
    %vm2214 = vcmp.eq.s32.totalorder %v2213, 1
    %vm2215 = vmand %vm2214, %vm2141
    %vm2216 = vmand %vm2214, %vm2142
    %v2217 = vlaneseq
    %v2218 = vshrl.u32 %v2217, 7
    %v2219 = vsub.s32 3, %v2218
    %v2220 = vrot.slane %v602, %v2219
    %v2221 = vmul.f32 %v288, %v2220
    %v2222 = vmul.f32 %v289, %v2220
    %v2223 = vmul.f32 %v2221, %v604
    %v2224 = vmul.f32 %v2222, %v605
    %v2225 = vsel %vm2215, %v2223, 0.0
    %v2226 = vsel %vm2216, %v2224, 0.0
    %s2227 = scalar_lea.vmem [#allocation8], 48
    %2228 = vst [vmem:[%s2227] sm:$0xff] %v2225
    %2229 = vst [vmem:[%s2227 + $0x8] sm:$0xff] %v2226
    %vm2230 = vcmp.gt.s32.totalorder %v564, 4
    %v2231 = vsel %vm2230, 1, 0
    %v2232 = vlaneseq
    %v2233 = vshrl.u32 %v2232, 7
    %v2234 = vsub.s32 0, %v2233
    %v2235 = vrot.slane %v2231, %v2234
    %vm2236 = vcmp.eq.s32.totalorder %v2235, 1
    %vm2237 = vmand %vm2236, %vm2141
    %vm2238 = vmand %vm2236, %vm2142
    %v2239 = vlaneseq
    %v2240 = vshrl.u32 %v2239, 7
    %v2241 = vsub.s32 4, %v2240
    %v2242 = vrot.slane %v602, %v2241
    %v2243 = vmul.f32 %v290, %v2242
    %v2244 = vmul.f32 %v291, %v2242
    %v2245 = vmul.f32 %v2243, %v604
    %v2246 = vmul.f32 %v2244, %v605
    %v2247 = vsel %vm2237, %v2245, 0.0
    %v2248 = vsel %vm2238, %v2246, 0.0
    %s2249 = scalar_lea.vmem [#allocation8], 64
    %2250 = vst [vmem:[%s2249] sm:$0xff] %v2247
    %2251 = vst [vmem:[%s2249 + $0x8] sm:$0xff] %v2248
    %vm2252 = vcmp.gt.s32.totalorder %v564, 5
    %v2253 = vsel %vm2252, 1, 0
    %v2254 = vlaneseq
    %v2255 = vshrl.u32 %v2254, 7
    %v2256 = vsub.s32 0, %v2255
    %v2257 = vrot.slane %v2253, %v2256
    %vm2258 = vcmp.eq.s32.totalorder %v2257, 1
    %vm2259 = vmand %vm2258, %vm2141
    %vm2260 = vmand %vm2258, %vm2142
    %v2261 = vlaneseq
    %v2262 = vshrl.u32 %v2261, 7
    %v2263 = vsub.s32 5, %v2262
    %v2264 = vrot.slane %v602, %v2263
    %v2265 = vmul.f32 %v292, %v2264
    %v2266 = vmul.f32 %v293, %v2264
    %v2267 = vmul.f32 %v2265, %v604
    %v2268 = vmul.f32 %v2266, %v605
    %v2269 = vsel %vm2259, %v2267, 0.0
    %v2270 = vsel %vm2260, %v2268, 0.0
    %s2271 = scalar_lea.vmem [#allocation8], 80
    %2272 = vst [vmem:[%s2271] sm:$0xff] %v2269
    %2273 = vst [vmem:[%s2271 + $0x8] sm:$0xff] %v2270
    %vm2274 = vcmp.gt.s32.totalorder %v564, 6
    %v2275 = vsel %vm2274, 1, 0
    %v2276 = vlaneseq
    %v2277 = vshrl.u32 %v2276, 7
    %v2278 = vsub.s32 0, %v2277
    %v2279 = vrot.slane %v2275, %v2278
    %vm2280 = vcmp.eq.s32.totalorder %v2279, 1
    %vm2281 = vmand %vm2280, %vm2141
    %vm2282 = vmand %vm2280, %vm2142
    %v2283 = vlaneseq
    %v2284 = vshrl.u32 %v2283, 7
    %v2285 = vsub.s32 6, %v2284
    %v2286 = vrot.slane %v602, %v2285
    %v2287 = vmul.f32 %v294, %v2286
    %v2288 = vmul.f32 %v295, %v2286
    %v2289 = vmul.f32 %v2287, %v604
    %v2290 = vmul.f32 %v2288, %v605
    %v2291 = vsel %vm2281, %v2289, 0.0
    %v2292 = vsel %vm2282, %v2290, 0.0
    %s2293 = scalar_lea.vmem [#allocation8], 96
    %2294 = vst [vmem:[%s2293] sm:$0xff] %v2291
    %2295 = vst [vmem:[%s2293 + $0x8] sm:$0xff] %v2292
    %vm2296 = vcmp.gt.s32.totalorder %v564, 7
    %v2297 = vsel %vm2296, 1, 0
    %v2298 = vlaneseq
    %v2299 = vshrl.u32 %v2298, 7
    %v2300 = vsub.s32 0, %v2299
    %v2301 = vrot.slane %v2297, %v2300
    %vm2302 = vcmp.eq.s32.totalorder %v2301, 1
    %vm2303 = vmand %vm2302, %vm2141
    %vm2304 = vmand %vm2302, %vm2142
    %v2305 = vlaneseq
    %v2306 = vshrl.u32 %v2305, 7
    %v2307 = vsub.s32 7, %v2306
    %v2308 = vrot.slane %v602, %v2307
    %v2309 = vmul.f32 %v296, %v2308
    %v2310 = vmul.f32 %v297, %v2308
    %v2311 = vmul.f32 %v2309, %v604
    %v2312 = vmul.f32 %v2310, %v605
    %v2313 = vsel %vm2303, %v2311, 0.0
    %v2314 = vsel %vm2304, %v2312, 0.0
    %s2315 = scalar_lea.vmem [#allocation8], 112
    %2316 = vst [vmem:[%s2315] sm:$0xff] %v2313
    %2317 = vst [vmem:[%s2315 + $0x8] sm:$0xff] %v2314
    %vm2318 = vcmp.gt.s32.totalorder %v564, 8
    %v2319 = vsel %vm2318, 1, 0
    %v2320 = vlaneseq
    %v2321 = vshrl.u32 %v2320, 7
    %v2322 = vsub.s32 0, %v2321
    %v2323 = vrot.slane %v2319, %v2322
    %vm2324 = vcmp.eq.s32.totalorder %v2323, 1
    %vm2325 = vmand %vm2324, %vm2141
    %vm2326 = vmand %vm2324, %vm2142
    %v2327 = vlaneseq
    %v2328 = vshrl.u32 %v2327, 7
    %v2329 = vsub.s32 0, %v2328
    %v2330 = vrot.slane %v603, %v2329
    %v2331 = vmul.f32 %v298, %v2330
    %v2332 = vmul.f32 %v299, %v2330
    %v2333 = vmul.f32 %v2331, %v604
    %v2334 = vmul.f32 %v2332, %v605
    %v2335 = vsel %vm2325, %v2333, 0.0
    %v2336 = vsel %vm2326, %v2334, 0.0
    %s2337 = scalar_lea.vmem [#allocation8], 128
    %2338 = vst [vmem:[%s2337] sm:$0xff] %v2335
    %2339 = vst [vmem:[%s2337 + $0x8] sm:$0xff] %v2336
    %vm2340 = vcmp.gt.s32.totalorder %v564, 9
    %v2341 = vsel %vm2340, 1, 0
    %v2342 = vlaneseq
    %v2343 = vshrl.u32 %v2342, 7
    %v2344 = vsub.s32 0, %v2343
    %v2345 = vrot.slane %v2341, %v2344
    %vm2346 = vcmp.eq.s32.totalorder %v2345, 1
    %vm2347 = vmand %vm2346, %vm2141
    %vm2348 = vmand %vm2346, %vm2142
    %v2349 = vlaneseq
    %v2350 = vshrl.u32 %v2349, 7
    %v2351 = vsub.s32 1, %v2350
    %v2352 = vrot.slane %v603, %v2351
    %v2353 = vmul.f32 %v300, %v2352
    %v2354 = vmul.f32 %v301, %v2352
    %v2355 = vmul.f32 %v2353, %v604
    %v2356 = vmul.f32 %v2354, %v605
    %v2357 = vsel %vm2347, %v2355, 0.0
    %v2358 = vsel %vm2348, %v2356, 0.0
    %s2359 = scalar_lea.vmem [#allocation8], 144
    %2360 = vst [vmem:[%s2359] sm:$0xff] %v2357
    %2361 = vst [vmem:[%s2359 + $0x8] sm:$0xff] %v2358
    %vm2362 = vcmp.gt.s32.totalorder %v564, 10
    %v2363 = vsel %vm2362, 1, 0
    %v2364 = vlaneseq
    %v2365 = vshrl.u32 %v2364, 7
    %v2366 = vsub.s32 0, %v2365
    %v2367 = vrot.slane %v2363, %v2366
    %vm2368 = vcmp.eq.s32.totalorder %v2367, 1
    %vm2369 = vmand %vm2368, %vm2141
    %vm2370 = vmand %vm2368, %vm2142
    %v2371 = vlaneseq
    %v2372 = vshrl.u32 %v2371, 7
    %v2373 = vsub.s32 2, %v2372
    %v2374 = vrot.slane %v603, %v2373
    %v2375 = vmul.f32 %v302, %v2374
    %v2376 = vmul.f32 %v303, %v2374
    %v2377 = vmul.f32 %v2375, %v604
    %v2378 = vmul.f32 %v2376, %v605
    %v2379 = vsel %vm2369, %v2377, 0.0
    %v2380 = vsel %vm2370, %v2378, 0.0
    %s2381 = scalar_lea.vmem [#allocation8], 160
    %2382 = vst [vmem:[%s2381] sm:$0xff] %v2379
    %2383 = vst [vmem:[%s2381 + $0x8] sm:$0xff] %v2380
    %vm2384 = vcmp.gt.s32.totalorder %v564, 11
    %v2385 = vsel %vm2384, 1, 0
    %v2386 = vlaneseq
    %v2387 = vshrl.u32 %v2386, 7
    %v2388 = vsub.s32 0, %v2387
    %v2389 = vrot.slane %v2385, %v2388
    %vm2390 = vcmp.eq.s32.totalorder %v2389, 1
    %vm2391 = vmand %vm2390, %vm2141
    %vm2392 = vmand %vm2390, %vm2142
    %v2393 = vlaneseq
    %v2394 = vshrl.u32 %v2393, 7
    %v2395 = vsub.s32 3, %v2394
    %v2396 = vrot.slane %v603, %v2395
    %v2397 = vmul.f32 %v304, %v2396
    %v2398 = vmul.f32 %v305, %v2396
    %v2399 = vmul.f32 %v2397, %v604
    %v2400 = vmul.f32 %v2398, %v605
    %v2401 = vsel %vm2391, %v2399, 0.0
    %v2402 = vsel %vm2392, %v2400, 0.0
    %s2403 = scalar_lea.vmem [#allocation8], 176
    %2404 = vst [vmem:[%s2403] sm:$0xff] %v2401
    %2405 = vst [vmem:[%s2403 + $0x8] sm:$0xff] %v2402
    %vm2406 = vcmp.gt.s32.totalorder %v564, 12
    %v2407 = vsel %vm2406, 1, 0
    %v2408 = vlaneseq
    %v2409 = vshrl.u32 %v2408, 7
    %v2410 = vsub.s32 0, %v2409
    %v2411 = vrot.slane %v2407, %v2410
    %vm2412 = vcmp.eq.s32.totalorder %v2411, 1
    %vm2413 = vmand %vm2412, %vm2141
    %vm2414 = vmand %vm2412, %vm2142
    %v2415 = vlaneseq
    %v2416 = vshrl.u32 %v2415, 7
    %v2417 = vsub.s32 4, %v2416
    %v2418 = vrot.slane %v603, %v2417
    %v2419 = vmul.f32 %v306, %v2418
    %v2420 = vmul.f32 %v307, %v2418
    %v2421 = vmul.f32 %v2419, %v604
    %v2422 = vmul.f32 %v2420, %v605
    %v2423 = vsel %vm2413, %v2421, 0.0
    %v2424 = vsel %vm2414, %v2422, 0.0
    %s2425 = scalar_lea.vmem [#allocation8], 192
    %2426 = vst [vmem:[%s2425] sm:$0xff] %v2423
    %2427 = vst [vmem:[%s2425 + $0x8] sm:$0xff] %v2424
    %vm2428 = vcmp.gt.s32.totalorder %v564, 13
    %v2429 = vsel %vm2428, 1, 0
    %v2430 = vlaneseq
    %v2431 = vshrl.u32 %v2430, 7
    %v2432 = vsub.s32 0, %v2431
    %v2433 = vrot.slane %v2429, %v2432
    %vm2434 = vcmp.eq.s32.totalorder %v2433, 1
    %vm2435 = vmand %vm2434, %vm2141
    %vm2436 = vmand %vm2434, %vm2142
    %v2437 = vlaneseq
    %v2438 = vshrl.u32 %v2437, 7
    %v2439 = vsub.s32 5, %v2438
    %v2440 = vrot.slane %v603, %v2439
    %v2441 = vmul.f32 %v308, %v2440
    %v2442 = vmul.f32 %v309, %v2440
    %v2443 = vmul.f32 %v2441, %v604
    %v2444 = vmul.f32 %v2442, %v605
    %v2445 = vsel %vm2435, %v2443, 0.0
    %v2446 = vsel %vm2436, %v2444, 0.0
    %s2447 = scalar_lea.vmem [#allocation8], 208
    %2448 = vst [vmem:[%s2447] sm:$0xff] %v2445
    %2449 = vst [vmem:[%s2447 + $0x8] sm:$0xff] %v2446
    %vm2450 = vcmp.gt.s32.totalorder %v564, 14
    %v2451 = vsel %vm2450, 1, 0
    %v2452 = vlaneseq
    %v2453 = vshrl.u32 %v2452, 7
    %v2454 = vsub.s32 0, %v2453
    %v2455 = vrot.slane %v2451, %v2454
    %vm2456 = vcmp.eq.s32.totalorder %v2455, 1
    %vm2457 = vmand %vm2456, %vm2141
    %vm2458 = vmand %vm2456, %vm2142
    %v2459 = vlaneseq
    %v2460 = vshrl.u32 %v2459, 7
    %v2461 = vsub.s32 6, %v2460
    %v2462 = vrot.slane %v603, %v2461
    %v2463 = vmul.f32 %v310, %v2462
    %v2464 = vmul.f32 %v311, %v2462
    %v2465 = vmul.f32 %v2463, %v604
    %v2466 = vmul.f32 %v2464, %v605
    %v2467 = vsel %vm2457, %v2465, 0.0
    %v2468 = vsel %vm2458, %v2466, 0.0
    %s2469 = scalar_lea.vmem [#allocation8], 224
    %2470 = vst [vmem:[%s2469] sm:$0xff] %v2467
    %2471 = vst [vmem:[%s2469 + $0x8] sm:$0xff] %v2468
    %vm2472 = vcmp.gt.s32.totalorder %v564, 15
    %v2473 = vsel %vm2472, 1, 0
    %v2474 = vlaneseq
    %v2475 = vshrl.u32 %v2474, 7
    %v2476 = vsub.s32 0, %v2475
    %v2477 = vrot.slane %v2473, %v2476
    %vm2478 = vcmp.eq.s32.totalorder %v2477, 1
    %vm2479 = vmand %vm2478, %vm2141
    %vm2480 = vmand %vm2478, %vm2142
    %v2481 = vlaneseq
    %v2482 = vshrl.u32 %v2481, 7
    %v2483 = vsub.s32 7, %v2482
    %v2484 = vrot.slane %v603, %v2483
    %v2485 = vmul.f32 %v312, %v2484
    %v2486 = vmul.f32 %v313, %v2484
    %v2487 = vmul.f32 %v2485, %v604
    %v2488 = vmul.f32 %v2486, %v605
    %v2489 = vsel %vm2479, %v2487, 0.0
    %v2490 = vsel %vm2480, %v2488, 0.0
    %s2491 = scalar_lea.vmem [#allocation8], 240
    %2492 = vst [vmem:[%s2491] sm:$0xff] %v2489
    %2493 = vst [vmem:[%s2491 + $0x8] sm:$0xff] %v2490
    // Predicated region
    $region37: #{tpu_custom_call.1} parent=1 // pred_check
      _
    $region38: #{tpu_custom_call.1} parent=1 // pred_check_branch
      %2495 = sbr.rel (0) target = $region40
    $region39: #{tpu_custom_call.1} parent=1 // pred_region
      %s2497 = ssub.s32 4096, 4096
      %2498 = vsyncadd [#allocation4], %s2497
      %s2499 = sshll.u32 [#allocation8], 4
      %s2500 = int_to_ptr.vmem [resolvable:$true] %s2499
      %2505 = dma.vmem_to_hbm [thread:$0]  %s2500, 4096, %s4, [#allocation4], 128, 128, 8
    $region40: #{tpu_custom_call.1} parent=1 // pred_fallthru
      _
    // Predicated region
    $region41: #{tpu_custom_call.1} parent=1 // pred_check
      _
    $region42: #{tpu_custom_call.1} parent=1 // pred_check_branch
      %2507 = sbr.rel (0) target = $region44
    $region43: #{tpu_custom_call.1} parent=1 // pred_region
      %2508 = dma.done [#allocation4], 4096
    $region44: #{tpu_custom_call.1} parent=1 // pred_fallthru
      _
    %2509 = vsyncpa [#allocation3], 1
    %2510 = vsyncpa [#allocation6], 1
    %2511 = vsyncpa [#allocation4], 1

</llo_original>
